<compile_context>
chip_gen: v6e
topology: v6e:2x2x1
jax: 0.10.0
libtpu: 0.0.40
codegen_flags: <defaults>
</compile_context>

<pallas_src>
import functools

import jax
import jax.numpy as jnp
from jax import lax
from jax.experimental import pallas as pl
from jax.experimental.pallas import tpu as pltpu


def _round_up(n: int, m: int) -> int:
    return ((n + m - 1) // m) * m


def _self_attention_kernel(C, approx_recip, compute_dtype,
                           xq_ref, k_ref, v_ref, wq_ref, bq_ref, g_ref,
                           o_ref, q_scr, m_scr, acc_scr):
    ki = pl.program_id(2)
    nk = pl.num_programs(2)

    # ---- first key tile for this (batch, q-tile): project the query tile once
    # (cached in compute_dtype) and reset the online-softmax state. -----------
    @pl.when(ki == 0)
    def _init():
        xq = xq_ref[0].astype(compute_dtype)                        # (C, tq)
        q = jnp.dot(wq_ref[...], xq,
                    preferred_element_type=jnp.float32) + bq_ref[...]
        q_scr[...] = q.astype(compute_dtype)                        # (Cqp, tq)
        m_scr[...] = jnp.full_like(m_scr, -jnp.inf)
        acc_scr[...] = jnp.zeros_like(acc_scr)

    k = k_ref[0]                                                    # (Cqp, tk)
    v = v_ref[0]                                                    # (C+1, tk), row C == 1
    q = q_scr[...]                                                  # (Cqp, tq)

    # ---- scores, transposed: keys on sublanes, queries on lanes --------------
    # s[j, i] = sum_c k[c, j] * q[c, i]  ==  energy[i, j]
    s = lax.dot_general(k, q, (((0,), (0,)), ((), ())),
                        preferred_element_type=jnp.float32)         # (tk, tq)

    # ---- online softmax over the key axis (axis 0), stats in f32 -------------
    m_prev = m_scr[...]                                             # (1, tq)
    m_new = jnp.maximum(m_prev, jnp.max(s, axis=0, keepdims=True))
    alpha = jnp.exp(m_prev - m_new)
    p = jnp.exp(s - m_new).astype(compute_dtype)                    # (tk, tq)
    # V is augmented with a ones row, so this single MXU op yields both the
    # numerator (rows :C) and the softmax denominator (row C), f32-accumulated.
    pv = lax.dot_general(v, p, (((1,), (0,)), ((), ())),
                         preferred_element_type=jnp.float32)        # (C+1, tq)
    acc_scr[...] = alpha * acc_scr[...] + pv
    m_scr[...] = m_new

    # ---- last key tile: normalize, apply gamma-scaled residual ---------------
    @pl.when(ki == nk - 1)
    def _finalize():
        l = acc_scr[C:C + 1, :]                                     # (1, tq)
        inv_l = pl.reciprocal(l, approx=approx_recip)
        attn_out = acc_scr[:C, :] * inv_l                           # (C, tq)
        gamma = g_ref[0]
        o_ref[0] = (gamma * attn_out + xq_ref[0]).astype(o_ref.dtype)


def self_attention_pallas(x_nchw, wq, bq, wk, bk, wv, bv, gamma, *,
                          q_tile=512, k_tile=512,
                          compute_dtype=jnp.bfloat16):
    """SelfAttention forward.

    x_nchw: (B, C, H, W) float32.
    wq/wk: (C//8, C), wv: (C, C) -- PyTorch Conv2d 1x1 weights (kernel dims squeezed).
    bq/bk: (C//8,), bv: (C,), gamma: scalar.
    """
    B, C, H, W = x_nchw.shape
    HW = H * W
    Cq = wq.shape[0]
    f32 = jnp.float32
    csz = jnp.dtype(compute_dtype).itemsize
    pack = 16 if csz < 4 else 8
    Cqp = max(pack, _round_up(Cq, pack))   # pad Q/K channels to a packed-vreg multiple
    Cv = C + 1                             # value channels + ones row (fused denominator)

    tq = min(q_tile, HW)
    tk = min(k_tile, HW)
    # v7x megacore: keep the parallel extent (B * nq) even when it is cheap to do so.
    if (B * (HW // tq)) % 2 == 1 and tq % 2 == 0 and tq >= 256 and HW % (tq // 2) == 0:
        tq //= 2
    if HW % tq or HW % tk:
        raise ValueError(f"H*W={HW} must be divisible by tile sizes ({tq}, {tk})")
    nq, nk = HW // tq, HW // tk

    # NCHW -> (B, C, HW): pure reshape, no transpose / extra HBM round trip.
    x3 = x_nchw.reshape(B, C, HW).astype(f32)

    # ---- one-time projections hoisted out of the attention grid --------------
    # Padded Q weights/bias (padded rows are zero -> contribute 0 to scores),
    # kept for the in-kernel per-query-tile projection.
    wq_p = jnp.zeros((Cqp, C), f32).at[:Cq].set(jnp.asarray(wq, f32))
    bq_p = jnp.zeros((Cqp, 1), f32).at[:Cq, 0].set(jnp.asarray(bq, f32))
    # K projected once, zero-padded to Cqp channels, stored in compute_dtype.
    wk_p = jnp.zeros((Cqp, C), f32).at[:Cq].set(jnp.asarray(wk, f32))
    bk_p = jnp.zeros((Cqp,), f32).at[:Cq].set(jnp.asarray(bk, f32))
    k_hbm = (jnp.einsum("oc,bcp->bop", wk_p, x3)
             + bk_p[None, :, None]).astype(compute_dtype)            # (B, Cqp, HW)
    # V projected once and augmented with a ones row so the PV matmul also
    # produces the softmax denominator.
    v_full = (jnp.einsum("oc,bcp->bop", jnp.asarray(wv, f32), x3)
              + jnp.asarray(bv, f32)[None, :, None])                 # (B, C, HW)
    v_hbm = jnp.concatenate(
        [v_full, jnp.ones((B, 1, HW), f32)], axis=1).astype(compute_dtype)  # (B, C+1, HW)

    g = jnp.asarray(gamma, f32).reshape(1)
    wq_c = wq_p.astype(compute_dtype)

    # ---- VMEM budget (BlockSpec double-buffers every tiled operand) ----------
    vmem_bytes = (
        2 * (C * tq * 4)                           # x query tile
        + 2 * (C * tq * 4)                         # output tile
        + 2 * (Cqp * tk * csz)                     # K tile
        + 2 * (Cv * tk * csz)                      # V(+ones) tile
        + 2 * (Cqp * C * csz + Cqp * 4)            # Wq + bq
        + Cqp * tq * csz + tq * 4 + Cv * tq * 4)   # scratch: q, m, acc
    try:
        phys_vmem = int(pltpu.get_tpu_info().vmem_capacity_bytes)
    except Exception:
        phys_vmem = 64 << 20                       # conservative (v7x-sized VMEM)
    cap = (phys_vmem * 3) // 4                     # headroom for compiler temps
    vmem_limit = int(min(max(vmem_bytes + (4 << 20), 16 << 20), cap))

    approx_recip = bool(jnp.dtype(compute_dtype) != jnp.dtype(jnp.float32))
    kernel = functools.partial(_self_attention_kernel, C, approx_recip,
                               compute_dtype)

    out3 = pl.pallas_call(
        kernel,
        out_shape=jax.ShapeDtypeStruct((B, C, HW), jnp.float32),
        grid=(B, nq, nk),
        in_specs=[
            pl.BlockSpec((1, C, tq), lambda b, qi, ki: (b, 0, qi)),    # x (query tile)
            pl.BlockSpec((1, Cqp, tk), lambda b, qi, ki: (b, 0, ki)),  # K tile
            pl.BlockSpec((1, Cv, tk), lambda b, qi, ki: (b, 0, ki)),   # V(+ones) tile
            pl.BlockSpec((Cqp, C), lambda b, qi, ki: (0, 0)),          # Wq (padded)
            pl.BlockSpec((Cqp, 1), lambda b, qi, ki: (0, 0)),          # bq (padded)
            pl.BlockSpec(memory_space=pltpu.MemorySpace.SMEM),         # gamma scalar
        ],
        out_specs=pl.BlockSpec((1, C, tq), lambda b, qi, ki: (b, 0, qi)),
        scratch_shapes=[
            pltpu.VMEM((Cqp, tq), compute_dtype),  # projected query tile (cached)
            pltpu.VMEM((1, tq), jnp.float32),      # m  (running max)
            pltpu.VMEM((Cv, tq), jnp.float32),     # acc (numerator rows + denom row)
        ],
        compiler_params=pltpu.CompilerParams(
            dimension_semantics=("parallel", "parallel", "arbitrary"),
            vmem_limit_bytes=vmem_limit),
    )(x3, k_hbm, v_hbm, wq_c, bq_p, g)

    return out3.reshape(B, C, H, W)


def self_attention_ref(x_nchw, wq, bq, wk, bk, wv, bv, gamma):
    """Pure-JAX f32 reference mirroring the PyTorch forward exactly."""
    B, C, H, W = x_nchw.shape
    HW = H * W
    x = x_nchw.astype(jnp.float32)
    xc = x.reshape(B, C, HW)                                          # (B, C, HW)
    q = jnp.einsum("oc,bcp->bop", wq, xc) + bq[None, :, None]         # (B, Cq, HW)
    k = jnp.einsum("oc,bcp->bop", wk, xc) + bk[None, :, None]
    v = jnp.einsum("oc,bcp->bop", wv, xc) + bv[None, :, None]         # (B, C, HW)
    energy = jnp.einsum("bci,bcj->bij", q, k)                         # (B, HW, HW)
    attn = jax.nn.softmax(energy, axis=2)
    out = jnp.einsum("bcj,bij->bci", v, attn)                         # (B, C, HW)
    out = out.reshape(B, C, H, W)
    return gamma * out + x


if __name__ == "__main__":
    B, C, H, W = 2, 16, 32, 32        # HW = 1024 -> 2 query tiles x 2 key tiles
    Cq = C // 8

    key = jax.random.PRNGKey(0)
    kx, kq, kk, kv, kbq, kbk, kbv = jax.random.split(key, 7)

    x = jax.random.normal(kx, (B, C, H, W), dtype=jnp.float32)

    scale = 1.0 / jnp.sqrt(C)
    wq = jax.random.normal(kq, (Cq, C), dtype=jnp.float32) * scale
    wk = jax.random.normal(kk, (Cq, C), dtype=jnp.float32) * scale
    wv = jax.random.normal(kv, (C, C), dtype=jnp.float32) * scale
    bq = jax.random.normal(kbq, (Cq,), dtype=jnp.float32) * 0.1
    bk = jax.random.normal(kbk, (Cq,), dtype=jnp.float32) * 0.1
    bv = jax.random.normal(kbv, (C,), dtype=jnp.float32) * 0.1
    # PyTorch init is gamma = 0 (output == x); use a nonzero value so the
    # attention path is actually exercised numerically.
    gamma = jnp.float32(0.5)

    ref = self_attention_ref(x, wq, bq, wk, bk, wv, bv, gamma)

    # f32 compute path: tight correctness check of the flash-tiled kernel.
    out_f32 = self_attention_pallas(x, wq, bq, wk, bk, wv, bv, gamma,
                                    q_tile=512, k_tile=512,
                                    compute_dtype=jnp.float32)
    out_f32 = jax.block_until_ready(out_f32)
    assert out_f32.shape == (B, C, H, W)
    assert jnp.allclose(out_f32, ref, atol=5e-3, rtol=5e-3), "f32 mismatch vs reference"

    # bf16 MXU path (default): looser tolerance for bf16 operand rounding.
    out_bf16 = self_attention_pallas(x, wq, bq, wk, bk, wv, bv, gamma,
                                     q_tile=512, k_tile=512,
                                     compute_dtype=jnp.bfloat16)
    out_bf16 = jax.block_until_ready(out_bf16)
    assert jnp.allclose(out_bf16, ref, atol=5e-2, rtol=5e-2), "bf16 mismatch vs reference"

    print("KERNEL_OK")
</pallas_src>

<mosaic_0001>
module attributes {stable_mosaic.version = 11 : i64} {
  func.func @_self_attention_kernel(%arg0: i32, %arg1: i32, %arg2: i32, %arg3: memref<1x16x512xf32, #tpu.memory_space<vmem>>, %arg4: memref<1x8x512xf32, #tpu.memory_space<vmem>>, %arg5: memref<1x17x512xf32, #tpu.memory_space<vmem>>, %arg6: memref<8x16xf32, #tpu.memory_space<vmem>>, %arg7: memref<8x1xf32, #tpu.memory_space<vmem>>, %arg8: memref<1xf32, #tpu.memory_space<smem>>, %arg9: memref<1x16x512xf32, #tpu.memory_space<vmem>>, %arg10: memref<8x512xf32, #tpu.memory_space<vmem>>, %arg11: memref<1x512xf32, #tpu.memory_space<vmem>>, %arg12: memref<17x512xf32, #tpu.memory_space<vmem>>) attributes {dimension_semantics = [#tpu.dimension_semantics<parallel>, #tpu.dimension_semantics<parallel>, #tpu.dimension_semantics<arbitrary>], iteration_bounds = array<i64: 2, 2, 2>, scalar_prefetch = 0 : i64, scratch_operands = 3 : i64, tpu.core_type = #tpu.core_type<tc>, window_params = [{transform_indices = @transform_0, window_bounds = array<i64: 1, 16, 512>}, {transform_indices = @transform_1, window_bounds = array<i64: 1, 8, 512>}, {transform_indices = @transform_2, window_bounds = array<i64: 1, 17, 512>}, {pipeline_mode = #tpu.pipeline_mode<synchronous>, transform_indices = @transform_3, window_bounds = array<i64: 8, 16>}, {pipeline_mode = #tpu.pipeline_mode<synchronous>, transform_indices = @transform_4, window_bounds = array<i64: 8, 1>}, {transform_indices = @transform_5, window_bounds = array<i64: 1>}, {transform_indices = @transform_6, window_bounds = array<i64: 1, 16, 512>}]} {
    %c0_i32 = arith.constant 0 : i32
    %0 = arith.cmpi eq, %arg2, %c0_i32 : i32
    %1 = arith.extui %0 : i1 to i32
    %c0_i32_0 = arith.constant 0 : i32
    %2 = arith.cmpi ne, %1, %c0_i32_0 : i32
    scf.if %2 {
      %c0_19 = arith.constant 0 : index
      %c0_20 = arith.constant 0 : index
      %c0_21 = arith.constant 0 : index
      %28 = vector.load %arg3[%c0_19, %c0_20, %c0_21] : memref<1x16x512xf32, #tpu.memory_space<vmem>>, vector<1x16x512xf32>
      %29 = vector.shape_cast %28 : vector<1x16x512xf32> to vector<16x512xf32>
      %c0_22 = arith.constant 0 : index
      %c0_23 = arith.constant 0 : index
      %30 = vector.load %arg6[%c0_22, %c0_23] : memref<8x16xf32, #tpu.memory_space<vmem>>, vector<8x16xf32>
      %cst_24 = arith.constant dense<0.000000e+00> : vector<8x512xf32>
      %31 = tpu.matmul %30, %29, %cst_24 {dimension_numbers = #tpu.dot_dimension_numbers<[1], [0], [0], [1], [0, 0, 1, 1], [], []>} : vector<8x16xf32>, vector<16x512xf32>, vector<8x512xf32> -> vector<8x512xf32>
      %c0_25 = arith.constant 0 : index
      %c0_26 = arith.constant 0 : index
      %32 = vector.load %arg7[%c0_25, %c0_26] : memref<8x1xf32, #tpu.memory_space<vmem>>, vector<8x1xf32>
      %33 = vector.broadcast %32 : vector<8x1xf32> to vector<8x512xf32>
      %34 = arith.addf %31, %33 : vector<8x512xf32>
      %c0_27 = arith.constant 0 : index
      %c0_28 = arith.constant 0 : index
      %35 = vector.load %arg10[%c0_27, %c0_28] : memref<8x512xf32, #tpu.memory_space<vmem>>, vector<8x512xf32>
      tpu.vector_store %arg10[%c0_27, %c0_28], %34 {strides = array<i32>} : memref<8x512xf32, #tpu.memory_space<vmem>>, vector<8x512xf32>,
      %cst_29 = arith.constant 0xFF800000 : f32
      %36 = vector.broadcast %cst_29 : f32 to vector<1x512xf32>
      %c0_30 = arith.constant 0 : index
      %c0_31 = arith.constant 0 : index
      %37 = vector.load %arg11[%c0_30, %c0_31] : memref<1x512xf32, #tpu.memory_space<vmem>>, vector<1x512xf32>
      tpu.vector_store %arg11[%c0_30, %c0_31], %36 {strides = array<i32>} : memref<1x512xf32, #tpu.memory_space<vmem>>, vector<1x512xf32>,
      %cst_32 = arith.constant 0.000000e+00 : f32
      %38 = vector.broadcast %cst_32 : f32 to vector<17x512xf32>
      %c0_33 = arith.constant 0 : index
      %c0_34 = arith.constant 0 : index
      %39 = vector.load %arg12[%c0_33, %c0_34] : memref<17x512xf32, #tpu.memory_space<vmem>>, vector<17x512xf32>
      tpu.vector_store %arg12[%c0_33, %c0_34], %38 {strides = array<i32>} : memref<17x512xf32, #tpu.memory_space<vmem>>, vector<17x512xf32>,
    } else {
    }
    %c0 = arith.constant 0 : index
    %c0_1 = arith.constant 0 : index
    %c0_2 = arith.constant 0 : index
    %3 = vector.load %arg4[%c0, %c0_1, %c0_2] : memref<1x8x512xf32, #tpu.memory_space<vmem>>, vector<1x8x512xf32>
    %4 = vector.shape_cast %3 : vector<1x8x512xf32> to vector<8x512xf32>
    %c0_3 = arith.constant 0 : index
    %c0_4 = arith.constant 0 : index
    %c0_5 = arith.constant 0 : index
    %5 = vector.load %arg5[%c0_3, %c0_4, %c0_5] : memref<1x17x512xf32, #tpu.memory_space<vmem>>, vector<1x17x512xf32>
    %6 = vector.shape_cast %5 : vector<1x17x512xf32> to vector<17x512xf32>
    %c0_6 = arith.constant 0 : index
    %c0_7 = arith.constant 0 : index
    %7 = vector.load %arg10[%c0_6, %c0_7] : memref<8x512xf32, #tpu.memory_space<vmem>>, vector<8x512xf32>
    %cst = arith.constant dense<0.000000e+00> : vector<512x512xf32>
    %8 = tpu.matmul %4, %7, %cst {dimension_numbers = #tpu.dot_dimension_numbers<[0], [0], [1], [1], [0, 1, 1, 1], [], []>} : vector<8x512xf32>, vector<8x512xf32>, vector<512x512xf32> -> vector<512x512xf32>
    %c0_8 = arith.constant 0 : index
    %c0_9 = arith.constant 0 : index
    %9 = vector.load %arg11[%c0_8, %c0_9] : memref<1x512xf32, #tpu.memory_space<vmem>>, vector<1x512xf32>
    %cst_10 = arith.constant dense<0xFF800000> : vector<512xf32>
    %10 = vector.multi_reduction <maximumf>, %8, %cst_10 [0] : vector<512x512xf32> to vector<512xf32>
    %11 = vector.shape_cast %10 : vector<512xf32> to vector<1x512xf32>
    %12 = arith.maximumf %9, %11 : vector<1x512xf32>
    %13 = arith.subf %9, %12 : vector<1x512xf32>
    %14 = math.exp %13 : vector<1x512xf32>
    %15 = vector.broadcast %12 : vector<1x512xf32> to vector<512x512xf32>
    %16 = arith.subf %8, %15 : vector<512x512xf32>
    %17 = math.exp %16 : vector<512x512xf32>
    %cst_11 = arith.constant dense<0.000000e+00> : vector<17x512xf32>
    %18 = tpu.matmul %6, %17, %cst_11 {dimension_numbers = #tpu.dot_dimension_numbers<[1], [0], [0], [1], [0, 0, 1, 1], [], []>} : vector<17x512xf32>, vector<512x512xf32>, vector<17x512xf32> -> vector<17x512xf32>
    %c0_12 = arith.constant 0 : index
    %c0_13 = arith.constant 0 : index
    %19 = vector.load %arg12[%c0_12, %c0_13] : memref<17x512xf32, #tpu.memory_space<vmem>>, vector<17x512xf32>
    %20 = vector.broadcast %14 : vector<1x512xf32> to vector<17x512xf32>
    %21 = arith.mulf %20, %19 : vector<17x512xf32>
    %22 = arith.addf %21, %18 : vector<17x512xf32>
    %c0_14 = arith.constant 0 : index
    %c0_15 = arith.constant 0 : index
    %23 = vector.load %arg12[%c0_14, %c0_15] : memref<17x512xf32, #tpu.memory_space<vmem>>, vector<17x512xf32>
    tpu.vector_store %arg12[%c0_14, %c0_15], %22 {strides = array<i32>} : memref<17x512xf32, #tpu.memory_space<vmem>>, vector<17x512xf32>,
    %c0_16 = arith.constant 0 : index
    %c0_17 = arith.constant 0 : index
    %24 = vector.load %arg11[%c0_16, %c0_17] : memref<1x512xf32, #tpu.memory_space<vmem>>, vector<1x512xf32>
    tpu.vector_store %arg11[%c0_16, %c0_17], %12 {strides = array<i32>} : memref<1x512xf32, #tpu.memory_space<vmem>>, vector<1x512xf32>,
    %c1_i32 = arith.constant 1 : i32
    %25 = arith.cmpi eq, %arg2, %c1_i32 : i32
    %26 = arith.extui %25 : i1 to i32
    %c0_i32_18 = arith.constant 0 : i32
    %27 = arith.cmpi ne, %26, %c0_i32_18 : i32
    scf.if %27 {
      %c16 = arith.constant 16 : index
      %c0_19 = arith.constant 0 : index
      %28 = vector.load %arg12[%c16, %c0_19] : memref<17x512xf32, #tpu.memory_space<vmem>>, vector<1x512xf32>
      %29 = tpu.reciprocal %28 : vector<1x512xf32> -> vector<1x512xf32>
      %c0_20 = arith.constant 0 : index
      %c0_21 = arith.constant 0 : index
      %30 = vector.load %arg12[%c0_20, %c0_21] : memref<17x512xf32, #tpu.memory_space<vmem>>, vector<16x512xf32>
      %31 = vector.broadcast %29 : vector<1x512xf32> to vector<16x512xf32>
      %32 = arith.mulf %30, %31 : vector<16x512xf32>
      %c0_22 = arith.constant 0 : index
      %33 = memref.load %arg8[%c0_22] : memref<1xf32, #tpu.memory_space<smem>>
      %34 = vector.broadcast %33 : f32 to vector<16x512xf32>
      %35 = arith.mulf %34, %32 : vector<16x512xf32>
      %c0_23 = arith.constant 0 : index
      %c0_24 = arith.constant 0 : index
      %c0_25 = arith.constant 0 : index
      %36 = vector.load %arg3[%c0_23, %c0_24, %c0_25] : memref<1x16x512xf32, #tpu.memory_space<vmem>>, vector<1x16x512xf32>
      %37 = vector.shape_cast %36 : vector<1x16x512xf32> to vector<16x512xf32>
      %38 = arith.addf %35, %37 : vector<16x512xf32>
      %c0_26 = arith.constant 0 : index
      %c0_27 = arith.constant 0 : index
      %c0_28 = arith.constant 0 : index
      %39 = vector.load %arg9[%c0_26, %c0_27, %c0_28] : memref<1x16x512xf32, #tpu.memory_space<vmem>>, vector<1x16x512xf32>
      %40 = vector.shape_cast %39 : vector<1x16x512xf32> to vector<16x512xf32>
      %41 = vector.shape_cast %38 : vector<16x512xf32> to vector<1x16x512xf32>
      tpu.vector_store %arg9[%c0_26, %c0_27, %c0_28], %41 {strides = array<i32>} : memref<1x16x512xf32, #tpu.memory_space<vmem>>, vector<1x16x512xf32>,
    } else {
    }
    return
  }
  func.func @transform_0(%arg0: i32, %arg1: i32, %arg2: i32) -> (i32, i32, i32) {
    %c0_i32 = arith.constant 0 : i32
    %c0_i32_0 = arith.constant 0 : i32
    return %arg0, %c0_i32, %arg1 : i32, i32, i32
  }
  func.func @transform_1(%arg0: i32, %arg1: i32, %arg2: i32) -> (i32, i32, i32) {
    %c0_i32 = arith.constant 0 : i32
    %c0_i32_0 = arith.constant 0 : i32
    return %arg0, %c0_i32, %arg2 : i32, i32, i32
  }
  func.func @transform_2(%arg0: i32, %arg1: i32, %arg2: i32) -> (i32, i32, i32) {
    %c0_i32 = arith.constant 0 : i32
    %c0_i32_0 = arith.constant 0 : i32
    return %arg0, %c0_i32, %arg2 : i32, i32, i32
  }
  func.func @transform_3(%arg0: i32, %arg1: i32, %arg2: i32) -> (i32, i32) {
    %c0_i32 = arith.constant 0 : i32
    %c0_i32_0 = arith.constant 0 : i32
    %c0_i32_1 = arith.constant 0 : i32
    return %c0_i32, %c0_i32_0 : i32, i32
  }
  func.func @transform_4(%arg0: i32, %arg1: i32, %arg2: i32) -> (i32, i32) {
    %c0_i32 = arith.constant 0 : i32
    %c0_i32_0 = arith.constant 0 : i32
    %c0_i32_1 = arith.constant 0 : i32
    return %c0_i32, %c0_i32_0 : i32, i32
  }
  func.func @transform_5(%arg0: i32, %arg1: i32, %arg2: i32) -> i32 {
    %c0_i32 = arith.constant 0 : i32
    %c0_i32_0 = arith.constant 0 : i32
    return %c0_i32 : i32
  }
  func.func @transform_6(%arg0: i32, %arg1: i32, %arg2: i32) -> (i32, i32, i32) {
    %c0_i32 = arith.constant 0 : i32
    %c0_i32_0 = arith.constant 0 : i32
    return %arg0, %c0_i32, %arg1 : i32, i32, i32
  }
}

</mosaic_0001>

<llo_original>
// kernel: tpu_custom_call.1
$region0: #{tpu_custom_call.1}
  #allocation0 [shape = 'u32[]', space=smem, size = 0x4, offset = 0x4, fixed_abs, tag = 'smem constant byte address 0x4 - core index']
  #allocation1 [shape = 'u32[144,128]{1,0:T(1,128)}', space=vmem, size = 0x12000, scoped, tag = 'internal scratch']
  #allocation2 [shape = 'f32[8,512]{1,0:T(8,128)}', space=vmem, size = 0x4000, scoped, tag = 'scratch operand']
  #allocation3 [shape = 'f32[1,512]{1,0:T(1,128)}', space=vmem, size = 0x800, scoped, tag = 'scratch operand']
  #allocation4 [shape = 'f32[17,512]{1,0:T(8,128)}', space=vmem, size = 0xc000, scoped, tag = 'scratch operand']
  #allocation5 [shape = 'f32[1]{0:T(128)S(6)}', space=smem, size = 0x200, scoped, tag = 'scoped memory for tpu_custom_call.1']
  %s0 = inlined_call_operand.vmem [shape: f32[2,16,1024], index: 0, kind: input, shape index: {}]
  %s1 = inlined_call_operand.vmem [shape: f32[2,8,1024], index: 1, kind: input, shape index: {}]
  %s2 = inlined_call_operand.vmem [shape: f32[2,17,1024], index: 2, kind: input, shape index: {}]
  %s3 = inlined_call_operand.vmem [shape: f32[8,16], index: 3, kind: input, shape index: {}]
  %s4 = inlined_call_operand.vmem [shape: f32[8,1], index: 4, kind: input, shape index: {}]
  %s5 = inlined_call_operand.<no memory space> [shape: f32[1], index: 5, kind: input, shape index: {}]
  %s6 = inlined_call_operand.hbm [shape: f32[2,16,1024], index: 6, kind: output, shape index: {}]
  %s7 = sld [smem:[#allocation0]]
  $region111: #{tpu_custom_call.1} parent=0
    _
  %s9 = ssub.s32 1, %s7
  %s10 = scalar_select 0, %s9, %s7
  %11 = sst [smem:[#allocation5]] %s5
  $region1: #{tpu_custom_call.1} parent=0
    #allocation6 [shape = 'u8[65536]{0}', space=vmem, size = 0x10000, scoped, tag = 'input window, operand 0']
    #allocation7 [shape = 'u8[98304]{0}', space=vmem, size = 0x18000, scoped, tag = 'input window, operand 2']
    #allocation8 [shape = 'u8[65536]{0}', space=vmem, size = 0x10000, scoped, tag = 'output window, operand 0']
    #allocation9 [shape = 's32[2]{0}', space=sflag, size = 0x8, scoped, tag = 'scoped memory for tpu_custom_call.1']
    %12 = vsyncpa [#allocation9], 0
    %s13 = scalar_lea.sflag [#allocation9], 1
    %14 = vsyncpa %s13, 0
    loop: start=0, step=1, limit=10
    $region2: #{tpu_custom_call.1} parent=1 // loop_pre_header
      _
    $region3: #{tpu_custom_call.1} parent=1 // loop_header
      %s16 = sphi 0, %s20
      %p17 = scmp.ge.s32.totalorder %s16, 10
      %s23 = sphi 0, %s42
      %s24 = sphi 0, %s38
      %s25 = sphi 0, %s34
      %s26 = sphi 0, %s23
      %s27 = sphi 0, %s24
      %s28 = sphi 0, %s25
      %s29 = sphi 0, %s26
      %s30 = sphi 0, %s27
      %s31 = sphi 0, %s28
      %s47 = sphi 0, %s49
      %s50 = sphi 0, %s47
      %s51 = sphi 0, %s50
      %s67 = sphi 0, %s51
      %s75 = sphi 0, %s77
      %s78 = sphi 0, %s75
      %s79 = sphi 0, %s78
      %s95 = sphi 0, %s79
      %s103 = sphi 0, %s105
      %s106 = sphi 0, %s103
      %s107 = sphi 0, %s106
      %s123 = sphi 0, %s107
      %s127 = sphi 0, %s127
      %s129 = sphi 0, %s127
      %s130 = sphi 0, %s129
      %s144 = sphi 0, %s130
      %s148 = sphi 0, %s148
      %s150 = sphi 0, %s148
      %s151 = sphi 0, %s150
      %s165 = sphi 0, %s151
      %s169 = sphi 0, %s169
      %s171 = sphi 0, %s169
      %s172 = sphi 0, %s171
      %s186 = sphi 0, %s172
      %s194 = sphi 0, %s196
      %s197 = sphi 0, %s194
      %s198 = sphi 0, %s197
      %s214 = sphi 0, %s198
    $region4: #{tpu_custom_call.1} parent=1 // loop_header_branch
      %19 = sbr.rel (%p17) target = $region8
    $region5: #{tpu_custom_call.1} parent=1 // loop_body
      %s21 = ssub.s32 %s16, 1
      %s22 = ssub.s32 %s16, 2
      %s32 = sadd.s32 1, %s25
      %p33 = scmp.ge.s32.totalorder %s32, 2
      %s34 = scalar_select %p33, 0, %s32
      %s35 = sadd.s32 1, %s24
      %s36 = scalar_select %p33, %s35, %s24
      %p37 = scmp.ge.s32.totalorder %s36, 2
      %s38 = scalar_select %p37, 0, %s36
      %s39 = sadd.s32 1, %s23
      %s40 = scalar_select %p37, %s39, %s23
      %p41 = scmp.ge.s32.totalorder %s40, 2
      %s42 = scalar_select %p41, 0, %s40
      %s43 = ssub.s32 %s23, %s42
      %s44 = ssub.s32 %s24, %s38
      %s45 = sor.u32 %s43, %s44
      %p46 = scmp.eq.s32.totalorder %s45, 0
      %s48 = sadd.s32 %s47, 1
      %s49 = scalar_select %p46, %s47, %s48
      %p52 = pneg %p46
      %p53 = scmp.eq.s32.totalorder %s16, 7
      %p54 = por %p52, %p53
      %p55 = scmp.ne.s32.totalorder %s47, %s50
      %p56 = scmp.eq.s32.totalorder %s16, 0
      %p57 = por %p55, %p56
      %p58 = scmp.ne.s32.totalorder %s47, %s50
      %p59 = scmp.eq.s32.totalorder %s21, 7
      %p60 = por %p58, %p59
      %p61 = scmp.ne.s32.totalorder %s50, %s51
      %p62 = scmp.eq.s32.totalorder %s21, 0
      %p63 = por %p61, %p62
      %p64 = scmp.ne.s32.totalorder %s50, %s51
      %p65 = scmp.eq.s32.totalorder %s22, 7
      %p66 = por %p64, %p65
      %p68 = scmp.ne.s32.totalorder %s51, %s67
      %p69 = scmp.eq.s32.totalorder %s22, 0
      %p70 = por %p68, %p69
      %s71 = ssub.s32 %s23, %s42
      %s72 = ssub.s32 %s25, %s34
      %s73 = sor.u32 %s71, %s72
      %p74 = scmp.eq.s32.totalorder %s73, 0
      %s76 = sadd.s32 %s75, 1
      %s77 = scalar_select %p74, %s75, %s76
      %p80 = pneg %p74
      %p81 = scmp.eq.s32.totalorder %s16, 7
      %p82 = por %p80, %p81
      %p83 = scmp.ne.s32.totalorder %s75, %s78
      %p84 = scmp.eq.s32.totalorder %s16, 0
      %p85 = por %p83, %p84
      %p86 = scmp.ne.s32.totalorder %s75, %s78
      %p87 = scmp.eq.s32.totalorder %s21, 7
      %p88 = por %p86, %p87
      %p89 = scmp.ne.s32.totalorder %s78, %s79
      %p90 = scmp.eq.s32.totalorder %s21, 0
      %p91 = por %p89, %p90
      %p92 = scmp.ne.s32.totalorder %s78, %s79
      %p93 = scmp.eq.s32.totalorder %s22, 7
      %p94 = por %p92, %p93
      %p96 = scmp.ne.s32.totalorder %s79, %s95
      %p97 = scmp.eq.s32.totalorder %s22, 0
      %p98 = por %p96, %p97
      %s99 = ssub.s32 %s23, %s42
      %s100 = ssub.s32 %s25, %s34
      %s101 = sor.u32 %s99, %s100
      %p102 = scmp.eq.s32.totalorder %s101, 0
      %s104 = sadd.s32 %s103, 1
      %s105 = scalar_select %p102, %s103, %s104
      %p108 = pneg %p102
      %p109 = scmp.eq.s32.totalorder %s16, 7
      %p110 = por %p108, %p109
      %p111 = scmp.ne.s32.totalorder %s103, %s106
      %p112 = scmp.eq.s32.totalorder %s16, 0
      %p113 = por %p111, %p112
      %p114 = scmp.ne.s32.totalorder %s103, %s106
      %p115 = scmp.eq.s32.totalorder %s21, 7
      %p116 = por %p114, %p115
      %p117 = scmp.ne.s32.totalorder %s106, %s107
      %p118 = scmp.eq.s32.totalorder %s21, 0
      %p119 = por %p117, %p118
      %p120 = scmp.ne.s32.totalorder %s106, %s107
      %p121 = scmp.eq.s32.totalorder %s22, 7
      %p122 = por %p120, %p121
      %p124 = scmp.ne.s32.totalorder %s107, %s123
      %p125 = scmp.eq.s32.totalorder %s22, 0
      %p126 = por %p124, %p125
      %s128 = sadd.s32 %s127, 1
      %p131 = scmp.eq.s32.totalorder %s16, 7
      %p132 = scmp.ne.s32.totalorder %s127, %s129
      %p133 = scmp.eq.s32.totalorder %s16, 0
      %p134 = por %p132, %p133
      %p135 = scmp.ne.s32.totalorder %s127, %s129
      %p136 = scmp.eq.s32.totalorder %s21, 7
      %p137 = por %p135, %p136
      %p138 = scmp.ne.s32.totalorder %s129, %s130
      %p139 = scmp.eq.s32.totalorder %s21, 0
      %p140 = por %p138, %p139
      %p141 = scmp.ne.s32.totalorder %s129, %s130
      %p142 = scmp.eq.s32.totalorder %s22, 7
      %p143 = por %p141, %p142
      %p145 = scmp.ne.s32.totalorder %s130, %s144
      %p146 = scmp.eq.s32.totalorder %s22, 0
      %p147 = por %p145, %p146
      %s149 = sadd.s32 %s148, 1
      %p152 = scmp.eq.s32.totalorder %s16, 7
      %p153 = scmp.ne.s32.totalorder %s148, %s150
      %p154 = scmp.eq.s32.totalorder %s16, 0
      %p155 = por %p153, %p154
      %p156 = scmp.ne.s32.totalorder %s148, %s150
      %p157 = scmp.eq.s32.totalorder %s21, 7
      %p158 = por %p156, %p157
      %p159 = scmp.ne.s32.totalorder %s150, %s151
      %p160 = scmp.eq.s32.totalorder %s21, 0
      %p161 = por %p159, %p160
      %p162 = scmp.ne.s32.totalorder %s150, %s151
      %p163 = scmp.eq.s32.totalorder %s22, 7
      %p164 = por %p162, %p163
      %p166 = scmp.ne.s32.totalorder %s151, %s165
      %p167 = scmp.eq.s32.totalorder %s22, 0
      %p168 = por %p166, %p167
      %s170 = sadd.s32 %s169, 1
      %p173 = scmp.eq.s32.totalorder %s16, 7
      %p174 = scmp.ne.s32.totalorder %s169, %s171
      %p175 = scmp.eq.s32.totalorder %s16, 0
      %p176 = por %p174, %p175
      %p177 = scmp.ne.s32.totalorder %s169, %s171
      %p178 = scmp.eq.s32.totalorder %s21, 7
      %p179 = por %p177, %p178
      %p180 = scmp.ne.s32.totalorder %s171, %s172
      %p181 = scmp.eq.s32.totalorder %s21, 0
      %p182 = por %p180, %p181
      %p183 = scmp.ne.s32.totalorder %s171, %s172
      %p184 = scmp.eq.s32.totalorder %s22, 7
      %p185 = por %p183, %p184
      %p187 = scmp.ne.s32.totalorder %s172, %s186
      %p188 = scmp.eq.s32.totalorder %s22, 0
      %p189 = por %p187, %p188
      %s190 = ssub.s32 %s23, %s42
      %s191 = ssub.s32 %s24, %s38
      %s192 = sor.u32 %s190, %s191
      %p193 = scmp.eq.s32.totalorder %s192, 0
      %s195 = sadd.s32 %s194, 1
      %s196 = scalar_select %p193, %s194, %s195
      %p199 = pneg %p193
      %p200 = scmp.eq.s32.totalorder %s16, 7
      %p201 = por %p199, %p200
      %p202 = scmp.ne.s32.totalorder %s194, %s197
      %p203 = scmp.eq.s32.totalorder %s16, 0
      %p204 = por %p202, %p203
      %p205 = scmp.ne.s32.totalorder %s194, %s197
      %p206 = scmp.eq.s32.totalorder %s21, 7
      %p207 = por %p205, %p206
      %p208 = scmp.ne.s32.totalorder %s197, %s198
      %p209 = scmp.eq.s32.totalorder %s21, 0
      %p210 = por %p208, %p209
      %p211 = scmp.ne.s32.totalorder %s197, %s198
      %p212 = scmp.eq.s32.totalorder %s22, 7
      %p213 = por %p211, %p212
      %p215 = scmp.ne.s32.totalorder %s198, %s214
      %p216 = scmp.eq.s32.totalorder %s22, 0
      %p217 = por %p215, %p216
      %p218 = scmp.le.s32.totalorder 1, %s16
      %p219 = scmp.lt.s32.totalorder %s16, 9
      %p220 = pnand %p218, %p219
      %p221 = pneg %p220
      // Predicated region
      $region9: #{tpu_custom_call.1} parent=5 // pred_check
        _
      $region10: #{tpu_custom_call.1} parent=5 // pred_check_branch
        %223 = sbr.rel (%p220) target = $region12
      $region11: #{tpu_custom_call.1} parent=5 // pred_region
        %s224 = ssub.s32 %s16, 1
        // Predicated region
        $region13: #{tpu_custom_call.1} parent=11 // pred_check
          %p225 = pneg %p140
        $region14: #{tpu_custom_call.1} parent=11 // pred_check_branch
          %227 = sbr.rel (%p225) target = $region16
        $region15: #{tpu_custom_call.1} parent=11 // pred_region
          _
        $region16: #{tpu_custom_call.1} parent=11 // pred_fallthru
          _
        // Predicated region
        $region17: #{tpu_custom_call.1} parent=11 // pred_check
          %p228 = pneg %p161
        $region18: #{tpu_custom_call.1} parent=11 // pred_check_branch
          %230 = sbr.rel (%p228) target = $region20
        $region19: #{tpu_custom_call.1} parent=11 // pred_region
          _
        $region20: #{tpu_custom_call.1} parent=11 // pred_fallthru
          _
        // Predicated region
        $region21: #{tpu_custom_call.1} parent=11 // pred_check
          %p231 = pneg %p182
        $region22: #{tpu_custom_call.1} parent=11 // pred_check_branch
          %233 = sbr.rel (%p231) target = $region24
        $region23: #{tpu_custom_call.1} parent=11 // pred_region
          _
        $region24: #{tpu_custom_call.1} parent=11 // pred_fallthru
          _
      $region12: #{tpu_custom_call.1} parent=5 // pred_fallthru
        _
      %p234 = scmp.lt.s32.totalorder %s16, 8
      // Predicated region
      $region25: #{tpu_custom_call.1} parent=5 // pred_check
        %p235 = pneg %p234
      $region26: #{tpu_custom_call.1} parent=5 // pred_check_branch
        %237 = sbr.rel (%p235) target = $region28
      $region27: #{tpu_custom_call.1} parent=5 // pred_region
        // Predicated region
        $region29: #{tpu_custom_call.1} parent=27 // pred_check
          %p238 = pneg %p57
        $region30: #{tpu_custom_call.1} parent=27 // pred_check_branch
          %240 = sbr.rel (%p238) target = $region32
        $region31: #{tpu_custom_call.1} parent=27 // pred_region
          %s241 = sand.u32 %s47, 1
          %s242 = sand.u32 %s47, 1
          %s243 = smul.addr %s242, 64
          %s244 = scalar_lea.vmem [#allocation6], %s243
          %s245 = smul.u32 4, %s24
          %s246 = smul.addr %s23, 16
          %s247 = sadd.s32 %s245, %s246
          %s248 = smul.addr %s247, 8
          %s249 = scalar_lea.vmem %s0, %s248
          // Predicated region
          $region33: #{tpu_custom_call.1} parent=31 // pred_check
            _
          $region34: #{tpu_custom_call.1} parent=31 // pred_check_branch
            %251 = sbr.rel (0) target = $region36
          $region35: #{tpu_custom_call.1} parent=31 // pred_region
            // Predicated region
            $region37: #{tpu_custom_call.1} parent=35 // pred_check
              _
            $region38: #{tpu_custom_call.1} parent=35 // pred_check_branch
              %253 = sbr.rel (0) target = $region40
            $region39: #{tpu_custom_call.1} parent=35 // pred_region
              loop: start=0, step=1, limit=1
              $region41: #{tpu_custom_call.1} parent=39 // loop_pre_header
                _
              $region42: #{tpu_custom_call.1} parent=39 // loop_header
                %s255 = sphi 0, %s259
                %p256 = scmp.ge.s32.totalorder %s255, 1
                %s260 = sphi %s249, %s249
                %s261 = sphi %s244, %s244
              $region43: #{tpu_custom_call.1} parent=39 // loop_header_branch
                %258 = sbr.rel (%p256) target = $region47
              $region44: #{tpu_custom_call.1} parent=39 // loop_body
                %v262 = vld [vmem:[%s260] sm:$0xff]
                %263 = vst [vmem:[%s261] sm:$0xff] %v262
                %v264 = vld [vmem:[%s260 + $0x8] sm:$0xff]
                %265 = vst [vmem:[%s261 + $0x8] sm:$0xff] %v264
                %v266 = vld [vmem:[%s260 + $0x10] sm:$0xff]
                %267 = vst [vmem:[%s261 + $0x10] sm:$0xff] %v266
                %v268 = vld [vmem:[%s260 + $0x18] sm:$0xff]
                %269 = vst [vmem:[%s261 + $0x18] sm:$0xff] %v268
                %v270 = vld [vmem:[%s260 + $0x40] sm:$0xff]
                %271 = vst [vmem:[%s261 + $0x20] sm:$0xff] %v270
                %v272 = vld [vmem:[%s260 + $0x48] sm:$0xff]
                %273 = vst [vmem:[%s261 + $0x28] sm:$0xff] %v272
                %v274 = vld [vmem:[%s260 + $0x50] sm:$0xff]
                %275 = vst [vmem:[%s261 + $0x30] sm:$0xff] %v274
                %v276 = vld [vmem:[%s260 + $0x58] sm:$0xff]
                %277 = vst [vmem:[%s261 + $0x38] sm:$0xff] %v276
              $region45: #{tpu_custom_call.1} parent=39 // loop_footer
                %s259 = sadd.s32 1, %s255
              $region46: #{tpu_custom_call.1} parent=39 // loop_footer_branch
                %254 = sbr.rel target = $region42
              $region47: #{tpu_custom_call.1} parent=39 // loop_exit
                _
            $region40: #{tpu_custom_call.1} parent=35 // pred_fallthru
              _
            // Predicated region
            $region48: #{tpu_custom_call.1} parent=35 // pred_check
              _
            $region49: #{tpu_custom_call.1} parent=35 // pred_check_branch
              %279 = sbr.rel target = $region51
            $region50: #{tpu_custom_call.1} parent=35 // pred_region
              _
            $region51: #{tpu_custom_call.1} parent=35 // pred_fallthru
              _
          $region36: #{tpu_custom_call.1} parent=31 // pred_fallthru
            _
          %280 = vnop
        $region32: #{tpu_custom_call.1} parent=27 // pred_fallthru
          _
        // Predicated region
        $region52: #{tpu_custom_call.1} parent=27 // pred_check
          %p281 = pneg %p85
        $region53: #{tpu_custom_call.1} parent=27 // pred_check_branch
          %283 = sbr.rel (%p281) target = $region55
        $region54: #{tpu_custom_call.1} parent=27 // pred_region
          %s284 = smul.u32 4, %s25
          %p285 = scmp.lt.s32.totalorder %s23, 1
          %s286 = scalar_select %p285, %s23, 1
          %p287 = scmp.lt.s32.totalorder %s284, 7
          %s288 = scalar_select %p287, %s284, 7
          %s289 = smul.addr %s286, 8
          %s290 = sadd.s32 %s288, %s289
          %s291 = smul.addr %s290, 8
          %s292 = scalar_lea.vmem %s1, %s291
          %s293 = smul.u32 4, %s25
        $region55: #{tpu_custom_call.1} parent=27 // pred_fallthru
          _
        // Predicated region
        $region56: #{tpu_custom_call.1} parent=27 // pred_check
          %p294 = pneg %p113
        $region57: #{tpu_custom_call.1} parent=27 // pred_check_branch
          %296 = sbr.rel (%p294) target = $region59
        $region58: #{tpu_custom_call.1} parent=27 // pred_region
          %s297 = sand.u32 %s103, 1
          %s298 = sand.u32 %s103, 1
          %s299 = smul.addr %s298, 96
          %s300 = scalar_lea.vmem [#allocation7], %s299
          %s301 = smul.u32 4, %s25
          %s302 = smul.addr %s23, 24
          %s303 = sadd.s32 %s301, %s302
          %s304 = smul.addr %s303, 8
          %s305 = scalar_lea.vmem %s2, %s304
          // Predicated region
          $region60: #{tpu_custom_call.1} parent=58 // pred_check
            _
          $region61: #{tpu_custom_call.1} parent=58 // pred_check_branch
            %307 = sbr.rel (0) target = $region63
          $region62: #{tpu_custom_call.1} parent=58 // pred_region
            // Predicated region
            $region64: #{tpu_custom_call.1} parent=62 // pred_check
              _
            $region65: #{tpu_custom_call.1} parent=62 // pred_check_branch
              %309 = sbr.rel (0) target = $region67
            $region66: #{tpu_custom_call.1} parent=62 // pred_region
              loop: start=0, step=1, limit=1
              $region68: #{tpu_custom_call.1} parent=66 // loop_pre_header
                _
              $region69: #{tpu_custom_call.1} parent=66 // loop_header
                %s311 = sphi 0, %s315
                %p312 = scmp.ge.s32.totalorder %s311, 1
                %s316 = sphi %s305, %s305
                %s317 = sphi %s300, %s300
              $region70: #{tpu_custom_call.1} parent=66 // loop_header_branch
                %314 = sbr.rel (%p312) target = $region74
              $region71: #{tpu_custom_call.1} parent=66 // loop_body
                %v318 = vld [vmem:[%s316] sm:$0xff]
                %319 = vst [vmem:[%s317] sm:$0xff] %v318
                %v320 = vld [vmem:[%s316 + $0x8] sm:$0xff]
                %321 = vst [vmem:[%s317 + $0x8] sm:$0xff] %v320
                %v322 = vld [vmem:[%s316 + $0x10] sm:$0xff]
                %323 = vst [vmem:[%s317 + $0x10] sm:$0xff] %v322
                %v324 = vld [vmem:[%s316 + $0x18] sm:$0xff]
                %325 = vst [vmem:[%s317 + $0x18] sm:$0xff] %v324
                %v326 = vld [vmem:[%s316 + $0x40] sm:$0xff]
                %327 = vst [vmem:[%s317 + $0x20] sm:$0xff] %v326
                %v328 = vld [vmem:[%s316 + $0x48] sm:$0xff]
                %329 = vst [vmem:[%s317 + $0x28] sm:$0xff] %v328
                %v330 = vld [vmem:[%s316 + $0x50] sm:$0xff]
                %331 = vst [vmem:[%s317 + $0x30] sm:$0xff] %v330
                %v332 = vld [vmem:[%s316 + $0x58] sm:$0xff]
                %333 = vst [vmem:[%s317 + $0x38] sm:$0xff] %v332
                %v334 = vld [vmem:[%s316 + $0x80] sm:$0xff]
                %335 = vst [vmem:[%s317 + $0x40] sm:$0xff] %v334
                %v336 = vld [vmem:[%s316 + $0x88] sm:$0xff]
                %337 = vst [vmem:[%s317 + $0x48] sm:$0xff] %v336
                %v338 = vld [vmem:[%s316 + $0x90] sm:$0xff]
                %339 = vst [vmem:[%s317 + $0x50] sm:$0xff] %v338
                %v340 = vld [vmem:[%s316 + $0x98] sm:$0xff]
                %341 = vst [vmem:[%s317 + $0x58] sm:$0xff] %v340
              $region72: #{tpu_custom_call.1} parent=66 // loop_footer
                %s315 = sadd.s32 1, %s311
              $region73: #{tpu_custom_call.1} parent=66 // loop_footer_branch
                %310 = sbr.rel target = $region69
              $region74: #{tpu_custom_call.1} parent=66 // loop_exit
                _
            $region67: #{tpu_custom_call.1} parent=62 // pred_fallthru
              _
            // Predicated region
            $region75: #{tpu_custom_call.1} parent=62 // pred_check
              _
            $region76: #{tpu_custom_call.1} parent=62 // pred_check_branch
              %343 = sbr.rel target = $region78
            $region77: #{tpu_custom_call.1} parent=62 // pred_region
              _
            $region78: #{tpu_custom_call.1} parent=62 // pred_fallthru
              _
          $region63: #{tpu_custom_call.1} parent=58 // pred_fallthru
            _
          %344 = vnop
        $region59: #{tpu_custom_call.1} parent=27 // pred_fallthru
          _
      $region28: #{tpu_custom_call.1} parent=5 // pred_fallthru
        _
      %p345 = scmp.le.s32.totalorder 1, %s16
      %p346 = scmp.lt.s32.totalorder %s16, 9
      %p347 = pnand %p345, %p346
      %p348 = pneg %p347
      // Predicated region
      $region79: #{tpu_custom_call.1} parent=5 // pred_check
        _
      $region80: #{tpu_custom_call.1} parent=5 // pred_check_branch
        %350 = sbr.rel (%p347) target = $region82
      $region81: #{tpu_custom_call.1} parent=5 // pred_region
        %s351 = ssub.s32 %s16, 1
        %s352 = sand.u32 %s50, 1
        %s353 = sand.u32 %s50, 1
        %s354 = smul.addr %s353, 64
        %s355 = scalar_lea.vmem [#allocation6], %s354
        // Predicated region
        $region83: #{tpu_custom_call.1} parent=81 // pred_check
          %p356 = pneg %p63
        $region84: #{tpu_custom_call.1} parent=81 // pred_check_branch
          %358 = sbr.rel (%p356) target = $region86
        $region85: #{tpu_custom_call.1} parent=81 // pred_region
          _
        $region86: #{tpu_custom_call.1} parent=81 // pred_fallthru
          _
        %s359 = sand.u32 %s106, 1
        %s360 = sand.u32 %s106, 1
        %s361 = smul.addr %s360, 96
        %s362 = scalar_lea.vmem [#allocation7], %s361
        // Predicated region
        $region87: #{tpu_custom_call.1} parent=81 // pred_check
          %p363 = pneg %p119
        $region88: #{tpu_custom_call.1} parent=81 // pred_check_branch
          %365 = sbr.rel (%p363) target = $region90
        $region89: #{tpu_custom_call.1} parent=81 // pred_region
          _
        $region90: #{tpu_custom_call.1} parent=81 // pred_fallthru
          _
        %s366 = sand.u32 %s50, 1
        %s367 = sand.u32 %s50, 1
        %s368 = smul.addr %s367, 64
        %s369 = scalar_lea.vmem [#allocation6], %s368
        %p370 = pneg %p63
        %p371 = pneg %p60
        %s372 = smul.u32 4, %s28
        %p373 = scmp.lt.s32.totalorder %s26, 1
        %s374 = scalar_select %p373, %s26, 1
        %p375 = scmp.lt.s32.totalorder %s372, 7
        %s376 = scalar_select %p375, %s372, 7
        %s377 = smul.addr %s374, 8
        %s378 = sadd.s32 %s376, %s377
        %s379 = smul.addr %s378, 8
        %s380 = scalar_lea.vmem %s1, %s379
        %p381 = pneg %p91
        %p382 = pneg %p88
        %s383 = sand.u32 %s106, 1
        %s384 = sand.u32 %s106, 1
        %s385 = smul.addr %s384, 96
        %s386 = scalar_lea.vmem [#allocation7], %s385
        %p387 = pneg %p119
        %p388 = pneg %p116
        %p389 = pneg %p140
        %p390 = pneg %p137
        %p391 = pneg %p161
        %p392 = pneg %p158
        %p393 = pneg %p182
        %p394 = pneg %p179
        %p395 = pneg %p210
        %p396 = pneg %p207
        %s397 = sand.u32 %s197, 1
        %s398 = scalar_lea.sflag [#allocation9], %s397
        %s399 = sand.u32 %s197, 1
        %s400 = smul.addr %s399, 64
        %s401 = scalar_lea.vmem [#allocation8], %s400
        %s402 = smul.u32 4, %s27
        %s403 = smul.u32 4, %s28
        %p404 = scmp.lt.s32.totalorder %s26, 1
        %s405 = scalar_select %p404, %s26, 1
        %p406 = scmp.lt.s32.totalorder %s403, 7
        %s407 = scalar_select %p406, %s403, 7
        %s408 = smul.addr %s405, 8
        %s409 = sadd.s32 %s407, %s408
        %s410 = smul.addr %s409, 8
        %s411 = scalar_lea.vmem %s1, %s410
        %s412 = smul.u32 4, %s28
        %s413 = smul.u32 4, %s28
        %s414 = smul.u32 4, %s27
        %p415 = scmp.eq.s32.totalorder %s28, 0
        // Predicated region
        $region91: #{tpu_custom_call.1} parent=81 // pred_check
          %p416 = pneg %p415
        $region92: #{tpu_custom_call.1} parent=81 // pred_check_branch
          %418 = sbr.rel (%p416) target = $region94
        $region93: #{tpu_custom_call.1} parent=81 // pred_region
          %v419 = vld [vmem:[%s355] sm:$0xff]
          %v420 = vld [vmem:[%s355 + $0x8] sm:$0xff]
          %v421 = vld [vmem:[%s355 + $0x10] sm:$0xff]
          %v422 = vld [vmem:[%s355 + $0x18] sm:$0xff]
          %v423 = vld [vmem:[%s355 + $0x20] sm:$0xff]
          %v424 = vld [vmem:[%s355 + $0x28] sm:$0xff]
          %v425 = vld [vmem:[%s355 + $0x30] sm:$0xff]
          %v426 = vld [vmem:[%s355 + $0x38] sm:$0xff]
          %v427 = vld [vmem:[%s3] sm:$0xff]
          %v428 = vld [vmem:[%s4] sm:$0xff]
          %430 = vset.pattern.permute.xlu0 0
          %431 = vperm.xlu0 %430, %v428
          %v432 = vpop.permute.xlu0 %431
          %vm434 = vcmask 130048
          %v436 = vsel %vm434, %v427, 0
          %438 = vmatprep.subr.mxu0 0.0
          %439 = vmatpush1.msra.mxu0 0.0
          %440 = vmatprep.subr.mxu0 0.0
          %441 = vmatpush1.msra.mxu0 0.0
          %442 = vmatprep.subr.mxu0 0.0
          %443 = vmatpush1.msra.mxu0 0.0
          %444 = vmatprep.subr.mxu0 0.0
          %445 = vmatpush1.msra.mxu0 0.0
          %446 = vmatprep.subr.mxu0 0.0
          %447 = vmatpush1.msra.mxu0 0.0
          %448 = vmatprep.subr.mxu0 0.0
          %449 = vmatpush1.msra.mxu0 0.0
          %450 = vmatprep.subr.mxu0 0.0
          %451 = vmatpush1.msra.mxu0 0.0
          %452 = vmatprep.subr.mxu0 0.0
          %453 = vmatpush1.msra.mxu0 0.0
          %454 = vmatprep.subr.mxu0 0.0
          %455 = vmatpush1.msra.mxu0 0.0
          %456 = vmatprep.subr.mxu0 0.0
          %457 = vmatpush1.msra.mxu0 0.0
          %458 = vmatprep.subr.mxu0 0.0
          %459 = vmatpush1.msra.mxu0 0.0
          %460 = vmatprep.subr.mxu0 0.0
          %461 = vmatpush1.msra.mxu0 0.0
          %462 = vmatprep.subr.mxu0 0.0
          %463 = vmatpush1.msra.mxu0 0.0
          %464 = vmatprep.subr.mxu0 0.0
          %465 = vmatpush1.msra.mxu0 0.0
          %466 = vmatprep.subr.mxu0 %v424
          %467 = vmatpush1.msra.mxu0 %v423
          %468 = vmatprep.subr.mxu0 %v420
          %469 = vmatpush1.msra.mxu0 %v419
          %470 = vmatprep.subr.mxu0 0.0
          %471 = vmatpush2.msra.mxu0 0.0
          %472 = vmatprep.subr.mxu0 0.0
          %473 = vmatpush2.msra.mxu0 0.0
          %474 = vmatprep.subr.mxu0 0.0
          %475 = vmatpush2.msra.mxu0 0.0
          %476 = vmatprep.subr.mxu0 0.0
          %477 = vmatpush2.msra.mxu0 0.0
          %478 = vmatprep.subr.mxu0 0.0
          %479 = vmatpush2.msra.mxu0 0.0
          %480 = vmatprep.subr.mxu0 0.0
          %481 = vmatpush2.msra.mxu0 0.0
          %482 = vmatprep.subr.mxu0 0.0
          %483 = vmatpush2.msra.mxu0 0.0
          %484 = vmatprep.subr.mxu0 0.0
          %485 = vmatpush2.msra.mxu0 0.0
          %486 = vmatprep.subr.mxu0 0.0
          %487 = vmatpush2.msra.mxu0 0.0
          %488 = vmatprep.subr.mxu0 0.0
          %489 = vmatpush2.msra.mxu0 0.0
          %490 = vmatprep.subr.mxu0 0.0
          %491 = vmatpush2.msra.mxu0 0.0
          %492 = vmatprep.subr.mxu0 0.0
          %493 = vmatpush2.msra.mxu0 0.0
          %494 = vmatprep.subr.mxu0 0.0
          %495 = vmatpush2.msra.mxu0 0.0
          %496 = vmatprep.subr.mxu0 0.0
          %497 = vmatpush2.msra.mxu0 0.0
          %498 = vmatprep.subr.mxu0 0.0
          %499 = vmatpush2.msra.mxu0 0.0
          %500 = vmatprep.subr.mxu0 0.0
          %501 = vmatpush2.msra.mxu0 0.0
          %502 = vmatprep.mubr.f32.mxu0 0.0
          %503 = vmatmul.mubr.f32.gmra.mxu0 %v436
          %v504 = vpop.f32.mrf.mxu0
          %v505 = vadd.f32 %v432, %v504
          %v506 = vpop.f32.mrf.mxu0
          %v507 = vadd.f32 %v432, %v506
          %508 = vdwg.mxu0
          %509 = vmatprep.subr.mxu0 0.0
          %510 = vmatpush1.msra.mxu0 0.0
          %511 = vmatprep.subr.mxu0 0.0
          %512 = vmatpush1.msra.mxu0 0.0
          %513 = vmatprep.subr.mxu0 0.0
          %514 = vmatpush1.msra.mxu0 0.0
          %515 = vmatprep.subr.mxu0 0.0
          %516 = vmatpush1.msra.mxu0 0.0
          %517 = vmatprep.subr.mxu0 0.0
          %518 = vmatpush1.msra.mxu0 0.0
          %519 = vmatprep.subr.mxu0 0.0
          %520 = vmatpush1.msra.mxu0 0.0
          %521 = vmatprep.subr.mxu0 0.0
          %522 = vmatpush1.msra.mxu0 0.0
          %523 = vmatprep.subr.mxu0 0.0
          %524 = vmatpush1.msra.mxu0 0.0
          %525 = vmatprep.subr.mxu0 0.0
          %526 = vmatpush1.msra.mxu0 0.0
          %527 = vmatprep.subr.mxu0 0.0
          %528 = vmatpush1.msra.mxu0 0.0
          %529 = vmatprep.subr.mxu0 0.0
          %530 = vmatpush1.msra.mxu0 0.0
          %531 = vmatprep.subr.mxu0 0.0
          %532 = vmatpush1.msra.mxu0 0.0
          %533 = vmatprep.subr.mxu0 0.0
          %534 = vmatpush1.msra.mxu0 0.0
          %535 = vmatprep.subr.mxu0 0.0
          %536 = vmatpush1.msra.mxu0 0.0
          %537 = vmatprep.subr.mxu0 %v426
          %538 = vmatpush1.msra.mxu0 %v425
          %539 = vmatprep.subr.mxu0 %v422
          %540 = vmatpush1.msra.mxu0 %v421
          %541 = vmatprep.subr.mxu0 0.0
          %542 = vmatpush2.msra.mxu0 0.0
          %543 = vmatprep.subr.mxu0 0.0
          %544 = vmatpush2.msra.mxu0 0.0
          %545 = vmatprep.subr.mxu0 0.0
          %546 = vmatpush2.msra.mxu0 0.0
          %547 = vmatprep.subr.mxu0 0.0
          %548 = vmatpush2.msra.mxu0 0.0
          %549 = vmatprep.subr.mxu0 0.0
          %550 = vmatpush2.msra.mxu0 0.0
          %551 = vmatprep.subr.mxu0 0.0
          %552 = vmatpush2.msra.mxu0 0.0
          %553 = vmatprep.subr.mxu0 0.0
          %554 = vmatpush2.msra.mxu0 0.0
          %555 = vmatprep.subr.mxu0 0.0
          %556 = vmatpush2.msra.mxu0 0.0
          %557 = vmatprep.subr.mxu0 0.0
          %558 = vmatpush2.msra.mxu0 0.0
          %559 = vmatprep.subr.mxu0 0.0
          %560 = vmatpush2.msra.mxu0 0.0
          %561 = vmatprep.subr.mxu0 0.0
          %562 = vmatpush2.msra.mxu0 0.0
          %563 = vmatprep.subr.mxu0 0.0
          %564 = vmatpush2.msra.mxu0 0.0
          %565 = vmatprep.subr.mxu0 0.0
          %566 = vmatpush2.msra.mxu0 0.0
          %567 = vmatprep.subr.mxu0 0.0
          %568 = vmatpush2.msra.mxu0 0.0
          %569 = vmatprep.subr.mxu0 0.0
          %570 = vmatpush2.msra.mxu0 0.0
          %571 = vmatprep.subr.mxu0 0.0
          %572 = vmatpush2.msra.mxu0 0.0
          %573 = vmatprep.mubr.f32.mxu0 0.0
          %574 = vmatmul.mubr.f32.gmra.mxu0 %v436
          %v575 = vpop.f32.mrf.mxu0
          %v576 = vadd.f32 %v432, %v575
          %v577 = vpop.f32.mrf.mxu0
          %v578 = vadd.f32 %v432, %v577
          %579 = vdwg.mxu0
          %580 = vst [vmem:[#allocation2] sm:$0xff] %v505
          %581 = vst [vmem:[#allocation2 + $0x8] sm:$0xff] %v507
          %582 = vst [vmem:[#allocation2 + $0x10] sm:$0xff] %v576
          %583 = vst [vmem:[#allocation2 + $0x18] sm:$0xff] %v578
          %v584 = vlaneseq
          %vm585 = vcmp.ge.s32.totalorder %v584, 0
          %vm586 = vcmp.lt.s32.totalorder %v584, 512
          %vm587 = vmand %vm585, %vm586
          %588 = vst.msk [vmem:[#allocation3] sm:$0xf] %vm587, -inf
          %589 = vst [vmem:[#allocation4] sm:$0xff] 0.0
          %590 = vst [vmem:[#allocation4 + $0x8] sm:$0xff] 0.0
          %591 = vst [vmem:[#allocation4 + $0x10] sm:$0xff] 0.0
          %592 = vst [vmem:[#allocation4 + $0x18] sm:$0xff] 0.0
          %593 = vst [vmem:[#allocation4 + $0x20] sm:$0xff] 0.0
          %594 = vst [vmem:[#allocation4 + $0x28] sm:$0xff] 0.0
          %595 = vst [vmem:[#allocation4 + $0x30] sm:$0xff] 0.0
          %596 = vst [vmem:[#allocation4 + $0x38] sm:$0xff] 0.0
          %597 = vst [vmem:[#allocation4 + $0x40] sm:$0x1] 0.0
          %598 = vst [vmem:[#allocation4 + $0x48] sm:$0x1] 0.0
          %599 = vst [vmem:[#allocation4 + $0x50] sm:$0x1] 0.0
          %600 = vst [vmem:[#allocation4 + $0x58] sm:$0x1] 0.0
        $region94: #{tpu_custom_call.1} parent=81 // pred_fallthru
          _
        %v601 = vld [vmem:[%s411] sm:$0xff]
        %v602 = vld [vmem:[%s411 + $0x8] sm:$0xff]
        %v603 = vld [vmem:[%s411 + $0x10] sm:$0xff]
        %v604 = vld [vmem:[%s411 + $0x18] sm:$0xff]
        %v605 = vld [vmem:[%s362] sm:$0xff]
        %v606 = vld [vmem:[%s362 + $0x8] sm:$0xff]
        %v607 = vld [vmem:[%s362 + $0x10] sm:$0xff]
        %v608 = vld [vmem:[%s362 + $0x18] sm:$0xff]
        %v609 = vld [vmem:[%s362 + $0x20] sm:$0xff]
        %v610 = vld [vmem:[%s362 + $0x28] sm:$0xff]
        %v611 = vld [vmem:[%s362 + $0x30] sm:$0xff]
        %v612 = vld [vmem:[%s362 + $0x38] sm:$0xff]
        %v613 = vld [vmem:[%s362 + $0x40] sm:$0x1]
        %v614 = vld [vmem:[%s362 + $0x48] sm:$0x1]
        %v615 = vld [vmem:[%s362 + $0x50] sm:$0x1]
        %v616 = vld [vmem:[%s362 + $0x58] sm:$0x1]
        %v617 = vld [vmem:[#allocation2] sm:$0xff]
        %v618 = vld [vmem:[#allocation2 + $0x8] sm:$0xff]
        %v619 = vld [vmem:[#allocation2 + $0x10] sm:$0xff]
        %v620 = vld [vmem:[#allocation2 + $0x18] sm:$0xff]
        %621 = vxpose.xlu0.b32.start [1/16] %v601, 128
        %622 = vxpose.xlu0.b32.cont [2/16] 0.0, 128
        %623 = vxpose.xlu0.b32.cont [3/16] 0.0, 128
        %624 = vxpose.xlu0.b32.cont [4/16] 0.0, 128
        %625 = vxpose.xlu0.b32.cont [5/16] 0.0, 128
        %626 = vxpose.xlu0.b32.cont [6/16] 0.0, 128
        %627 = vxpose.xlu0.b32.cont [7/16] 0.0, 128
        %628 = vxpose.xlu0.b32.cont [8/16] 0.0, 128
        %629 = vxpose.xlu0.b32.cont [9/16] 0.0, 128
        %630 = vxpose.xlu0.b32.cont [10/16] 0.0, 128
        %631 = vxpose.xlu0.b32.cont [11/16] 0.0, 128
        %632 = vxpose.xlu0.b32.cont [12/16] 0.0, 128
        %633 = vxpose.xlu0.b32.cont [13/16] 0.0, 128
        %634 = vxpose.xlu0.b32.cont [14/16] 0.0, 128
        %635 = vxpose.xlu0.b32.cont [15/16] 0.0, 128
        %636 = vxpose.xlu0.b32.end [16/16] 0.0, 128
        %v637 = vpop.trf.xlu0
        %v638 = vpop.trf.xlu0
        %v639 = vpop.trf.xlu0
        %v640 = vpop.trf.xlu0
        %v641 = vpop.trf.xlu0
        %v642 = vpop.trf.xlu0
        %v643 = vpop.trf.xlu0
        %v644 = vpop.trf.xlu0
        %v645 = vpop.trf.xlu0
        %v646 = vpop.trf.xlu0
        %v647 = vpop.trf.xlu0
        %v648 = vpop.trf.xlu0
        %v649 = vpop.trf.xlu0
        %v650 = vpop.trf.xlu0
        %v651 = vpop.trf.xlu0
        %v652 = vpop.trf.xlu0
        %653 = vxpose.xlu0.b32.start [1/16] %v602, 128
        %654 = vxpose.xlu0.b32.cont [2/16] 0.0, 128
        %655 = vxpose.xlu0.b32.cont [3/16] 0.0, 128
        %656 = vxpose.xlu0.b32.cont [4/16] 0.0, 128
        %657 = vxpose.xlu0.b32.cont [5/16] 0.0, 128
        %658 = vxpose.xlu0.b32.cont [6/16] 0.0, 128
        %659 = vxpose.xlu0.b32.cont [7/16] 0.0, 128
        %660 = vxpose.xlu0.b32.cont [8/16] 0.0, 128
        %661 = vxpose.xlu0.b32.cont [9/16] 0.0, 128
        %662 = vxpose.xlu0.b32.cont [10/16] 0.0, 128
        %663 = vxpose.xlu0.b32.cont [11/16] 0.0, 128
        %664 = vxpose.xlu0.b32.cont [12/16] 0.0, 128
        %665 = vxpose.xlu0.b32.cont [13/16] 0.0, 128
        %666 = vxpose.xlu0.b32.cont [14/16] 0.0, 128
        %667 = vxpose.xlu0.b32.cont [15/16] 0.0, 128
        %668 = vxpose.xlu0.b32.end [16/16] 0.0, 128
        %v669 = vpop.trf.xlu0
        %v670 = vpop.trf.xlu0
        %v671 = vpop.trf.xlu0
        %v672 = vpop.trf.xlu0
        %v673 = vpop.trf.xlu0
        %v674 = vpop.trf.xlu0
        %v675 = vpop.trf.xlu0
        %v676 = vpop.trf.xlu0
        %v677 = vpop.trf.xlu0
        %v678 = vpop.trf.xlu0
        %v679 = vpop.trf.xlu0
        %v680 = vpop.trf.xlu0
        %v681 = vpop.trf.xlu0
        %v682 = vpop.trf.xlu0
        %v683 = vpop.trf.xlu0
        %v684 = vpop.trf.xlu0
        %685 = vxpose.xlu0.b32.start [1/16] %v603, 128
        %686 = vxpose.xlu0.b32.cont [2/16] 0.0, 128
        %687 = vxpose.xlu0.b32.cont [3/16] 0.0, 128
        %688 = vxpose.xlu0.b32.cont [4/16] 0.0, 128
        %689 = vxpose.xlu0.b32.cont [5/16] 0.0, 128
        %690 = vxpose.xlu0.b32.cont [6/16] 0.0, 128
        %691 = vxpose.xlu0.b32.cont [7/16] 0.0, 128
        %692 = vxpose.xlu0.b32.cont [8/16] 0.0, 128
        %693 = vxpose.xlu0.b32.cont [9/16] 0.0, 128
        %694 = vxpose.xlu0.b32.cont [10/16] 0.0, 128
        %695 = vxpose.xlu0.b32.cont [11/16] 0.0, 128
        %696 = vxpose.xlu0.b32.cont [12/16] 0.0, 128
        %697 = vxpose.xlu0.b32.cont [13/16] 0.0, 128
        %698 = vxpose.xlu0.b32.cont [14/16] 0.0, 128
        %699 = vxpose.xlu0.b32.cont [15/16] 0.0, 128
        %700 = vxpose.xlu0.b32.end [16/16] 0.0, 128
        %v701 = vpop.trf.xlu0
        %v702 = vpop.trf.xlu0
        %v703 = vpop.trf.xlu0
        %v704 = vpop.trf.xlu0
        %v705 = vpop.trf.xlu0
        %v706 = vpop.trf.xlu0
        %v707 = vpop.trf.xlu0
        %v708 = vpop.trf.xlu0
        %v709 = vpop.trf.xlu0
        %v710 = vpop.trf.xlu0
        %v711 = vpop.trf.xlu0
        %v712 = vpop.trf.xlu0
        %v713 = vpop.trf.xlu0
        %v714 = vpop.trf.xlu0
        %v715 = vpop.trf.xlu0
        %v716 = vpop.trf.xlu0
        %717 = vxpose.xlu0.b32.start [1/16] %v604, 128
        %718 = vxpose.xlu0.b32.cont [2/16] 0.0, 128
        %719 = vxpose.xlu0.b32.cont [3/16] 0.0, 128
        %720 = vxpose.xlu0.b32.cont [4/16] 0.0, 128
        %721 = vxpose.xlu0.b32.cont [5/16] 0.0, 128
        %722 = vxpose.xlu0.b32.cont [6/16] 0.0, 128
        %723 = vxpose.xlu0.b32.cont [7/16] 0.0, 128
        %724 = vxpose.xlu0.b32.cont [8/16] 0.0, 128
        %725 = vxpose.xlu0.b32.cont [9/16] 0.0, 128
        %726 = vxpose.xlu0.b32.cont [10/16] 0.0, 128
        %727 = vxpose.xlu0.b32.cont [11/16] 0.0, 128
        %728 = vxpose.xlu0.b32.cont [12/16] 0.0, 128
        %729 = vxpose.xlu0.b32.cont [13/16] 0.0, 128
        %730 = vxpose.xlu0.b32.cont [14/16] 0.0, 128
        %731 = vxpose.xlu0.b32.cont [15/16] 0.0, 128
        %732 = vxpose.xlu0.b32.end [16/16] 0.0, 128
        %v733 = vpop.trf.xlu0
        %v734 = vpop.trf.xlu0
        %v735 = vpop.trf.xlu0
        %v736 = vpop.trf.xlu0
        %v737 = vpop.trf.xlu0
        %v738 = vpop.trf.xlu0
        %v739 = vpop.trf.xlu0
        %v740 = vpop.trf.xlu0
        %v741 = vpop.trf.xlu0
        %v742 = vpop.trf.xlu0
        %v743 = vpop.trf.xlu0
        %v744 = vpop.trf.xlu0
        %v745 = vpop.trf.xlu0
        %v746 = vpop.trf.xlu0
        %v747 = vpop.trf.xlu0
        %v748 = vpop.trf.xlu0
        %vm749 = vcmask 64512
        %v751 = vsel %vm749, %v637, 0
        %v754 = vsel %vm749, %v638, 0
        %v757 = vsel %vm749, %v639, 0
        %v760 = vsel %vm749, %v640, 0
        %v763 = vsel %vm749, %v641, 0
        %v766 = vsel %vm749, %v642, 0
        %v769 = vsel %vm749, %v643, 0
        %v772 = vsel %vm749, %v644, 0
        %v775 = vsel %vm749, %v645, 0
        %v778 = vsel %vm749, %v646, 0
        %v781 = vsel %vm749, %v647, 0
        %v784 = vsel %vm749, %v648, 0
        %v787 = vsel %vm749, %v649, 0
        %v790 = vsel %vm749, %v650, 0
        %v793 = vsel %vm749, %v651, 0
        %v796 = vsel %vm749, %v652, 0
        %v799 = vsel %vm749, %v669, 0
        %v802 = vsel %vm749, %v670, 0
        %v805 = vsel %vm749, %v671, 0
        %v808 = vsel %vm749, %v672, 0
        %v811 = vsel %vm749, %v673, 0
        %v814 = vsel %vm749, %v674, 0
        %v817 = vsel %vm749, %v675, 0
        %v820 = vsel %vm749, %v676, 0
        %v823 = vsel %vm749, %v677, 0
        %v826 = vsel %vm749, %v678, 0
        %v829 = vsel %vm749, %v679, 0
        %v832 = vsel %vm749, %v680, 0
        %v835 = vsel %vm749, %v681, 0
        %v838 = vsel %vm749, %v682, 0
        %v841 = vsel %vm749, %v683, 0
        %v844 = vsel %vm749, %v684, 0
        %v847 = vsel %vm749, %v701, 0
        %v850 = vsel %vm749, %v702, 0
        %v853 = vsel %vm749, %v703, 0
        %v856 = vsel %vm749, %v704, 0
        %v859 = vsel %vm749, %v705, 0
        %v862 = vsel %vm749, %v706, 0
        %v865 = vsel %vm749, %v707, 0
        %v868 = vsel %vm749, %v708, 0
        %v871 = vsel %vm749, %v709, 0
        %v874 = vsel %vm749, %v710, 0
        %v877 = vsel %vm749, %v711, 0
        %v880 = vsel %vm749, %v712, 0
        %v883 = vsel %vm749, %v713, 0
        %v886 = vsel %vm749, %v714, 0
        %v889 = vsel %vm749, %v715, 0
        %v892 = vsel %vm749, %v716, 0
        %v895 = vsel %vm749, %v733, 0
        %v898 = vsel %vm749, %v734, 0
        %v901 = vsel %vm749, %v735, 0
        %v904 = vsel %vm749, %v736, 0
        %v907 = vsel %vm749, %v737, 0
        %v910 = vsel %vm749, %v738, 0
        %v913 = vsel %vm749, %v739, 0
        %v916 = vsel %vm749, %v740, 0
        %v919 = vsel %vm749, %v741, 0
        %v922 = vsel %vm749, %v742, 0
        %v925 = vsel %vm749, %v743, 0
        %v928 = vsel %vm749, %v744, 0
        %v931 = vsel %vm749, %v745, 0
        %v934 = vsel %vm749, %v746, 0
        %v937 = vsel %vm749, %v747, 0
        %v940 = vsel %vm749, %v748, 0
        %942 = vmatprep.subr.mxu0 0.0
        %943 = vmatpush1.msra.mxu0 0.0
        %944 = vmatprep.subr.mxu0 0.0
        %945 = vmatpush1.msra.mxu0 0.0
        %946 = vmatprep.subr.mxu0 0.0
        %947 = vmatpush1.msra.mxu0 0.0
        %948 = vmatprep.subr.mxu0 0.0
        %949 = vmatpush1.msra.mxu0 0.0
        %950 = vmatprep.subr.mxu0 0.0
        %951 = vmatpush1.msra.mxu0 0.0
        %952 = vmatprep.subr.mxu0 0.0
        %953 = vmatpush1.msra.mxu0 0.0
        %954 = vmatprep.subr.mxu0 0.0
        %955 = vmatpush1.msra.mxu0 0.0
        %956 = vmatprep.subr.mxu0 0.0
        %957 = vmatpush1.msra.mxu0 0.0
        %958 = vmatprep.subr.mxu0 0.0
        %959 = vmatpush1.msra.mxu0 0.0
        %960 = vmatprep.subr.mxu0 0.0
        %961 = vmatpush1.msra.mxu0 0.0
        %962 = vmatprep.subr.mxu0 0.0
        %963 = vmatpush1.msra.mxu0 0.0
        %964 = vmatprep.subr.mxu0 0.0
        %965 = vmatpush1.msra.mxu0 0.0
        %966 = vmatprep.subr.mxu0 0.0
        %967 = vmatpush1.msra.mxu0 0.0
        %968 = vmatprep.subr.mxu0 0.0
        %969 = vmatpush1.msra.mxu0 0.0
        %970 = vmatprep.subr.mxu0 0.0
        %971 = vmatpush1.msra.mxu0 0.0
        %972 = vmatprep.subr.mxu0 %v618
        %973 = vmatpush1.msra.mxu0 %v617
        %974 = vmatprep.subr.mxu0 0.0
        %975 = vmatpush2.msra.mxu0 0.0
        %976 = vmatprep.subr.mxu0 0.0
        %977 = vmatpush2.msra.mxu0 0.0
        %978 = vmatprep.subr.mxu0 0.0
        %979 = vmatpush2.msra.mxu0 0.0
        %980 = vmatprep.subr.mxu0 0.0
        %981 = vmatpush2.msra.mxu0 0.0
        %982 = vmatprep.subr.mxu0 0.0
        %983 = vmatpush2.msra.mxu0 0.0
        %984 = vmatprep.subr.mxu0 0.0
        %985 = vmatpush2.msra.mxu0 0.0
        %986 = vmatprep.subr.mxu0 0.0
        %987 = vmatpush2.msra.mxu0 0.0
        %988 = vmatprep.subr.mxu0 0.0
        %989 = vmatpush2.msra.mxu0 0.0
        %990 = vmatprep.subr.mxu0 0.0
        %991 = vmatpush2.msra.mxu0 0.0
        %992 = vmatprep.subr.mxu0 0.0
        %993 = vmatpush2.msra.mxu0 0.0
        %994 = vmatprep.subr.mxu0 0.0
        %995 = vmatpush2.msra.mxu0 0.0
        %996 = vmatprep.subr.mxu0 0.0
        %997 = vmatpush2.msra.mxu0 0.0
        %998 = vmatprep.subr.mxu0 0.0
        %999 = vmatpush2.msra.mxu0 0.0
        %1000 = vmatprep.subr.mxu0 0.0
        %1001 = vmatpush2.msra.mxu0 0.0
        %1002 = vmatprep.subr.mxu0 0.0
        %1003 = vmatpush2.msra.mxu0 0.0
        %1004 = vmatprep.subr.mxu0 0.0
        %1005 = vmatpush2.msra.mxu0 0.0
        %1006 = vmatprep.mubr.f32.mxu0 0.0
        %1007 = vmatmul.mubr.f32.gmra.mxu0 %v751
        %v1008 = vpop.f32.mrf.mxu0
        %v1009 = vadd.f32 0.0, %v1008
        %v1010 = vpop.f32.mrf.mxu0
        %v1011 = vadd.f32 0.0, %v1010
        %1012 = vmatprep.mubr.f32.mxu0 0.0
        %1013 = vmatmul.mubr.f32.gmra.mxu0 %v754
        %v1014 = vpop.f32.mrf.mxu0
        %v1015 = vadd.f32 0.0, %v1014
        %v1016 = vpop.f32.mrf.mxu0
        %v1017 = vadd.f32 0.0, %v1016
        %1018 = vmatprep.mubr.f32.mxu0 0.0
        %1019 = vmatmul.mubr.f32.gmra.mxu0 %v757
        %v1020 = vpop.f32.mrf.mxu0
        %v1021 = vadd.f32 0.0, %v1020
        %v1022 = vpop.f32.mrf.mxu0
        %v1023 = vadd.f32 0.0, %v1022
        %1024 = vmatprep.mubr.f32.mxu0 0.0
        %1025 = vmatmul.mubr.f32.gmra.mxu0 %v760
        %v1026 = vpop.f32.mrf.mxu0
        %v1027 = vadd.f32 0.0, %v1026
        %v1028 = vpop.f32.mrf.mxu0
        %v1029 = vadd.f32 0.0, %v1028
        %1030 = vmatprep.mubr.f32.mxu0 0.0
        %1031 = vmatmul.mubr.f32.gmra.mxu0 %v763
        %v1032 = vpop.f32.mrf.mxu0
        %v1033 = vadd.f32 0.0, %v1032
        %v1034 = vpop.f32.mrf.mxu0
        %v1035 = vadd.f32 0.0, %v1034
        %1036 = vmatprep.mubr.f32.mxu0 0.0
        %1037 = vmatmul.mubr.f32.gmra.mxu0 %v766
        %v1038 = vpop.f32.mrf.mxu0
        %v1039 = vadd.f32 0.0, %v1038
        %v1040 = vpop.f32.mrf.mxu0
        %v1041 = vadd.f32 0.0, %v1040
        %1042 = vmatprep.mubr.f32.mxu0 0.0
        %1043 = vmatmul.mubr.f32.gmra.mxu0 %v769
        %v1044 = vpop.f32.mrf.mxu0
        %v1045 = vadd.f32 0.0, %v1044
        %v1046 = vpop.f32.mrf.mxu0
        %v1047 = vadd.f32 0.0, %v1046
        %1048 = vmatprep.mubr.f32.mxu0 0.0
        %1049 = vmatmul.mubr.f32.gmra.mxu0 %v772
        %v1050 = vpop.f32.mrf.mxu0
        %v1051 = vadd.f32 0.0, %v1050
        %v1052 = vpop.f32.mrf.mxu0
        %v1053 = vadd.f32 0.0, %v1052
        %1054 = vmatprep.mubr.f32.mxu0 0.0
        %1055 = vmatmul.mubr.f32.gmra.mxu0 %v775
        %v1056 = vpop.f32.mrf.mxu0
        %v1057 = vadd.f32 0.0, %v1056
        %v1058 = vpop.f32.mrf.mxu0
        %v1059 = vadd.f32 0.0, %v1058
        %1060 = vmatprep.mubr.f32.mxu0 0.0
        %1061 = vmatmul.mubr.f32.gmra.mxu0 %v778
        %v1062 = vpop.f32.mrf.mxu0
        %v1063 = vadd.f32 0.0, %v1062
        %v1064 = vpop.f32.mrf.mxu0
        %v1065 = vadd.f32 0.0, %v1064
        %1066 = vmatprep.mubr.f32.mxu0 0.0
        %1067 = vmatmul.mubr.f32.gmra.mxu0 %v781
        %v1068 = vpop.f32.mrf.mxu0
        %v1069 = vadd.f32 0.0, %v1068
        %v1070 = vpop.f32.mrf.mxu0
        %v1071 = vadd.f32 0.0, %v1070
        %1072 = vmatprep.mubr.f32.mxu0 0.0
        %1073 = vmatmul.mubr.f32.gmra.mxu0 %v784
        %v1074 = vpop.f32.mrf.mxu0
        %v1075 = vadd.f32 0.0, %v1074
        %v1076 = vpop.f32.mrf.mxu0
        %v1077 = vadd.f32 0.0, %v1076
        %1078 = vmatprep.mubr.f32.mxu0 0.0
        %1079 = vmatmul.mubr.f32.gmra.mxu0 %v787
        %v1080 = vpop.f32.mrf.mxu0
        %v1081 = vadd.f32 0.0, %v1080
        %v1082 = vpop.f32.mrf.mxu0
        %v1083 = vadd.f32 0.0, %v1082
        %1084 = vmatprep.mubr.f32.mxu0 0.0
        %1085 = vmatmul.mubr.f32.gmra.mxu0 %v790
        %v1086 = vpop.f32.mrf.mxu0
        %v1087 = vadd.f32 0.0, %v1086
        %v1088 = vpop.f32.mrf.mxu0
        %v1089 = vadd.f32 0.0, %v1088
        %1090 = vmatprep.mubr.f32.mxu0 0.0
        %1091 = vmatmul.mubr.f32.gmra.mxu0 %v793
        %v1092 = vpop.f32.mrf.mxu0
        %v1093 = vadd.f32 0.0, %v1092
        %v1094 = vpop.f32.mrf.mxu0
        %v1095 = vadd.f32 0.0, %v1094
        %1096 = vmatprep.mubr.f32.mxu0 0.0
        %1097 = vmatmul.mubr.f32.gmra.mxu0 %v796
        %v1098 = vpop.f32.mrf.mxu0
        %v1099 = vadd.f32 0.0, %v1098
        %v1100 = vpop.f32.mrf.mxu0
        %v1101 = vadd.f32 0.0, %v1100
        %1102 = vmatprep.mubr.f32.mxu0 0.0
        %1103 = vmatmul.mubr.f32.gmra.mxu0 %v799
        %v1104 = vpop.f32.mrf.mxu0
        %v1105 = vadd.f32 0.0, %v1104
        %v1106 = vpop.f32.mrf.mxu0
        %v1107 = vadd.f32 0.0, %v1106
        %1108 = vmatprep.mubr.f32.mxu0 0.0
        %1109 = vmatmul.mubr.f32.gmra.mxu0 %v802
        %v1110 = vpop.f32.mrf.mxu0
        %v1111 = vadd.f32 0.0, %v1110
        %v1112 = vpop.f32.mrf.mxu0
        %v1113 = vadd.f32 0.0, %v1112
        %1114 = vmatprep.mubr.f32.mxu0 0.0
        %1115 = vmatmul.mubr.f32.gmra.mxu0 %v805
        %v1116 = vpop.f32.mrf.mxu0
        %v1117 = vadd.f32 0.0, %v1116
        %v1118 = vpop.f32.mrf.mxu0
        %v1119 = vadd.f32 0.0, %v1118
        %1120 = vmatprep.mubr.f32.mxu0 0.0
        %1121 = vmatmul.mubr.f32.gmra.mxu0 %v808
        %v1122 = vpop.f32.mrf.mxu0
        %v1123 = vadd.f32 0.0, %v1122
        %v1124 = vpop.f32.mrf.mxu0
        %v1125 = vadd.f32 0.0, %v1124
        %1126 = vmatprep.mubr.f32.mxu0 0.0
        %1127 = vmatmul.mubr.f32.gmra.mxu0 %v811
        %v1128 = vpop.f32.mrf.mxu0
        %v1129 = vadd.f32 0.0, %v1128
        %v1130 = vpop.f32.mrf.mxu0
        %v1131 = vadd.f32 0.0, %v1130
        %1132 = vmatprep.mubr.f32.mxu0 0.0
        %1133 = vmatmul.mubr.f32.gmra.mxu0 %v814
        %v1134 = vpop.f32.mrf.mxu0
        %v1135 = vadd.f32 0.0, %v1134
        %v1136 = vpop.f32.mrf.mxu0
        %v1137 = vadd.f32 0.0, %v1136
        %1138 = vmatprep.mubr.f32.mxu0 0.0
        %1139 = vmatmul.mubr.f32.gmra.mxu0 %v817
        %v1140 = vpop.f32.mrf.mxu0
        %v1141 = vadd.f32 0.0, %v1140
        %v1142 = vpop.f32.mrf.mxu0
        %v1143 = vadd.f32 0.0, %v1142
        %1144 = vmatprep.mubr.f32.mxu0 0.0
        %1145 = vmatmul.mubr.f32.gmra.mxu0 %v820
        %v1146 = vpop.f32.mrf.mxu0
        %v1147 = vadd.f32 0.0, %v1146
        %v1148 = vpop.f32.mrf.mxu0
        %v1149 = vadd.f32 0.0, %v1148
        %1150 = vmatprep.mubr.f32.mxu0 0.0
        %1151 = vmatmul.mubr.f32.gmra.mxu0 %v823
        %v1152 = vpop.f32.mrf.mxu0
        %v1153 = vadd.f32 0.0, %v1152
        %v1154 = vpop.f32.mrf.mxu0
        %v1155 = vadd.f32 0.0, %v1154
        %1156 = vmatprep.mubr.f32.mxu0 0.0
        %1157 = vmatmul.mubr.f32.gmra.mxu0 %v826
        %v1158 = vpop.f32.mrf.mxu0
        %v1159 = vadd.f32 0.0, %v1158
        %v1160 = vpop.f32.mrf.mxu0
        %v1161 = vadd.f32 0.0, %v1160
        %1162 = vmatprep.mubr.f32.mxu0 0.0
        %1163 = vmatmul.mubr.f32.gmra.mxu0 %v829
        %v1164 = vpop.f32.mrf.mxu0
        %v1165 = vadd.f32 0.0, %v1164
        %v1166 = vpop.f32.mrf.mxu0
        %v1167 = vadd.f32 0.0, %v1166
        %1168 = vmatprep.mubr.f32.mxu0 0.0
        %1169 = vmatmul.mubr.f32.gmra.mxu0 %v832
        %v1170 = vpop.f32.mrf.mxu0
        %v1171 = vadd.f32 0.0, %v1170
        %v1172 = vpop.f32.mrf.mxu0
        %v1173 = vadd.f32 0.0, %v1172
        %1174 = vmatprep.mubr.f32.mxu0 0.0
        %1175 = vmatmul.mubr.f32.gmra.mxu0 %v835
        %v1176 = vpop.f32.mrf.mxu0
        %v1177 = vadd.f32 0.0, %v1176
        %v1178 = vpop.f32.mrf.mxu0
        %v1179 = vadd.f32 0.0, %v1178
        %1180 = vmatprep.mubr.f32.mxu0 0.0
        %1181 = vmatmul.mubr.f32.gmra.mxu0 %v838
        %v1182 = vpop.f32.mrf.mxu0
        %v1183 = vadd.f32 0.0, %v1182
        %v1184 = vpop.f32.mrf.mxu0
        %v1185 = vadd.f32 0.0, %v1184
        %1186 = vmatprep.mubr.f32.mxu0 0.0
        %1187 = vmatmul.mubr.f32.gmra.mxu0 %v841
        %v1188 = vpop.f32.mrf.mxu0
        %v1189 = vadd.f32 0.0, %v1188
        %v1190 = vpop.f32.mrf.mxu0
        %v1191 = vadd.f32 0.0, %v1190
        %1192 = vmatprep.mubr.f32.mxu0 0.0
        %1193 = vmatmul.mubr.f32.gmra.mxu0 %v844
        %v1194 = vpop.f32.mrf.mxu0
        %v1195 = vadd.f32 0.0, %v1194
        %v1196 = vpop.f32.mrf.mxu0
        %v1197 = vadd.f32 0.0, %v1196
        %1198 = vmatprep.mubr.f32.mxu0 0.0
        %1199 = vmatmul.mubr.f32.gmra.mxu0 %v847
        %v1200 = vpop.f32.mrf.mxu0
        %v1201 = vadd.f32 0.0, %v1200
        %v1202 = vpop.f32.mrf.mxu0
        %v1203 = vadd.f32 0.0, %v1202
        %1204 = vmatprep.mubr.f32.mxu0 0.0
        %1205 = vmatmul.mubr.f32.gmra.mxu0 %v850
        %v1206 = vpop.f32.mrf.mxu0
        %v1207 = vadd.f32 0.0, %v1206
        %v1208 = vpop.f32.mrf.mxu0
        %v1209 = vadd.f32 0.0, %v1208
        %1210 = vmatprep.mubr.f32.mxu0 0.0
        %1211 = vmatmul.mubr.f32.gmra.mxu0 %v853
        %v1212 = vpop.f32.mrf.mxu0
        %v1213 = vadd.f32 0.0, %v1212
        %v1214 = vpop.f32.mrf.mxu0
        %v1215 = vadd.f32 0.0, %v1214
        %1216 = vmatprep.mubr.f32.mxu0 0.0
        %1217 = vmatmul.mubr.f32.gmra.mxu0 %v856
        %v1218 = vpop.f32.mrf.mxu0
        %v1219 = vadd.f32 0.0, %v1218
        %v1220 = vpop.f32.mrf.mxu0
        %v1221 = vadd.f32 0.0, %v1220
        %1222 = vmatprep.mubr.f32.mxu0 0.0
        %1223 = vmatmul.mubr.f32.gmra.mxu0 %v859
        %v1224 = vpop.f32.mrf.mxu0
        %v1225 = vadd.f32 0.0, %v1224
        %v1226 = vpop.f32.mrf.mxu0
        %v1227 = vadd.f32 0.0, %v1226
        %1228 = vmatprep.mubr.f32.mxu0 0.0
        %1229 = vmatmul.mubr.f32.gmra.mxu0 %v862
        %v1230 = vpop.f32.mrf.mxu0
        %v1231 = vadd.f32 0.0, %v1230
        %v1232 = vpop.f32.mrf.mxu0
        %v1233 = vadd.f32 0.0, %v1232
        %1234 = vmatprep.mubr.f32.mxu0 0.0
        %1235 = vmatmul.mubr.f32.gmra.mxu0 %v865
        %v1236 = vpop.f32.mrf.mxu0
        %v1237 = vadd.f32 0.0, %v1236
        %v1238 = vpop.f32.mrf.mxu0
        %v1239 = vadd.f32 0.0, %v1238
        %1240 = vmatprep.mubr.f32.mxu0 0.0
        %1241 = vmatmul.mubr.f32.gmra.mxu0 %v868
        %v1242 = vpop.f32.mrf.mxu0
        %v1243 = vadd.f32 0.0, %v1242
        %v1244 = vpop.f32.mrf.mxu0
        %v1245 = vadd.f32 0.0, %v1244
        %1246 = vmatprep.mubr.f32.mxu0 0.0
        %1247 = vmatmul.mubr.f32.gmra.mxu0 %v871
        %v1248 = vpop.f32.mrf.mxu0
        %v1249 = vadd.f32 0.0, %v1248
        %v1250 = vpop.f32.mrf.mxu0
        %v1251 = vadd.f32 0.0, %v1250
        %1252 = vmatprep.mubr.f32.mxu0 0.0
        %1253 = vmatmul.mubr.f32.gmra.mxu0 %v874
        %v1254 = vpop.f32.mrf.mxu0
        %v1255 = vadd.f32 0.0, %v1254
        %v1256 = vpop.f32.mrf.mxu0
        %v1257 = vadd.f32 0.0, %v1256
        %1258 = vmatprep.mubr.f32.mxu0 0.0
        %1259 = vmatmul.mubr.f32.gmra.mxu0 %v877
        %v1260 = vpop.f32.mrf.mxu0
        %v1261 = vadd.f32 0.0, %v1260
        %v1262 = vpop.f32.mrf.mxu0
        %v1263 = vadd.f32 0.0, %v1262
        %1264 = vmatprep.mubr.f32.mxu0 0.0
        %1265 = vmatmul.mubr.f32.gmra.mxu0 %v880
        %v1266 = vpop.f32.mrf.mxu0
        %v1267 = vadd.f32 0.0, %v1266
        %v1268 = vpop.f32.mrf.mxu0
        %v1269 = vadd.f32 0.0, %v1268
        %1270 = vmatprep.mubr.f32.mxu0 0.0
        %1271 = vmatmul.mubr.f32.gmra.mxu0 %v883
        %v1272 = vpop.f32.mrf.mxu0
        %v1273 = vadd.f32 0.0, %v1272
        %v1274 = vpop.f32.mrf.mxu0
        %v1275 = vadd.f32 0.0, %v1274
        %1276 = vmatprep.mubr.f32.mxu0 0.0
        %1277 = vmatmul.mubr.f32.gmra.mxu0 %v886
        %v1278 = vpop.f32.mrf.mxu0
        %v1279 = vadd.f32 0.0, %v1278
        %v1280 = vpop.f32.mrf.mxu0
        %v1281 = vadd.f32 0.0, %v1280
        %1282 = vmatprep.mubr.f32.mxu0 0.0
        %1283 = vmatmul.mubr.f32.gmra.mxu0 %v889
        %v1284 = vpop.f32.mrf.mxu0
        %v1285 = vadd.f32 0.0, %v1284
        %v1286 = vpop.f32.mrf.mxu0
        %v1287 = vadd.f32 0.0, %v1286
        %1288 = vmatprep.mubr.f32.mxu0 0.0
        %1289 = vmatmul.mubr.f32.gmra.mxu0 %v892
        %v1290 = vpop.f32.mrf.mxu0
        %v1291 = vadd.f32 0.0, %v1290
        %v1292 = vpop.f32.mrf.mxu0
        %v1293 = vadd.f32 0.0, %v1292
        %1294 = vmatprep.mubr.f32.mxu0 0.0
        %1295 = vmatmul.mubr.f32.gmra.mxu0 %v895
        %v1296 = vpop.f32.mrf.mxu0
        %v1297 = vadd.f32 0.0, %v1296
        %v1298 = vpop.f32.mrf.mxu0
        %v1299 = vadd.f32 0.0, %v1298
        %1300 = vmatprep.mubr.f32.mxu0 0.0
        %1301 = vmatmul.mubr.f32.gmra.mxu0 %v898
        %v1302 = vpop.f32.mrf.mxu0
        %v1303 = vadd.f32 0.0, %v1302
        %v1304 = vpop.f32.mrf.mxu0
        %v1305 = vadd.f32 0.0, %v1304
        %1306 = vmatprep.mubr.f32.mxu0 0.0
        %1307 = vmatmul.mubr.f32.gmra.mxu0 %v901
        %v1308 = vpop.f32.mrf.mxu0
        %v1309 = vadd.f32 0.0, %v1308
        %v1310 = vpop.f32.mrf.mxu0
        %v1311 = vadd.f32 0.0, %v1310
        %1312 = vmatprep.mubr.f32.mxu0 0.0
        %1313 = vmatmul.mubr.f32.gmra.mxu0 %v904
        %v1314 = vpop.f32.mrf.mxu0
        %v1315 = vadd.f32 0.0, %v1314
        %v1316 = vpop.f32.mrf.mxu0
        %v1317 = vadd.f32 0.0, %v1316
        %1318 = vmatprep.mubr.f32.mxu0 0.0
        %1319 = vmatmul.mubr.f32.gmra.mxu0 %v907
        %v1320 = vpop.f32.mrf.mxu0
        %v1321 = vadd.f32 0.0, %v1320
        %v1322 = vpop.f32.mrf.mxu0
        %v1323 = vadd.f32 0.0, %v1322
        %1324 = vmatprep.mubr.f32.mxu0 0.0
        %1325 = vmatmul.mubr.f32.gmra.mxu0 %v910
        %v1326 = vpop.f32.mrf.mxu0
        %v1327 = vadd.f32 0.0, %v1326
        %v1328 = vpop.f32.mrf.mxu0
        %v1329 = vadd.f32 0.0, %v1328
        %1330 = vmatprep.mubr.f32.mxu0 0.0
        %1331 = vmatmul.mubr.f32.gmra.mxu0 %v913
        %v1332 = vpop.f32.mrf.mxu0
        %v1333 = vadd.f32 0.0, %v1332
        %v1334 = vpop.f32.mrf.mxu0
        %v1335 = vadd.f32 0.0, %v1334
        %1336 = vmatprep.mubr.f32.mxu0 0.0
        %1337 = vmatmul.mubr.f32.gmra.mxu0 %v916
        %v1338 = vpop.f32.mrf.mxu0
        %v1339 = vadd.f32 0.0, %v1338
        %v1340 = vpop.f32.mrf.mxu0
        %v1341 = vadd.f32 0.0, %v1340
        %1342 = vmatprep.mubr.f32.mxu0 0.0
        %1343 = vmatmul.mubr.f32.gmra.mxu0 %v919
        %v1344 = vpop.f32.mrf.mxu0
        %v1345 = vadd.f32 0.0, %v1344
        %v1346 = vpop.f32.mrf.mxu0
        %v1347 = vadd.f32 0.0, %v1346
        %1348 = vmatprep.mubr.f32.mxu0 0.0
        %1349 = vmatmul.mubr.f32.gmra.mxu0 %v922
        %v1350 = vpop.f32.mrf.mxu0
        %v1351 = vadd.f32 0.0, %v1350
        %v1352 = vpop.f32.mrf.mxu0
        %v1353 = vadd.f32 0.0, %v1352
        %1354 = vmatprep.mubr.f32.mxu0 0.0
        %1355 = vmatmul.mubr.f32.gmra.mxu0 %v925
        %v1356 = vpop.f32.mrf.mxu0
        %v1357 = vadd.f32 0.0, %v1356
        %v1358 = vpop.f32.mrf.mxu0
        %v1359 = vadd.f32 0.0, %v1358
        %1360 = vmatprep.mubr.f32.mxu0 0.0
        %1361 = vmatmul.mubr.f32.gmra.mxu0 %v928
        %v1362 = vpop.f32.mrf.mxu0
        %v1363 = vadd.f32 0.0, %v1362
        %v1364 = vpop.f32.mrf.mxu0
        %v1365 = vadd.f32 0.0, %v1364
        %1366 = vmatprep.mubr.f32.mxu0 0.0
        %1367 = vmatmul.mubr.f32.gmra.mxu0 %v931
        %v1368 = vpop.f32.mrf.mxu0
        %v1369 = vadd.f32 0.0, %v1368
        %v1370 = vpop.f32.mrf.mxu0
        %v1371 = vadd.f32 0.0, %v1370
        %1372 = vmatprep.mubr.f32.mxu0 0.0
        %1373 = vmatmul.mubr.f32.gmra.mxu0 %v934
        %v1374 = vpop.f32.mrf.mxu0
        %v1375 = vadd.f32 0.0, %v1374
        %v1376 = vpop.f32.mrf.mxu0
        %v1377 = vadd.f32 0.0, %v1376
        %1378 = vmatprep.mubr.f32.mxu0 0.0
        %1379 = vmatmul.mubr.f32.gmra.mxu0 %v937
        %v1380 = vpop.f32.mrf.mxu0
        %v1381 = vadd.f32 0.0, %v1380
        %v1382 = vpop.f32.mrf.mxu0
        %v1383 = vadd.f32 0.0, %v1382
        %1384 = vmatprep.mubr.f32.mxu0 0.0
        %1385 = vmatmul.mubr.f32.gmra.mxu0 %v940
        %v1386 = vpop.f32.mrf.mxu0
        %v1387 = vadd.f32 0.0, %v1386
        %v1388 = vpop.f32.mrf.mxu0
        %v1389 = vadd.f32 0.0, %v1388
        %1390 = vdwg.mxu0
        %1391 = vmatprep.subr.mxu0 0.0
        %1392 = vmatpush1.msra.mxu0 0.0
        %1393 = vmatprep.subr.mxu0 0.0
        %1394 = vmatpush1.msra.mxu0 0.0
        %1395 = vmatprep.subr.mxu0 0.0
        %1396 = vmatpush1.msra.mxu0 0.0
        %1397 = vmatprep.subr.mxu0 0.0
        %1398 = vmatpush1.msra.mxu0 0.0
        %1399 = vmatprep.subr.mxu0 0.0
        %1400 = vmatpush1.msra.mxu0 0.0
        %1401 = vmatprep.subr.mxu0 0.0
        %1402 = vmatpush1.msra.mxu0 0.0
        %1403 = vmatprep.subr.mxu0 0.0
        %1404 = vmatpush1.msra.mxu0 0.0
        %1405 = vmatprep.subr.mxu0 0.0
        %1406 = vmatpush1.msra.mxu0 0.0
        %1407 = vmatprep.subr.mxu0 0.0
        %1408 = vmatpush1.msra.mxu0 0.0
        %1409 = vmatprep.subr.mxu0 0.0
        %1410 = vmatpush1.msra.mxu0 0.0
        %1411 = vmatprep.subr.mxu0 0.0
        %1412 = vmatpush1.msra.mxu0 0.0
        %1413 = vmatprep.subr.mxu0 0.0
        %1414 = vmatpush1.msra.mxu0 0.0
        %1415 = vmatprep.subr.mxu0 0.0
        %1416 = vmatpush1.msra.mxu0 0.0
        %1417 = vmatprep.subr.mxu0 0.0
        %1418 = vmatpush1.msra.mxu0 0.0
        %1419 = vmatprep.subr.mxu0 0.0
        %1420 = vmatpush1.msra.mxu0 0.0
        %1421 = vmatprep.subr.mxu0 %v620
        %1422 = vmatpush1.msra.mxu0 %v619
        %1423 = vmatprep.subr.mxu0 0.0
        %1424 = vmatpush2.msra.mxu0 0.0
        %1425 = vmatprep.subr.mxu0 0.0
        %1426 = vmatpush2.msra.mxu0 0.0
        %1427 = vmatprep.subr.mxu0 0.0
        %1428 = vmatpush2.msra.mxu0 0.0
        %1429 = vmatprep.subr.mxu0 0.0
        %1430 = vmatpush2.msra.mxu0 0.0
        %1431 = vmatprep.subr.mxu0 0.0
        %1432 = vmatpush2.msra.mxu0 0.0
        %1433 = vmatprep.subr.mxu0 0.0
        %1434 = vmatpush2.msra.mxu0 0.0
        %1435 = vmatprep.subr.mxu0 0.0
        %1436 = vmatpush2.msra.mxu0 0.0
        %1437 = vmatprep.subr.mxu0 0.0
        %1438 = vmatpush2.msra.mxu0 0.0
        %1439 = vmatprep.subr.mxu0 0.0
        %1440 = vmatpush2.msra.mxu0 0.0
        %1441 = vmatprep.subr.mxu0 0.0
        %1442 = vmatpush2.msra.mxu0 0.0
        %1443 = vmatprep.subr.mxu0 0.0
        %1444 = vmatpush2.msra.mxu0 0.0
        %1445 = vmatprep.subr.mxu0 0.0
        %1446 = vmatpush2.msra.mxu0 0.0
        %1447 = vmatprep.subr.mxu0 0.0
        %1448 = vmatpush2.msra.mxu0 0.0
        %1449 = vmatprep.subr.mxu0 0.0
        %1450 = vmatpush2.msra.mxu0 0.0
        %1451 = vmatprep.subr.mxu0 0.0
        %1452 = vmatpush2.msra.mxu0 0.0
        %1453 = vmatprep.subr.mxu0 0.0
        %1454 = vmatpush2.msra.mxu0 0.0
        %1455 = vmatprep.mubr.f32.mxu0 0.0
        %1456 = vmatmul.mubr.f32.gmra.mxu0 %v751
        %v1457 = vpop.f32.mrf.mxu0
        %v1458 = vadd.f32 0.0, %v1457
        %v1459 = vpop.f32.mrf.mxu0
        %v1460 = vadd.f32 0.0, %v1459
        %1461 = vmatprep.mubr.f32.mxu0 0.0
        %1462 = vmatmul.mubr.f32.gmra.mxu0 %v754
        %v1463 = vpop.f32.mrf.mxu0
        %v1464 = vadd.f32 0.0, %v1463
        %v1465 = vpop.f32.mrf.mxu0
        %v1466 = vadd.f32 0.0, %v1465
        %1467 = vmatprep.mubr.f32.mxu0 0.0
        %1468 = vmatmul.mubr.f32.gmra.mxu0 %v757
        %v1469 = vpop.f32.mrf.mxu0
        %v1470 = vadd.f32 0.0, %v1469
        %v1471 = vpop.f32.mrf.mxu0
        %v1472 = vadd.f32 0.0, %v1471
        %1473 = vmatprep.mubr.f32.mxu0 0.0
        %1474 = vmatmul.mubr.f32.gmra.mxu0 %v760
        %v1475 = vpop.f32.mrf.mxu0
        %v1476 = vadd.f32 0.0, %v1475
        %v1477 = vpop.f32.mrf.mxu0
        %v1478 = vadd.f32 0.0, %v1477
        %1479 = vmatprep.mubr.f32.mxu0 0.0
        %1480 = vmatmul.mubr.f32.gmra.mxu0 %v763
        %v1481 = vpop.f32.mrf.mxu0
        %v1482 = vadd.f32 0.0, %v1481
        %v1483 = vpop.f32.mrf.mxu0
        %v1484 = vadd.f32 0.0, %v1483
        %1485 = vmatprep.mubr.f32.mxu0 0.0
        %1486 = vmatmul.mubr.f32.gmra.mxu0 %v766
        %v1487 = vpop.f32.mrf.mxu0
        %v1488 = vadd.f32 0.0, %v1487
        %v1489 = vpop.f32.mrf.mxu0
        %v1490 = vadd.f32 0.0, %v1489
        %1491 = vmatprep.mubr.f32.mxu0 0.0
        %1492 = vmatmul.mubr.f32.gmra.mxu0 %v769
        %v1493 = vpop.f32.mrf.mxu0
        %v1494 = vadd.f32 0.0, %v1493
        %v1495 = vpop.f32.mrf.mxu0
        %v1496 = vadd.f32 0.0, %v1495
        %1497 = vmatprep.mubr.f32.mxu0 0.0
        %1498 = vmatmul.mubr.f32.gmra.mxu0 %v772
        %v1499 = vpop.f32.mrf.mxu0
        %v1500 = vadd.f32 0.0, %v1499
        %v1501 = vpop.f32.mrf.mxu0
        %v1502 = vadd.f32 0.0, %v1501
        %1503 = vmatprep.mubr.f32.mxu0 0.0
        %1504 = vmatmul.mubr.f32.gmra.mxu0 %v775
        %v1505 = vpop.f32.mrf.mxu0
        %v1506 = vadd.f32 0.0, %v1505
        %v1507 = vpop.f32.mrf.mxu0
        %v1508 = vadd.f32 0.0, %v1507
        %1509 = vmatprep.mubr.f32.mxu0 0.0
        %1510 = vmatmul.mubr.f32.gmra.mxu0 %v778
        %v1511 = vpop.f32.mrf.mxu0
        %v1512 = vadd.f32 0.0, %v1511
        %v1513 = vpop.f32.mrf.mxu0
        %v1514 = vadd.f32 0.0, %v1513
        %1515 = vmatprep.mubr.f32.mxu0 0.0
        %1516 = vmatmul.mubr.f32.gmra.mxu0 %v781
        %v1517 = vpop.f32.mrf.mxu0
        %v1518 = vadd.f32 0.0, %v1517
        %v1519 = vpop.f32.mrf.mxu0
        %v1520 = vadd.f32 0.0, %v1519
        %1521 = vmatprep.mubr.f32.mxu0 0.0
        %1522 = vmatmul.mubr.f32.gmra.mxu0 %v784
        %v1523 = vpop.f32.mrf.mxu0
        %v1524 = vadd.f32 0.0, %v1523
        %v1525 = vpop.f32.mrf.mxu0
        %v1526 = vadd.f32 0.0, %v1525
        %1527 = vmatprep.mubr.f32.mxu0 0.0
        %1528 = vmatmul.mubr.f32.gmra.mxu0 %v787
        %v1529 = vpop.f32.mrf.mxu0
        %v1530 = vadd.f32 0.0, %v1529
        %v1531 = vpop.f32.mrf.mxu0
        %v1532 = vadd.f32 0.0, %v1531
        %1533 = vmatprep.mubr.f32.mxu0 0.0
        %1534 = vmatmul.mubr.f32.gmra.mxu0 %v790
        %v1535 = vpop.f32.mrf.mxu0
        %v1536 = vadd.f32 0.0, %v1535
        %v1537 = vpop.f32.mrf.mxu0
        %v1538 = vadd.f32 0.0, %v1537
        %1539 = vmatprep.mubr.f32.mxu0 0.0
        %1540 = vmatmul.mubr.f32.gmra.mxu0 %v793
        %v1541 = vpop.f32.mrf.mxu0
        %v1542 = vadd.f32 0.0, %v1541
        %v1543 = vpop.f32.mrf.mxu0
        %v1544 = vadd.f32 0.0, %v1543
        %1545 = vmatprep.mubr.f32.mxu0 0.0
        %1546 = vmatmul.mubr.f32.gmra.mxu0 %v796
        %v1547 = vpop.f32.mrf.mxu0
        %v1548 = vadd.f32 0.0, %v1547
        %v1549 = vpop.f32.mrf.mxu0
        %v1550 = vadd.f32 0.0, %v1549
        %1551 = vmatprep.mubr.f32.mxu0 0.0
        %1552 = vmatmul.mubr.f32.gmra.mxu0 %v799
        %v1553 = vpop.f32.mrf.mxu0
        %v1554 = vadd.f32 0.0, %v1553
        %v1555 = vpop.f32.mrf.mxu0
        %v1556 = vadd.f32 0.0, %v1555
        %1557 = vmatprep.mubr.f32.mxu0 0.0
        %1558 = vmatmul.mubr.f32.gmra.mxu0 %v802
        %v1559 = vpop.f32.mrf.mxu0
        %v1560 = vadd.f32 0.0, %v1559
        %v1561 = vpop.f32.mrf.mxu0
        %v1562 = vadd.f32 0.0, %v1561
        %1563 = vmatprep.mubr.f32.mxu0 0.0
        %1564 = vmatmul.mubr.f32.gmra.mxu0 %v805
        %v1565 = vpop.f32.mrf.mxu0
        %v1566 = vadd.f32 0.0, %v1565
        %v1567 = vpop.f32.mrf.mxu0
        %v1568 = vadd.f32 0.0, %v1567
        %1569 = vmatprep.mubr.f32.mxu0 0.0
        %1570 = vmatmul.mubr.f32.gmra.mxu0 %v808
        %v1571 = vpop.f32.mrf.mxu0
        %v1572 = vadd.f32 0.0, %v1571
        %v1573 = vpop.f32.mrf.mxu0
        %v1574 = vadd.f32 0.0, %v1573
        %1575 = vmatprep.mubr.f32.mxu0 0.0
        %1576 = vmatmul.mubr.f32.gmra.mxu0 %v811
        %v1577 = vpop.f32.mrf.mxu0
        %v1578 = vadd.f32 0.0, %v1577
        %v1579 = vpop.f32.mrf.mxu0
        %v1580 = vadd.f32 0.0, %v1579
        %1581 = vmatprep.mubr.f32.mxu0 0.0
        %1582 = vmatmul.mubr.f32.gmra.mxu0 %v814
        %v1583 = vpop.f32.mrf.mxu0
        %v1584 = vadd.f32 0.0, %v1583
        %v1585 = vpop.f32.mrf.mxu0
        %v1586 = vadd.f32 0.0, %v1585
        %1587 = vmatprep.mubr.f32.mxu0 0.0
        %1588 = vmatmul.mubr.f32.gmra.mxu0 %v817
        %v1589 = vpop.f32.mrf.mxu0
        %v1590 = vadd.f32 0.0, %v1589
        %v1591 = vpop.f32.mrf.mxu0
        %v1592 = vadd.f32 0.0, %v1591
        %1593 = vmatprep.mubr.f32.mxu0 0.0
        %1594 = vmatmul.mubr.f32.gmra.mxu0 %v820
        %v1595 = vpop.f32.mrf.mxu0
        %v1596 = vadd.f32 0.0, %v1595
        %v1597 = vpop.f32.mrf.mxu0
        %v1598 = vadd.f32 0.0, %v1597
        %1599 = vmatprep.mubr.f32.mxu0 0.0
        %1600 = vmatmul.mubr.f32.gmra.mxu0 %v823
        %v1601 = vpop.f32.mrf.mxu0
        %v1602 = vadd.f32 0.0, %v1601
        %v1603 = vpop.f32.mrf.mxu0
        %v1604 = vadd.f32 0.0, %v1603
        %1605 = vmatprep.mubr.f32.mxu0 0.0
        %1606 = vmatmul.mubr.f32.gmra.mxu0 %v826
        %v1607 = vpop.f32.mrf.mxu0
        %v1608 = vadd.f32 0.0, %v1607
        %v1609 = vpop.f32.mrf.mxu0
        %v1610 = vadd.f32 0.0, %v1609
        %1611 = vmatprep.mubr.f32.mxu0 0.0
        %1612 = vmatmul.mubr.f32.gmra.mxu0 %v829
        %v1613 = vpop.f32.mrf.mxu0
        %v1614 = vadd.f32 0.0, %v1613
        %v1615 = vpop.f32.mrf.mxu0
        %v1616 = vadd.f32 0.0, %v1615
        %1617 = vmatprep.mubr.f32.mxu0 0.0
        %1618 = vmatmul.mubr.f32.gmra.mxu0 %v832
        %v1619 = vpop.f32.mrf.mxu0
        %v1620 = vadd.f32 0.0, %v1619
        %v1621 = vpop.f32.mrf.mxu0
        %v1622 = vadd.f32 0.0, %v1621
        %1623 = vmatprep.mubr.f32.mxu0 0.0
        %1624 = vmatmul.mubr.f32.gmra.mxu0 %v835
        %v1625 = vpop.f32.mrf.mxu0
        %v1626 = vadd.f32 0.0, %v1625
        %v1627 = vpop.f32.mrf.mxu0
        %v1628 = vadd.f32 0.0, %v1627
        %1629 = vmatprep.mubr.f32.mxu0 0.0
        %1630 = vmatmul.mubr.f32.gmra.mxu0 %v838
        %v1631 = vpop.f32.mrf.mxu0
        %v1632 = vadd.f32 0.0, %v1631
        %v1633 = vpop.f32.mrf.mxu0
        %v1634 = vadd.f32 0.0, %v1633
        %1635 = vmatprep.mubr.f32.mxu0 0.0
        %1636 = vmatmul.mubr.f32.gmra.mxu0 %v841
        %v1637 = vpop.f32.mrf.mxu0
        %v1638 = vadd.f32 0.0, %v1637
        %v1639 = vpop.f32.mrf.mxu0
        %v1640 = vadd.f32 0.0, %v1639
        %1641 = vmatprep.mubr.f32.mxu0 0.0
        %1642 = vmatmul.mubr.f32.gmra.mxu0 %v844
        %v1643 = vpop.f32.mrf.mxu0
        %v1644 = vadd.f32 0.0, %v1643
        %v1645 = vpop.f32.mrf.mxu0
        %v1646 = vadd.f32 0.0, %v1645
        %1647 = vmatprep.mubr.f32.mxu0 0.0
        %1648 = vmatmul.mubr.f32.gmra.mxu0 %v847
        %v1649 = vpop.f32.mrf.mxu0
        %v1650 = vadd.f32 0.0, %v1649
        %v1651 = vpop.f32.mrf.mxu0
        %v1652 = vadd.f32 0.0, %v1651
        %1653 = vmatprep.mubr.f32.mxu0 0.0
        %1654 = vmatmul.mubr.f32.gmra.mxu0 %v850
        %v1655 = vpop.f32.mrf.mxu0
        %v1656 = vadd.f32 0.0, %v1655
        %v1657 = vpop.f32.mrf.mxu0
        %v1658 = vadd.f32 0.0, %v1657
        %1659 = vmatprep.mubr.f32.mxu0 0.0
        %1660 = vmatmul.mubr.f32.gmra.mxu0 %v853
        %v1661 = vpop.f32.mrf.mxu0
        %v1662 = vadd.f32 0.0, %v1661
        %v1663 = vpop.f32.mrf.mxu0
        %v1664 = vadd.f32 0.0, %v1663
        %1665 = vmatprep.mubr.f32.mxu0 0.0
        %1666 = vmatmul.mubr.f32.gmra.mxu0 %v856
        %v1667 = vpop.f32.mrf.mxu0
        %v1668 = vadd.f32 0.0, %v1667
        %v1669 = vpop.f32.mrf.mxu0
        %v1670 = vadd.f32 0.0, %v1669
        %1671 = vmatprep.mubr.f32.mxu0 0.0
        %1672 = vmatmul.mubr.f32.gmra.mxu0 %v859
        %v1673 = vpop.f32.mrf.mxu0
        %v1674 = vadd.f32 0.0, %v1673
        %v1675 = vpop.f32.mrf.mxu0
        %v1676 = vadd.f32 0.0, %v1675
        %1677 = vmatprep.mubr.f32.mxu0 0.0
        %1678 = vmatmul.mubr.f32.gmra.mxu0 %v862
        %v1679 = vpop.f32.mrf.mxu0
        %v1680 = vadd.f32 0.0, %v1679
        %v1681 = vpop.f32.mrf.mxu0
        %v1682 = vadd.f32 0.0, %v1681
        %1683 = vmatprep.mubr.f32.mxu0 0.0
        %1684 = vmatmul.mubr.f32.gmra.mxu0 %v865
        %v1685 = vpop.f32.mrf.mxu0
        %v1686 = vadd.f32 0.0, %v1685
        %v1687 = vpop.f32.mrf.mxu0
        %v1688 = vadd.f32 0.0, %v1687
        %1689 = vmatprep.mubr.f32.mxu0 0.0
        %1690 = vmatmul.mubr.f32.gmra.mxu0 %v868
        %v1691 = vpop.f32.mrf.mxu0
        %v1692 = vadd.f32 0.0, %v1691
        %v1693 = vpop.f32.mrf.mxu0
        %v1694 = vadd.f32 0.0, %v1693
        %1695 = vmatprep.mubr.f32.mxu0 0.0
        %1696 = vmatmul.mubr.f32.gmra.mxu0 %v871
        %v1697 = vpop.f32.mrf.mxu0
        %v1698 = vadd.f32 0.0, %v1697
        %v1699 = vpop.f32.mrf.mxu0
        %v1700 = vadd.f32 0.0, %v1699
        %1701 = vmatprep.mubr.f32.mxu0 0.0
        %1702 = vmatmul.mubr.f32.gmra.mxu0 %v874
        %v1703 = vpop.f32.mrf.mxu0
        %v1704 = vadd.f32 0.0, %v1703
        %v1705 = vpop.f32.mrf.mxu0
        %v1706 = vadd.f32 0.0, %v1705
        %1707 = vmatprep.mubr.f32.mxu0 0.0
        %1708 = vmatmul.mubr.f32.gmra.mxu0 %v877
        %v1709 = vpop.f32.mrf.mxu0
        %v1710 = vadd.f32 0.0, %v1709
        %v1711 = vpop.f32.mrf.mxu0
        %v1712 = vadd.f32 0.0, %v1711
        %1713 = vmatprep.mubr.f32.mxu0 0.0
        %1714 = vmatmul.mubr.f32.gmra.mxu0 %v880
        %v1715 = vpop.f32.mrf.mxu0
        %v1716 = vadd.f32 0.0, %v1715
        %v1717 = vpop.f32.mrf.mxu0
        %v1718 = vadd.f32 0.0, %v1717
        %1719 = vmatprep.mubr.f32.mxu0 0.0
        %1720 = vmatmul.mubr.f32.gmra.mxu0 %v883
        %v1721 = vpop.f32.mrf.mxu0
        %v1722 = vadd.f32 0.0, %v1721
        %v1723 = vpop.f32.mrf.mxu0
        %v1724 = vadd.f32 0.0, %v1723
        %1725 = vmatprep.mubr.f32.mxu0 0.0
        %1726 = vmatmul.mubr.f32.gmra.mxu0 %v886
        %v1727 = vpop.f32.mrf.mxu0
        %v1728 = vadd.f32 0.0, %v1727
        %v1729 = vpop.f32.mrf.mxu0
        %v1730 = vadd.f32 0.0, %v1729
        %1731 = vmatprep.mubr.f32.mxu0 0.0
        %1732 = vmatmul.mubr.f32.gmra.mxu0 %v889
        %v1733 = vpop.f32.mrf.mxu0
        %v1734 = vadd.f32 0.0, %v1733
        %v1735 = vpop.f32.mrf.mxu0
        %v1736 = vadd.f32 0.0, %v1735
        %1737 = vmatprep.mubr.f32.mxu0 0.0
        %1738 = vmatmul.mubr.f32.gmra.mxu0 %v892
        %v1739 = vpop.f32.mrf.mxu0
        %v1740 = vadd.f32 0.0, %v1739
        %v1741 = vpop.f32.mrf.mxu0
        %v1742 = vadd.f32 0.0, %v1741
        %1743 = vmatprep.mubr.f32.mxu0 0.0
        %1744 = vmatmul.mubr.f32.gmra.mxu0 %v895
        %v1745 = vpop.f32.mrf.mxu0
        %v1746 = vadd.f32 0.0, %v1745
        %v1747 = vpop.f32.mrf.mxu0
        %v1748 = vadd.f32 0.0, %v1747
        %1749 = vmatprep.mubr.f32.mxu0 0.0
        %1750 = vmatmul.mubr.f32.gmra.mxu0 %v898
        %v1751 = vpop.f32.mrf.mxu0
        %v1752 = vadd.f32 0.0, %v1751
        %v1753 = vpop.f32.mrf.mxu0
        %v1754 = vadd.f32 0.0, %v1753
        %1755 = vmatprep.mubr.f32.mxu0 0.0
        %1756 = vmatmul.mubr.f32.gmra.mxu0 %v901
        %v1757 = vpop.f32.mrf.mxu0
        %v1758 = vadd.f32 0.0, %v1757
        %v1759 = vpop.f32.mrf.mxu0
        %v1760 = vadd.f32 0.0, %v1759
        %1761 = vmatprep.mubr.f32.mxu0 0.0
        %1762 = vmatmul.mubr.f32.gmra.mxu0 %v904
        %v1763 = vpop.f32.mrf.mxu0
        %v1764 = vadd.f32 0.0, %v1763
        %v1765 = vpop.f32.mrf.mxu0
        %v1766 = vadd.f32 0.0, %v1765
        %1767 = vmatprep.mubr.f32.mxu0 0.0
        %1768 = vmatmul.mubr.f32.gmra.mxu0 %v907
        %v1769 = vpop.f32.mrf.mxu0
        %v1770 = vadd.f32 0.0, %v1769
        %v1771 = vpop.f32.mrf.mxu0
        %v1772 = vadd.f32 0.0, %v1771
        %1773 = vmatprep.mubr.f32.mxu0 0.0
        %1774 = vmatmul.mubr.f32.gmra.mxu0 %v910
        %v1775 = vpop.f32.mrf.mxu0
        %v1776 = vadd.f32 0.0, %v1775
        %v1777 = vpop.f32.mrf.mxu0
        %v1778 = vadd.f32 0.0, %v1777
        %1779 = vmatprep.mubr.f32.mxu0 0.0
        %1780 = vmatmul.mubr.f32.gmra.mxu0 %v913
        %v1781 = vpop.f32.mrf.mxu0
        %v1782 = vadd.f32 0.0, %v1781
        %v1783 = vpop.f32.mrf.mxu0
        %v1784 = vadd.f32 0.0, %v1783
        %1785 = vmatprep.mubr.f32.mxu0 0.0
        %1786 = vmatmul.mubr.f32.gmra.mxu0 %v916
        %v1787 = vpop.f32.mrf.mxu0
        %v1788 = vadd.f32 0.0, %v1787
        %v1789 = vpop.f32.mrf.mxu0
        %v1790 = vadd.f32 0.0, %v1789
        %1791 = vmatprep.mubr.f32.mxu0 0.0
        %1792 = vmatmul.mubr.f32.gmra.mxu0 %v919
        %v1793 = vpop.f32.mrf.mxu0
        %v1794 = vadd.f32 0.0, %v1793
        %v1795 = vpop.f32.mrf.mxu0
        %v1796 = vadd.f32 0.0, %v1795
        %1797 = vmatprep.mubr.f32.mxu0 0.0
        %1798 = vmatmul.mubr.f32.gmra.mxu0 %v922
        %v1799 = vpop.f32.mrf.mxu0
        %v1800 = vadd.f32 0.0, %v1799
        %v1801 = vpop.f32.mrf.mxu0
        %v1802 = vadd.f32 0.0, %v1801
        %1803 = vmatprep.mubr.f32.mxu0 0.0
        %1804 = vmatmul.mubr.f32.gmra.mxu0 %v925
        %v1805 = vpop.f32.mrf.mxu0
        %v1806 = vadd.f32 0.0, %v1805
        %v1807 = vpop.f32.mrf.mxu0
        %v1808 = vadd.f32 0.0, %v1807
        %1809 = vmatprep.mubr.f32.mxu0 0.0
        %1810 = vmatmul.mubr.f32.gmra.mxu0 %v928
        %v1811 = vpop.f32.mrf.mxu0
        %v1812 = vadd.f32 0.0, %v1811
        %v1813 = vpop.f32.mrf.mxu0
        %v1814 = vadd.f32 0.0, %v1813
        %1815 = vmatprep.mubr.f32.mxu0 0.0
        %1816 = vmatmul.mubr.f32.gmra.mxu0 %v931
        %v1817 = vpop.f32.mrf.mxu0
        %v1818 = vadd.f32 0.0, %v1817
        %v1819 = vpop.f32.mrf.mxu0
        %v1820 = vadd.f32 0.0, %v1819
        %1821 = vmatprep.mubr.f32.mxu0 0.0
        %1822 = vmatmul.mubr.f32.gmra.mxu0 %v934
        %v1823 = vpop.f32.mrf.mxu0
        %v1824 = vadd.f32 0.0, %v1823
        %v1825 = vpop.f32.mrf.mxu0
        %v1826 = vadd.f32 0.0, %v1825
        %1827 = vmatprep.mubr.f32.mxu0 0.0
        %1828 = vmatmul.mubr.f32.gmra.mxu0 %v937
        %v1829 = vpop.f32.mrf.mxu0
        %v1830 = vadd.f32 0.0, %v1829
        %v1831 = vpop.f32.mrf.mxu0
        %v1832 = vadd.f32 0.0, %v1831
        %1833 = vmatprep.mubr.f32.mxu0 0.0
        %1834 = vmatmul.mubr.f32.gmra.mxu0 %v940
        %v1835 = vpop.f32.mrf.mxu0
        %v1836 = vadd.f32 0.0, %v1835
        %v1837 = vpop.f32.mrf.mxu0
        %v1838 = vadd.f32 0.0, %v1837
        %1839 = vdwg.mxu0
        %v1840 = vld [vmem:[#allocation3] sm:$0xf]
        %v1841 = vmax.f32 %v1009, %v1015
        %v1842 = vmax.f32 %v1841, %v1021
        %v1843 = vmax.f32 %v1842, %v1027
        %v1844 = vmax.f32 %v1843, %v1033
        %v1845 = vmax.f32 %v1844, %v1039
        %v1846 = vmax.f32 %v1845, %v1045
        %v1847 = vmax.f32 %v1846, %v1051
        %v1848 = vmax.f32 %v1847, %v1057
        %v1849 = vmax.f32 %v1848, %v1063
        %v1850 = vmax.f32 %v1849, %v1069
        %v1851 = vmax.f32 %v1850, %v1075
        %v1852 = vmax.f32 %v1851, %v1081
        %v1853 = vmax.f32 %v1852, %v1087
        %v1854 = vmax.f32 %v1853, %v1093
        %v1855 = vmax.f32 %v1854, %v1099
        %v1856 = vmax.f32 %v1855, %v1105
        %v1857 = vmax.f32 %v1856, %v1111
        %v1858 = vmax.f32 %v1857, %v1117
        %v1859 = vmax.f32 %v1858, %v1123
        %v1860 = vmax.f32 %v1859, %v1129
        %v1861 = vmax.f32 %v1860, %v1135
        %v1862 = vmax.f32 %v1861, %v1141
        %v1863 = vmax.f32 %v1862, %v1147
        %v1864 = vmax.f32 %v1863, %v1153
        %v1865 = vmax.f32 %v1864, %v1159
        %v1866 = vmax.f32 %v1865, %v1165
        %v1867 = vmax.f32 %v1866, %v1171
        %v1868 = vmax.f32 %v1867, %v1177
        %v1869 = vmax.f32 %v1868, %v1183
        %v1870 = vmax.f32 %v1869, %v1189
        %v1871 = vmax.f32 %v1870, %v1195
        %v1872 = vmax.f32 %v1871, %v1201
        %v1873 = vmax.f32 %v1872, %v1207
        %v1874 = vmax.f32 %v1873, %v1213
        %v1875 = vmax.f32 %v1874, %v1219
        %v1876 = vmax.f32 %v1875, %v1225
        %v1877 = vmax.f32 %v1876, %v1231
        %v1878 = vmax.f32 %v1877, %v1237
        %v1879 = vmax.f32 %v1878, %v1243
        %v1880 = vmax.f32 %v1879, %v1249
        %v1881 = vmax.f32 %v1880, %v1255
        %v1882 = vmax.f32 %v1881, %v1261
        %v1883 = vmax.f32 %v1882, %v1267
        %v1884 = vmax.f32 %v1883, %v1273
        %v1885 = vmax.f32 %v1884, %v1279
        %v1886 = vmax.f32 %v1885, %v1285
        %v1887 = vmax.f32 %v1886, %v1291
        %v1888 = vmax.f32 %v1887, %v1297
        %v1889 = vmax.f32 %v1888, %v1303
        %v1890 = vmax.f32 %v1889, %v1309
        %v1891 = vmax.f32 %v1890, %v1315
        %v1892 = vmax.f32 %v1891, %v1321
        %v1893 = vmax.f32 %v1892, %v1327
        %v1894 = vmax.f32 %v1893, %v1333
        %v1895 = vmax.f32 %v1894, %v1339
        %v1896 = vmax.f32 %v1895, %v1345
        %v1897 = vmax.f32 %v1896, %v1351
        %v1898 = vmax.f32 %v1897, %v1357
        %v1899 = vmax.f32 %v1898, %v1363
        %v1900 = vmax.f32 %v1899, %v1369
        %v1901 = vmax.f32 %v1900, %v1375
        %v1902 = vmax.f32 %v1901, %v1381
        %v1903 = vmax.f32 %v1902, %v1387
        %v1904 = vrot.slane %v1903, 4
        %v1905 = vmax.f32 %v1903, %v1904
        %v1906 = vrot.slane %v1905, 2
        %v1907 = vmax.f32 %v1905, %v1906
        %v1908 = vrot.slane %v1907, 1
        %v1909 = vmax.f32 %v1907, %v1908
        %v1910 = vmax.f32 %v1011, %v1017
        %v1911 = vmax.f32 %v1910, %v1023
        %v1912 = vmax.f32 %v1911, %v1029
        %v1913 = vmax.f32 %v1912, %v1035
        %v1914 = vmax.f32 %v1913, %v1041
        %v1915 = vmax.f32 %v1914, %v1047
        %v1916 = vmax.f32 %v1915, %v1053
        %v1917 = vmax.f32 %v1916, %v1059
        %v1918 = vmax.f32 %v1917, %v1065
        %v1919 = vmax.f32 %v1918, %v1071
        %v1920 = vmax.f32 %v1919, %v1077
        %v1921 = vmax.f32 %v1920, %v1083
        %v1922 = vmax.f32 %v1921, %v1089
        %v1923 = vmax.f32 %v1922, %v1095
        %v1924 = vmax.f32 %v1923, %v1101
        %v1925 = vmax.f32 %v1924, %v1107
        %v1926 = vmax.f32 %v1925, %v1113
        %v1927 = vmax.f32 %v1926, %v1119
        %v1928 = vmax.f32 %v1927, %v1125
        %v1929 = vmax.f32 %v1928, %v1131
        %v1930 = vmax.f32 %v1929, %v1137
        %v1931 = vmax.f32 %v1930, %v1143
        %v1932 = vmax.f32 %v1931, %v1149
        %v1933 = vmax.f32 %v1932, %v1155
        %v1934 = vmax.f32 %v1933, %v1161
        %v1935 = vmax.f32 %v1934, %v1167
        %v1936 = vmax.f32 %v1935, %v1173
        %v1937 = vmax.f32 %v1936, %v1179
        %v1938 = vmax.f32 %v1937, %v1185
        %v1939 = vmax.f32 %v1938, %v1191
        %v1940 = vmax.f32 %v1939, %v1197
        %v1941 = vmax.f32 %v1940, %v1203
        %v1942 = vmax.f32 %v1941, %v1209
        %v1943 = vmax.f32 %v1942, %v1215
        %v1944 = vmax.f32 %v1943, %v1221
        %v1945 = vmax.f32 %v1944, %v1227
        %v1946 = vmax.f32 %v1945, %v1233
        %v1947 = vmax.f32 %v1946, %v1239
        %v1948 = vmax.f32 %v1947, %v1245
        %v1949 = vmax.f32 %v1948, %v1251
        %v1950 = vmax.f32 %v1949, %v1257
        %v1951 = vmax.f32 %v1950, %v1263
        %v1952 = vmax.f32 %v1951, %v1269
        %v1953 = vmax.f32 %v1952, %v1275
        %v1954 = vmax.f32 %v1953, %v1281
        %v1955 = vmax.f32 %v1954, %v1287
        %v1956 = vmax.f32 %v1955, %v1293
        %v1957 = vmax.f32 %v1956, %v1299
        %v1958 = vmax.f32 %v1957, %v1305
        %v1959 = vmax.f32 %v1958, %v1311
        %v1960 = vmax.f32 %v1959, %v1317
        %v1961 = vmax.f32 %v1960, %v1323
        %v1962 = vmax.f32 %v1961, %v1329
        %v1963 = vmax.f32 %v1962, %v1335
        %v1964 = vmax.f32 %v1963, %v1341
        %v1965 = vmax.f32 %v1964, %v1347
        %v1966 = vmax.f32 %v1965, %v1353
        %v1967 = vmax.f32 %v1966, %v1359
        %v1968 = vmax.f32 %v1967, %v1365
        %v1969 = vmax.f32 %v1968, %v1371
        %v1970 = vmax.f32 %v1969, %v1377
        %v1971 = vmax.f32 %v1970, %v1383
        %v1972 = vmax.f32 %v1971, %v1389
        %v1973 = vrot.slane %v1972, 4
        %v1974 = vmax.f32 %v1972, %v1973
        %v1975 = vrot.slane %v1974, 2
        %v1976 = vmax.f32 %v1974, %v1975
        %v1977 = vrot.slane %v1976, 1
        %v1978 = vmax.f32 %v1976, %v1977
        %v1979 = vmax.f32 %v1458, %v1464
        %v1980 = vmax.f32 %v1979, %v1470
        %v1981 = vmax.f32 %v1980, %v1476
        %v1982 = vmax.f32 %v1981, %v1482
        %v1983 = vmax.f32 %v1982, %v1488
        %v1984 = vmax.f32 %v1983, %v1494
        %v1985 = vmax.f32 %v1984, %v1500
        %v1986 = vmax.f32 %v1985, %v1506
        %v1987 = vmax.f32 %v1986, %v1512
        %v1988 = vmax.f32 %v1987, %v1518
        %v1989 = vmax.f32 %v1988, %v1524
        %v1990 = vmax.f32 %v1989, %v1530
        %v1991 = vmax.f32 %v1990, %v1536
        %v1992 = vmax.f32 %v1991, %v1542
        %v1993 = vmax.f32 %v1992, %v1548
        %v1994 = vmax.f32 %v1993, %v1554
        %v1995 = vmax.f32 %v1994, %v1560
        %v1996 = vmax.f32 %v1995, %v1566
        %v1997 = vmax.f32 %v1996, %v1572
        %v1998 = vmax.f32 %v1997, %v1578
        %v1999 = vmax.f32 %v1998, %v1584
        %v2000 = vmax.f32 %v1999, %v1590
        %v2001 = vmax.f32 %v2000, %v1596
        %v2002 = vmax.f32 %v2001, %v1602
        %v2003 = vmax.f32 %v2002, %v1608
        %v2004 = vmax.f32 %v2003, %v1614
        %v2005 = vmax.f32 %v2004, %v1620
        %v2006 = vmax.f32 %v2005, %v1626
        %v2007 = vmax.f32 %v2006, %v1632
        %v2008 = vmax.f32 %v2007, %v1638
        %v2009 = vmax.f32 %v2008, %v1644
        %v2010 = vmax.f32 %v2009, %v1650
        %v2011 = vmax.f32 %v2010, %v1656
        %v2012 = vmax.f32 %v2011, %v1662
        %v2013 = vmax.f32 %v2012, %v1668
        %v2014 = vmax.f32 %v2013, %v1674
        %v2015 = vmax.f32 %v2014, %v1680
        %v2016 = vmax.f32 %v2015, %v1686
        %v2017 = vmax.f32 %v2016, %v1692
        %v2018 = vmax.f32 %v2017, %v1698
        %v2019 = vmax.f32 %v2018, %v1704
        %v2020 = vmax.f32 %v2019, %v1710
        %v2021 = vmax.f32 %v2020, %v1716
        %v2022 = vmax.f32 %v2021, %v1722
        %v2023 = vmax.f32 %v2022, %v1728
        %v2024 = vmax.f32 %v2023, %v1734
        %v2025 = vmax.f32 %v2024, %v1740
        %v2026 = vmax.f32 %v2025, %v1746
        %v2027 = vmax.f32 %v2026, %v1752
        %v2028 = vmax.f32 %v2027, %v1758
        %v2029 = vmax.f32 %v2028, %v1764
        %v2030 = vmax.f32 %v2029, %v1770
        %v2031 = vmax.f32 %v2030, %v1776
        %v2032 = vmax.f32 %v2031, %v1782
        %v2033 = vmax.f32 %v2032, %v1788
        %v2034 = vmax.f32 %v2033, %v1794
        %v2035 = vmax.f32 %v2034, %v1800
        %v2036 = vmax.f32 %v2035, %v1806
        %v2037 = vmax.f32 %v2036, %v1812
        %v2038 = vmax.f32 %v2037, %v1818
        %v2039 = vmax.f32 %v2038, %v1824
        %v2040 = vmax.f32 %v2039, %v1830
        %v2041 = vmax.f32 %v2040, %v1836
        %v2042 = vrot.slane %v2041, 4
        %v2043 = vmax.f32 %v2041, %v2042
        %v2044 = vrot.slane %v2043, 2
        %v2045 = vmax.f32 %v2043, %v2044
        %v2046 = vrot.slane %v2045, 1
        %v2047 = vmax.f32 %v2045, %v2046
        %v2048 = vmax.f32 %v1460, %v1466
        %v2049 = vmax.f32 %v2048, %v1472
        %v2050 = vmax.f32 %v2049, %v1478
        %v2051 = vmax.f32 %v2050, %v1484
        %v2052 = vmax.f32 %v2051, %v1490
        %v2053 = vmax.f32 %v2052, %v1496
        %v2054 = vmax.f32 %v2053, %v1502
        %v2055 = vmax.f32 %v2054, %v1508
        %v2056 = vmax.f32 %v2055, %v1514
        %v2057 = vmax.f32 %v2056, %v1520
        %v2058 = vmax.f32 %v2057, %v1526
        %v2059 = vmax.f32 %v2058, %v1532
        %v2060 = vmax.f32 %v2059, %v1538
        %v2061 = vmax.f32 %v2060, %v1544
        %v2062 = vmax.f32 %v2061, %v1550
        %v2063 = vmax.f32 %v2062, %v1556
        %v2064 = vmax.f32 %v2063, %v1562
        %v2065 = vmax.f32 %v2064, %v1568
        %v2066 = vmax.f32 %v2065, %v1574
        %v2067 = vmax.f32 %v2066, %v1580
        %v2068 = vmax.f32 %v2067, %v1586
        %v2069 = vmax.f32 %v2068, %v1592
        %v2070 = vmax.f32 %v2069, %v1598
        %v2071 = vmax.f32 %v2070, %v1604
        %v2072 = vmax.f32 %v2071, %v1610
        %v2073 = vmax.f32 %v2072, %v1616
        %v2074 = vmax.f32 %v2073, %v1622
        %v2075 = vmax.f32 %v2074, %v1628
        %v2076 = vmax.f32 %v2075, %v1634
        %v2077 = vmax.f32 %v2076, %v1640
        %v2078 = vmax.f32 %v2077, %v1646
        %v2079 = vmax.f32 %v2078, %v1652
        %v2080 = vmax.f32 %v2079, %v1658
        %v2081 = vmax.f32 %v2080, %v1664
        %v2082 = vmax.f32 %v2081, %v1670
        %v2083 = vmax.f32 %v2082, %v1676
        %v2084 = vmax.f32 %v2083, %v1682
        %v2085 = vmax.f32 %v2084, %v1688
        %v2086 = vmax.f32 %v2085, %v1694
        %v2087 = vmax.f32 %v2086, %v1700
        %v2088 = vmax.f32 %v2087, %v1706
        %v2089 = vmax.f32 %v2088, %v1712
        %v2090 = vmax.f32 %v2089, %v1718
        %v2091 = vmax.f32 %v2090, %v1724
        %v2092 = vmax.f32 %v2091, %v1730
        %v2093 = vmax.f32 %v2092, %v1736
        %v2094 = vmax.f32 %v2093, %v1742
        %v2095 = vmax.f32 %v2094, %v1748
        %v2096 = vmax.f32 %v2095, %v1754
        %v2097 = vmax.f32 %v2096, %v1760
        %v2098 = vmax.f32 %v2097, %v1766
        %v2099 = vmax.f32 %v2098, %v1772
        %v2100 = vmax.f32 %v2099, %v1778
        %v2101 = vmax.f32 %v2100, %v1784
        %v2102 = vmax.f32 %v2101, %v1790
        %v2103 = vmax.f32 %v2102, %v1796
        %v2104 = vmax.f32 %v2103, %v1802
        %v2105 = vmax.f32 %v2104, %v1808
        %v2106 = vmax.f32 %v2105, %v1814
        %v2107 = vmax.f32 %v2106, %v1820
        %v2108 = vmax.f32 %v2107, %v1826
        %v2109 = vmax.f32 %v2108, %v1832
        %v2110 = vmax.f32 %v2109, %v1838
        %v2111 = vrot.slane %v2110, 4
        %v2112 = vmax.f32 %v2110, %v2111
        %v2113 = vrot.slane %v2112, 2
        %v2114 = vmax.f32 %v2112, %v2113
        %v2115 = vrot.slane %v2114, 1
        %v2116 = vmax.f32 %v2114, %v2115
        %v2121 = vcombine.low %v1909, %v1978
        %v2122 = vcombine.low %v2047, %v2116
        %v2124 = vunpack.c.l.s4 1966171168
        %v2125 = vunpack.c.0.s8 %v2124
        %v2126 = vlaneseq
        %v2127 = vshrl.u32 %v2126, 7
        %v2128 = vsub.s32 %v2125, %v2127
        %v2129 = vrot.slane %v2121, %v2128
        %v2131 = vunpack.c.l.s4 1966171168
        %v2132 = vunpack.c.0.s8 %v2131
        %v2133 = vlaneseq
        %v2134 = vshrl.u32 %v2133, 7
        %v2135 = vsub.s32 %v2132, %v2134
        %v2136 = vrot.slane %v2122, %v2135
        %v2137 = vcombine.low %v2129, %v2136
        %v2139 = vunpack.c.l.s4 1966171168
        %v2140 = vunpack.c.0.s8 %v2139
        %v2141 = vlaneseq
        %v2142 = vshrl.u32 %v2141, 7
        %v2143 = vsub.s32 %v2140, %v2142
        %v2144 = vrot.slane %v2137, %v2143
        %v2146 = vmax.f32 %v1840, %v2144
        %v2147 = vsub.f32 %v1840, %v2146
        %v2148 = vmul.f32 %v2147, 1.442695
        %v2149 = vpow.pop %v2148
        %v2151 = vlaneseq
        %v2152 = vshrl.u32 %v2151, 7
        %v2153 = vsub.s32 0, %v2152
        %v2154 = vrot.slane %v2146, %v2153
        %v2155 = vlaneseq
        %v2156 = vshrl.u32 %v2155, 7
        %v2157 = vsub.s32 1, %v2156
        %v2158 = vrot.slane %v2146, %v2157
        %v2159 = vlaneseq
        %v2160 = vshrl.u32 %v2159, 7
        %v2161 = vsub.s32 2, %v2160
        %v2162 = vrot.slane %v2146, %v2161
        %v2163 = vlaneseq
        %v2164 = vshrl.u32 %v2163, 7
        %v2165 = vsub.s32 3, %v2164
        %v2166 = vrot.slane %v2146, %v2165
        %v2171 = vsub.f32 %v1009, %v2154
        %v2172 = vsub.f32 %v1011, %v2158
        %v2173 = vsub.f32 %v1458, %v2162
        %v2174 = vsub.f32 %v1460, %v2166
        %v2175 = vsub.f32 %v1015, %v2154
        %v2176 = vsub.f32 %v1017, %v2158
        %v2177 = vsub.f32 %v1464, %v2162
        %v2178 = vsub.f32 %v1466, %v2166
        %v2179 = vsub.f32 %v1021, %v2154
        %v2180 = vsub.f32 %v1023, %v2158
        %v2181 = vsub.f32 %v1470, %v2162
        %v2182 = vsub.f32 %v1472, %v2166
        %v2183 = vsub.f32 %v1027, %v2154
        %v2184 = vsub.f32 %v1029, %v2158
        %v2185 = vsub.f32 %v1476, %v2162
        %v2186 = vsub.f32 %v1478, %v2166
        %v2187 = vsub.f32 %v1033, %v2154
        %v2188 = vsub.f32 %v1035, %v2158
        %v2189 = vsub.f32 %v1482, %v2162
        %v2190 = vsub.f32 %v1484, %v2166
        %v2191 = vsub.f32 %v1039, %v2154
        %v2192 = vsub.f32 %v1041, %v2158
        %v2193 = vsub.f32 %v1488, %v2162
        %v2194 = vsub.f32 %v1490, %v2166
        %v2195 = vsub.f32 %v1045, %v2154
        %v2196 = vsub.f32 %v1047, %v2158
        %v2197 = vsub.f32 %v1494, %v2162
        %v2198 = vsub.f32 %v1496, %v2166
        %v2199 = vsub.f32 %v1051, %v2154
        %v2200 = vsub.f32 %v1053, %v2158
        %v2201 = vsub.f32 %v1500, %v2162
        %v2202 = vsub.f32 %v1502, %v2166
        %v2203 = vsub.f32 %v1057, %v2154
        %v2204 = vsub.f32 %v1059, %v2158
        %v2205 = vsub.f32 %v1506, %v2162
        %v2206 = vsub.f32 %v1508, %v2166
        %v2207 = vsub.f32 %v1063, %v2154
        %v2208 = vsub.f32 %v1065, %v2158
        %v2209 = vsub.f32 %v1512, %v2162
        %v2210 = vsub.f32 %v1514, %v2166
        %v2211 = vsub.f32 %v1069, %v2154
        %v2212 = vsub.f32 %v1071, %v2158
        %v2213 = vsub.f32 %v1518, %v2162
        %v2214 = vsub.f32 %v1520, %v2166
        %v2215 = vsub.f32 %v1075, %v2154
        %v2216 = vsub.f32 %v1077, %v2158
        %v2217 = vsub.f32 %v1524, %v2162
        %v2218 = vsub.f32 %v1526, %v2166
        %v2219 = vsub.f32 %v1081, %v2154
        %v2220 = vsub.f32 %v1083, %v2158
        %v2221 = vsub.f32 %v1530, %v2162
        %v2222 = vsub.f32 %v1532, %v2166
        %v2223 = vsub.f32 %v1087, %v2154
        %v2224 = vsub.f32 %v1089, %v2158
        %v2225 = vsub.f32 %v1536, %v2162
        %v2226 = vsub.f32 %v1538, %v2166
        %v2227 = vsub.f32 %v1093, %v2154
        %v2228 = vsub.f32 %v1095, %v2158
        %v2229 = vsub.f32 %v1542, %v2162
        %v2230 = vsub.f32 %v1544, %v2166
        %v2231 = vsub.f32 %v1099, %v2154
        %v2232 = vsub.f32 %v1101, %v2158
        %v2233 = vsub.f32 %v1548, %v2162
        %v2234 = vsub.f32 %v1550, %v2166
        %v2235 = vsub.f32 %v1105, %v2154
        %v2236 = vsub.f32 %v1107, %v2158
        %v2237 = vsub.f32 %v1554, %v2162
        %v2238 = vsub.f32 %v1556, %v2166
        %v2239 = vsub.f32 %v1111, %v2154
        %v2240 = vsub.f32 %v1113, %v2158
        %v2241 = vsub.f32 %v1560, %v2162
        %v2242 = vsub.f32 %v1562, %v2166
        %v2243 = vsub.f32 %v1117, %v2154
        %v2244 = vsub.f32 %v1119, %v2158
        %v2245 = vsub.f32 %v1566, %v2162
        %v2246 = vsub.f32 %v1568, %v2166
        %v2247 = vsub.f32 %v1123, %v2154
        %v2248 = vsub.f32 %v1125, %v2158
        %v2249 = vsub.f32 %v1572, %v2162
        %v2250 = vsub.f32 %v1574, %v2166
        %v2251 = vsub.f32 %v1129, %v2154
        %v2252 = vsub.f32 %v1131, %v2158
        %v2253 = vsub.f32 %v1578, %v2162
        %v2254 = vsub.f32 %v1580, %v2166
        %v2255 = vsub.f32 %v1135, %v2154
        %v2256 = vsub.f32 %v1137, %v2158
        %v2257 = vsub.f32 %v1584, %v2162
        %v2258 = vsub.f32 %v1586, %v2166
        %v2259 = vsub.f32 %v1141, %v2154
        %v2260 = vsub.f32 %v1143, %v2158
        %v2261 = vsub.f32 %v1590, %v2162
        %v2262 = vsub.f32 %v1592, %v2166
        %v2263 = vsub.f32 %v1147, %v2154
        %v2264 = vsub.f32 %v1149, %v2158
        %v2265 = vsub.f32 %v1596, %v2162
        %v2266 = vsub.f32 %v1598, %v2166
        %v2267 = vsub.f32 %v1153, %v2154
        %v2268 = vsub.f32 %v1155, %v2158
        %v2269 = vsub.f32 %v1602, %v2162
        %v2270 = vsub.f32 %v1604, %v2166
        %v2271 = vsub.f32 %v1159, %v2154
        %v2272 = vsub.f32 %v1161, %v2158
        %v2273 = vsub.f32 %v1608, %v2162
        %v2274 = vsub.f32 %v1610, %v2166
        %v2275 = vsub.f32 %v1165, %v2154
        %v2276 = vsub.f32 %v1167, %v2158
        %v2277 = vsub.f32 %v1614, %v2162
        %v2278 = vsub.f32 %v1616, %v2166
        %v2279 = vsub.f32 %v1171, %v2154
        %v2280 = vsub.f32 %v1173, %v2158
        %v2281 = vsub.f32 %v1620, %v2162
        %v2282 = vsub.f32 %v1622, %v2166
        %v2283 = vsub.f32 %v1177, %v2154
        %v2284 = vsub.f32 %v1179, %v2158
        %v2285 = vsub.f32 %v1626, %v2162
        %v2286 = vsub.f32 %v1628, %v2166
        %v2287 = vsub.f32 %v1183, %v2154
        %v2288 = vsub.f32 %v1185, %v2158
        %v2289 = vsub.f32 %v1632, %v2162
        %v2290 = vsub.f32 %v1634, %v2166
        %v2291 = vsub.f32 %v1189, %v2154
        %v2292 = vsub.f32 %v1191, %v2158
        %v2293 = vsub.f32 %v1638, %v2162
        %v2294 = vsub.f32 %v1640, %v2166
        %v2295 = vsub.f32 %v1195, %v2154
        %v2296 = vsub.f32 %v1197, %v2158
        %v2297 = vsub.f32 %v1644, %v2162
        %v2298 = vsub.f32 %v1646, %v2166
        %v2299 = vsub.f32 %v1201, %v2154
        %v2300 = vsub.f32 %v1203, %v2158
        %v2301 = vsub.f32 %v1650, %v2162
        %v2302 = vsub.f32 %v1652, %v2166
        %v2303 = vsub.f32 %v1207, %v2154
        %v2304 = vsub.f32 %v1209, %v2158
        %v2305 = vsub.f32 %v1656, %v2162
        %v2306 = vsub.f32 %v1658, %v2166
        %v2307 = vsub.f32 %v1213, %v2154
        %v2308 = vsub.f32 %v1215, %v2158
        %v2309 = vsub.f32 %v1662, %v2162
        %v2310 = vsub.f32 %v1664, %v2166
        %v2311 = vsub.f32 %v1219, %v2154
        %v2312 = vsub.f32 %v1221, %v2158
        %v2313 = vsub.f32 %v1668, %v2162
        %v2314 = vsub.f32 %v1670, %v2166
        %v2315 = vsub.f32 %v1225, %v2154
        %v2316 = vsub.f32 %v1227, %v2158
        %v2317 = vsub.f32 %v1674, %v2162
        %v2318 = vsub.f32 %v1676, %v2166
        %v2319 = vsub.f32 %v1231, %v2154
        %v2320 = vsub.f32 %v1233, %v2158
        %v2321 = vsub.f32 %v1680, %v2162
        %v2322 = vsub.f32 %v1682, %v2166
        %v2323 = vsub.f32 %v1237, %v2154
        %v2324 = vsub.f32 %v1239, %v2158
        %v2325 = vsub.f32 %v1686, %v2162
        %v2326 = vsub.f32 %v1688, %v2166
        %v2327 = vsub.f32 %v1243, %v2154
        %v2328 = vsub.f32 %v1245, %v2158
        %v2329 = vsub.f32 %v1692, %v2162
        %v2330 = vsub.f32 %v1694, %v2166
        %v2331 = vsub.f32 %v1249, %v2154
        %v2332 = vsub.f32 %v1251, %v2158
        %v2333 = vsub.f32 %v1698, %v2162
        %v2334 = vsub.f32 %v1700, %v2166
        %v2335 = vsub.f32 %v1255, %v2154
        %v2336 = vsub.f32 %v1257, %v2158
        %v2337 = vsub.f32 %v1704, %v2162
        %v2338 = vsub.f32 %v1706, %v2166
        %v2339 = vsub.f32 %v1261, %v2154
        %v2340 = vsub.f32 %v1263, %v2158
        %v2341 = vsub.f32 %v1710, %v2162
        %v2342 = vsub.f32 %v1712, %v2166
        %v2343 = vsub.f32 %v1267, %v2154
        %v2344 = vsub.f32 %v1269, %v2158
        %v2345 = vsub.f32 %v1716, %v2162
        %v2346 = vsub.f32 %v1718, %v2166
        %v2347 = vsub.f32 %v1273, %v2154
        %v2348 = vsub.f32 %v1275, %v2158
        %v2349 = vsub.f32 %v1722, %v2162
        %v2350 = vsub.f32 %v1724, %v2166
        %v2351 = vsub.f32 %v1279, %v2154
        %v2352 = vsub.f32 %v1281, %v2158
        %v2353 = vsub.f32 %v1728, %v2162
        %v2354 = vsub.f32 %v1730, %v2166
        %v2355 = vsub.f32 %v1285, %v2154
        %v2356 = vsub.f32 %v1287, %v2158
        %v2357 = vsub.f32 %v1734, %v2162
        %v2358 = vsub.f32 %v1736, %v2166
        %v2359 = vsub.f32 %v1291, %v2154
        %v2360 = vsub.f32 %v1293, %v2158
        %v2361 = vsub.f32 %v1740, %v2162
        %v2362 = vsub.f32 %v1742, %v2166
        %v2363 = vsub.f32 %v1297, %v2154
        %v2364 = vsub.f32 %v1299, %v2158
        %v2365 = vsub.f32 %v1746, %v2162
        %v2366 = vsub.f32 %v1748, %v2166
        %v2367 = vsub.f32 %v1303, %v2154
        %v2368 = vsub.f32 %v1305, %v2158
        %v2369 = vsub.f32 %v1752, %v2162
        %v2370 = vsub.f32 %v1754, %v2166
        %v2371 = vsub.f32 %v1309, %v2154
        %v2372 = vsub.f32 %v1311, %v2158
        %v2373 = vsub.f32 %v1758, %v2162
        %v2374 = vsub.f32 %v1760, %v2166
        %v2375 = vsub.f32 %v1315, %v2154
        %v2376 = vsub.f32 %v1317, %v2158
        %v2377 = vsub.f32 %v1764, %v2162
        %v2378 = vsub.f32 %v1766, %v2166
        %v2379 = vsub.f32 %v1321, %v2154
        %v2380 = vsub.f32 %v1323, %v2158
        %v2381 = vsub.f32 %v1770, %v2162
        %v2382 = vsub.f32 %v1772, %v2166
        %v2383 = vsub.f32 %v1327, %v2154
        %v2384 = vsub.f32 %v1329, %v2158
        %v2385 = vsub.f32 %v1776, %v2162
        %v2386 = vsub.f32 %v1778, %v2166
        %v2387 = vsub.f32 %v1333, %v2154
        %v2388 = vsub.f32 %v1335, %v2158
        %v2389 = vsub.f32 %v1782, %v2162
        %v2390 = vsub.f32 %v1784, %v2166
        %v2391 = vsub.f32 %v1339, %v2154
        %v2392 = vsub.f32 %v1341, %v2158
        %v2393 = vsub.f32 %v1788, %v2162
        %v2394 = vsub.f32 %v1790, %v2166
        %v2395 = vsub.f32 %v1345, %v2154
        %v2396 = vsub.f32 %v1347, %v2158
        %v2397 = vsub.f32 %v1794, %v2162
        %v2398 = vsub.f32 %v1796, %v2166
        %v2399 = vsub.f32 %v1351, %v2154
        %v2400 = vsub.f32 %v1353, %v2158
        %v2401 = vsub.f32 %v1800, %v2162
        %v2402 = vsub.f32 %v1802, %v2166
        %v2403 = vsub.f32 %v1357, %v2154
        %v2404 = vsub.f32 %v1359, %v2158
        %v2405 = vsub.f32 %v1806, %v2162
        %v2406 = vsub.f32 %v1808, %v2166
        %v2407 = vsub.f32 %v1363, %v2154
        %v2408 = vsub.f32 %v1365, %v2158
        %v2409 = vsub.f32 %v1812, %v2162
        %v2410 = vsub.f32 %v1814, %v2166
        %v2411 = vsub.f32 %v1369, %v2154
        %v2412 = vsub.f32 %v1371, %v2158
        %v2413 = vsub.f32 %v1818, %v2162
        %v2414 = vsub.f32 %v1820, %v2166
        %v2415 = vsub.f32 %v1375, %v2154
        %v2416 = vsub.f32 %v1377, %v2158
        %v2417 = vsub.f32 %v1824, %v2162
        %v2418 = vsub.f32 %v1826, %v2166
        %v2419 = vsub.f32 %v1381, %v2154
        %v2420 = vsub.f32 %v1383, %v2158
        %v2421 = vsub.f32 %v1830, %v2162
        %v2422 = vsub.f32 %v1832, %v2166
        %v2423 = vsub.f32 %v1387, %v2154
        %v2424 = vsub.f32 %v1389, %v2158
        %v2425 = vsub.f32 %v1836, %v2162
        %v2426 = vsub.f32 %v1838, %v2166
        %v2427 = vmul.f32 %v2171, 1.442695
        %v2428 = vpow.pop %v2427
        %v2429 = vmul.f32 %v2172, 1.442695
        %v2430 = vpow.pop %v2429
        %v2431 = vmul.f32 %v2173, 1.442695
        %v2432 = vpow.pop %v2431
        %v2433 = vmul.f32 %v2174, 1.442695
        %v2434 = vpow.pop %v2433
        %v2435 = vmul.f32 %v2175, 1.442695
        %v2436 = vpow.pop %v2435
        %v2437 = vmul.f32 %v2176, 1.442695
        %v2438 = vpow.pop %v2437
        %v2439 = vmul.f32 %v2177, 1.442695
        %v2440 = vpow.pop %v2439
        %v2441 = vmul.f32 %v2178, 1.442695
        %v2442 = vpow.pop %v2441
        %v2443 = vmul.f32 %v2179, 1.442695
        %v2444 = vpow.pop %v2443
        %v2445 = vmul.f32 %v2180, 1.442695
        %v2446 = vpow.pop %v2445
        %v2447 = vmul.f32 %v2181, 1.442695
        %v2448 = vpow.pop %v2447
        %v2449 = vmul.f32 %v2182, 1.442695
        %v2450 = vpow.pop %v2449
        %v2451 = vmul.f32 %v2183, 1.442695
        %v2452 = vpow.pop %v2451
        %v2453 = vmul.f32 %v2184, 1.442695
        %v2454 = vpow.pop %v2453
        %v2455 = vmul.f32 %v2185, 1.442695
        %v2456 = vpow.pop %v2455
        %v2457 = vmul.f32 %v2186, 1.442695
        %v2458 = vpow.pop %v2457
        %v2459 = vmul.f32 %v2187, 1.442695
        %v2460 = vpow.pop %v2459
        %v2461 = vmul.f32 %v2188, 1.442695
        %v2462 = vpow.pop %v2461
        %v2463 = vmul.f32 %v2189, 1.442695
        %v2464 = vpow.pop %v2463
        %v2465 = vmul.f32 %v2190, 1.442695
        %v2466 = vpow.pop %v2465
        %v2467 = vmul.f32 %v2191, 1.442695
        %v2468 = vpow.pop %v2467
        %v2469 = vmul.f32 %v2192, 1.442695
        %v2470 = vpow.pop %v2469
        %v2471 = vmul.f32 %v2193, 1.442695
        %v2472 = vpow.pop %v2471
        %v2473 = vmul.f32 %v2194, 1.442695
        %v2474 = vpow.pop %v2473
        %v2475 = vmul.f32 %v2195, 1.442695
        %v2476 = vpow.pop %v2475
        %v2477 = vmul.f32 %v2196, 1.442695
        %v2478 = vpow.pop %v2477
        %v2479 = vmul.f32 %v2197, 1.442695
        %v2480 = vpow.pop %v2479
        %v2481 = vmul.f32 %v2198, 1.442695
        %v2482 = vpow.pop %v2481
        %v2483 = vmul.f32 %v2199, 1.442695
        %v2484 = vpow.pop %v2483
        %v2485 = vmul.f32 %v2200, 1.442695
        %v2486 = vpow.pop %v2485
        %v2487 = vmul.f32 %v2201, 1.442695
        %v2488 = vpow.pop %v2487
        %v2489 = vmul.f32 %v2202, 1.442695
        %v2490 = vpow.pop %v2489
        %v2491 = vmul.f32 %v2203, 1.442695
        %v2492 = vpow.pop %v2491
        %v2493 = vmul.f32 %v2204, 1.442695
        %v2494 = vpow.pop %v2493
        %v2495 = vmul.f32 %v2205, 1.442695
        %v2496 = vpow.pop %v2495
        %v2497 = vmul.f32 %v2206, 1.442695
        %v2498 = vpow.pop %v2497
        %v2499 = vmul.f32 %v2207, 1.442695
        %v2500 = vpow.pop %v2499
        %v2501 = vmul.f32 %v2208, 1.442695
        %v2502 = vpow.pop %v2501
        %v2503 = vmul.f32 %v2209, 1.442695
        %v2504 = vpow.pop %v2503
        %v2505 = vmul.f32 %v2210, 1.442695
        %v2506 = vpow.pop %v2505
        %v2507 = vmul.f32 %v2211, 1.442695
        %v2508 = vpow.pop %v2507
        %v2509 = vmul.f32 %v2212, 1.442695
        %v2510 = vpow.pop %v2509
        %v2511 = vmul.f32 %v2213, 1.442695
        %v2512 = vpow.pop %v2511
        %v2513 = vmul.f32 %v2214, 1.442695
        %v2514 = vpow.pop %v2513
        %v2515 = vmul.f32 %v2215, 1.442695
        %v2516 = vpow.pop %v2515
        %v2517 = vmul.f32 %v2216, 1.442695
        %v2518 = vpow.pop %v2517
        %v2519 = vmul.f32 %v2217, 1.442695
        %v2520 = vpow.pop %v2519
        %v2521 = vmul.f32 %v2218, 1.442695
        %v2522 = vpow.pop %v2521
        %v2523 = vmul.f32 %v2219, 1.442695
        %v2524 = vpow.pop %v2523
        %v2525 = vmul.f32 %v2220, 1.442695
        %v2526 = vpow.pop %v2525
        %v2527 = vmul.f32 %v2221, 1.442695
        %v2528 = vpow.pop %v2527
        %v2529 = vmul.f32 %v2222, 1.442695
        %v2530 = vpow.pop %v2529
        %v2531 = vmul.f32 %v2223, 1.442695
        %v2532 = vpow.pop %v2531
        %v2533 = vmul.f32 %v2224, 1.442695
        %v2534 = vpow.pop %v2533
        %v2535 = vmul.f32 %v2225, 1.442695
        %v2536 = vpow.pop %v2535
        %v2537 = vmul.f32 %v2226, 1.442695
        %v2538 = vpow.pop %v2537
        %v2539 = vmul.f32 %v2227, 1.442695
        %v2540 = vpow.pop %v2539
        %v2541 = vmul.f32 %v2228, 1.442695
        %v2542 = vpow.pop %v2541
        %v2543 = vmul.f32 %v2229, 1.442695
        %v2544 = vpow.pop %v2543
        %v2545 = vmul.f32 %v2230, 1.442695
        %v2546 = vpow.pop %v2545
        %v2547 = vmul.f32 %v2231, 1.442695
        %v2548 = vpow.pop %v2547
        %v2549 = vmul.f32 %v2232, 1.442695
        %v2550 = vpow.pop %v2549
        %v2551 = vmul.f32 %v2233, 1.442695
        %v2552 = vpow.pop %v2551
        %v2553 = vmul.f32 %v2234, 1.442695
        %v2554 = vpow.pop %v2553
        %v2555 = vmul.f32 %v2235, 1.442695
        %v2556 = vpow.pop %v2555
        %v2557 = vmul.f32 %v2236, 1.442695
        %v2558 = vpow.pop %v2557
        %v2559 = vmul.f32 %v2237, 1.442695
        %v2560 = vpow.pop %v2559
        %v2561 = vmul.f32 %v2238, 1.442695
        %v2562 = vpow.pop %v2561
        %v2563 = vmul.f32 %v2239, 1.442695
        %v2564 = vpow.pop %v2563
        %v2565 = vmul.f32 %v2240, 1.442695
        %v2566 = vpow.pop %v2565
        %v2567 = vmul.f32 %v2241, 1.442695
        %v2568 = vpow.pop %v2567
        %v2569 = vmul.f32 %v2242, 1.442695
        %v2570 = vpow.pop %v2569
        %v2571 = vmul.f32 %v2243, 1.442695
        %v2572 = vpow.pop %v2571
        %v2573 = vmul.f32 %v2244, 1.442695
        %v2574 = vpow.pop %v2573
        %v2575 = vmul.f32 %v2245, 1.442695
        %v2576 = vpow.pop %v2575
        %v2577 = vmul.f32 %v2246, 1.442695
        %v2578 = vpow.pop %v2577
        %v2579 = vmul.f32 %v2247, 1.442695
        %v2580 = vpow.pop %v2579
        %v2581 = vmul.f32 %v2248, 1.442695
        %v2582 = vpow.pop %v2581
        %v2583 = vmul.f32 %v2249, 1.442695
        %v2584 = vpow.pop %v2583
        %v2585 = vmul.f32 %v2250, 1.442695
        %v2586 = vpow.pop %v2585
        %v2587 = vmul.f32 %v2251, 1.442695
        %v2588 = vpow.pop %v2587
        %v2589 = vmul.f32 %v2252, 1.442695
        %v2590 = vpow.pop %v2589
        %v2591 = vmul.f32 %v2253, 1.442695
        %v2592 = vpow.pop %v2591
        %v2593 = vmul.f32 %v2254, 1.442695
        %v2594 = vpow.pop %v2593
        %v2595 = vmul.f32 %v2255, 1.442695
        %v2596 = vpow.pop %v2595
        %v2597 = vmul.f32 %v2256, 1.442695
        %v2598 = vpow.pop %v2597
        %v2599 = vmul.f32 %v2257, 1.442695
        %v2600 = vpow.pop %v2599
        %v2601 = vmul.f32 %v2258, 1.442695
        %v2602 = vpow.pop %v2601
        %v2603 = vmul.f32 %v2259, 1.442695
        %v2604 = vpow.pop %v2603
        %v2605 = vmul.f32 %v2260, 1.442695
        %v2606 = vpow.pop %v2605
        %v2607 = vmul.f32 %v2261, 1.442695
        %v2608 = vpow.pop %v2607
        %v2609 = vmul.f32 %v2262, 1.442695
        %v2610 = vpow.pop %v2609
        %v2611 = vmul.f32 %v2263, 1.442695
        %v2612 = vpow.pop %v2611
        %v2613 = vmul.f32 %v2264, 1.442695
        %v2614 = vpow.pop %v2613
        %v2615 = vmul.f32 %v2265, 1.442695
        %v2616 = vpow.pop %v2615
        %v2617 = vmul.f32 %v2266, 1.442695
        %v2618 = vpow.pop %v2617
        %v2619 = vmul.f32 %v2267, 1.442695
        %v2620 = vpow.pop %v2619
        %v2621 = vmul.f32 %v2268, 1.442695
        %v2622 = vpow.pop %v2621
        %v2623 = vmul.f32 %v2269, 1.442695
        %v2624 = vpow.pop %v2623
        %v2625 = vmul.f32 %v2270, 1.442695
        %v2626 = vpow.pop %v2625
        %v2627 = vmul.f32 %v2271, 1.442695
        %v2628 = vpow.pop %v2627
        %v2629 = vmul.f32 %v2272, 1.442695
        %v2630 = vpow.pop %v2629
        %v2631 = vmul.f32 %v2273, 1.442695
        %v2632 = vpow.pop %v2631
        %v2633 = vmul.f32 %v2274, 1.442695
        %v2634 = vpow.pop %v2633
        %v2635 = vmul.f32 %v2275, 1.442695
        %v2636 = vpow.pop %v2635
        %v2637 = vmul.f32 %v2276, 1.442695
        %v2638 = vpow.pop %v2637
        %v2639 = vmul.f32 %v2277, 1.442695
        %v2640 = vpow.pop %v2639
        %v2641 = vmul.f32 %v2278, 1.442695
        %v2642 = vpow.pop %v2641
        %v2643 = vmul.f32 %v2279, 1.442695
        %v2644 = vpow.pop %v2643
        %v2645 = vmul.f32 %v2280, 1.442695
        %v2646 = vpow.pop %v2645
        %v2647 = vmul.f32 %v2281, 1.442695
        %v2648 = vpow.pop %v2647
        %v2649 = vmul.f32 %v2282, 1.442695
        %v2650 = vpow.pop %v2649
        %v2651 = vmul.f32 %v2283, 1.442695
        %v2652 = vpow.pop %v2651
        %v2653 = vmul.f32 %v2284, 1.442695
        %v2654 = vpow.pop %v2653
        %v2655 = vmul.f32 %v2285, 1.442695
        %v2656 = vpow.pop %v2655
        %v2657 = vmul.f32 %v2286, 1.442695
        %v2658 = vpow.pop %v2657
        %v2659 = vmul.f32 %v2287, 1.442695
        %v2660 = vpow.pop %v2659
        %v2661 = vmul.f32 %v2288, 1.442695
        %v2662 = vpow.pop %v2661
        %v2663 = vmul.f32 %v2289, 1.442695
        %v2664 = vpow.pop %v2663
        %v2665 = vmul.f32 %v2290, 1.442695
        %v2666 = vpow.pop %v2665
        %v2667 = vmul.f32 %v2291, 1.442695
        %v2668 = vpow.pop %v2667
        %v2669 = vmul.f32 %v2292, 1.442695
        %v2670 = vpow.pop %v2669
        %v2671 = vmul.f32 %v2293, 1.442695
        %v2672 = vpow.pop %v2671
        %v2673 = vmul.f32 %v2294, 1.442695
        %v2674 = vpow.pop %v2673
        %v2675 = vmul.f32 %v2295, 1.442695
        %v2676 = vpow.pop %v2675
        %v2677 = vmul.f32 %v2296, 1.442695
        %v2678 = vpow.pop %v2677
        %v2679 = vmul.f32 %v2297, 1.442695
        %v2680 = vpow.pop %v2679
        %v2681 = vmul.f32 %v2298, 1.442695
        %v2682 = vpow.pop %v2681
        %v2683 = vmul.f32 %v2299, 1.442695
        %v2684 = vpow.pop %v2683
        %v2685 = vmul.f32 %v2300, 1.442695
        %v2686 = vpow.pop %v2685
        %v2687 = vmul.f32 %v2301, 1.442695
        %v2688 = vpow.pop %v2687
        %v2689 = vmul.f32 %v2302, 1.442695
        %v2690 = vpow.pop %v2689
        %v2691 = vmul.f32 %v2303, 1.442695
        %v2692 = vpow.pop %v2691
        %v2693 = vmul.f32 %v2304, 1.442695
        %v2694 = vpow.pop %v2693
        %v2695 = vmul.f32 %v2305, 1.442695
        %v2696 = vpow.pop %v2695
        %v2697 = vmul.f32 %v2306, 1.442695
        %v2698 = vpow.pop %v2697
        %v2699 = vmul.f32 %v2307, 1.442695
        %v2700 = vpow.pop %v2699
        %v2701 = vmul.f32 %v2308, 1.442695
        %v2702 = vpow.pop %v2701
        %v2703 = vmul.f32 %v2309, 1.442695
        %v2704 = vpow.pop %v2703
        %v2705 = vmul.f32 %v2310, 1.442695
        %v2706 = vpow.pop %v2705
        %v2707 = vmul.f32 %v2311, 1.442695
        %v2708 = vpow.pop %v2707
        %v2709 = vmul.f32 %v2312, 1.442695
        %v2710 = vpow.pop %v2709
        %v2711 = vmul.f32 %v2313, 1.442695
        %v2712 = vpow.pop %v2711
        %v2713 = vmul.f32 %v2314, 1.442695
        %v2714 = vpow.pop %v2713
        %v2715 = vmul.f32 %v2315, 1.442695
        %v2716 = vpow.pop %v2715
        %v2717 = vmul.f32 %v2316, 1.442695
        %v2718 = vpow.pop %v2717
        %v2719 = vmul.f32 %v2317, 1.442695
        %v2720 = vpow.pop %v2719
        %v2721 = vmul.f32 %v2318, 1.442695
        %v2722 = vpow.pop %v2721
        %v2723 = vmul.f32 %v2319, 1.442695
        %v2724 = vpow.pop %v2723
        %v2725 = vmul.f32 %v2320, 1.442695
        %v2726 = vpow.pop %v2725
        %v2727 = vmul.f32 %v2321, 1.442695
        %v2728 = vpow.pop %v2727
        %v2729 = vmul.f32 %v2322, 1.442695
        %v2730 = vpow.pop %v2729
        %v2731 = vmul.f32 %v2323, 1.442695
        %v2732 = vpow.pop %v2731
        %v2733 = vmul.f32 %v2324, 1.442695
        %v2734 = vpow.pop %v2733
        %v2735 = vmul.f32 %v2325, 1.442695
        %v2736 = vpow.pop %v2735
        %v2737 = vmul.f32 %v2326, 1.442695
        %v2738 = vpow.pop %v2737
        %v2739 = vmul.f32 %v2327, 1.442695
        %v2740 = vpow.pop %v2739
        %v2741 = vmul.f32 %v2328, 1.442695
        %v2742 = vpow.pop %v2741
        %v2743 = vmul.f32 %v2329, 1.442695
        %v2744 = vpow.pop %v2743
        %v2745 = vmul.f32 %v2330, 1.442695
        %v2746 = vpow.pop %v2745
        %v2747 = vmul.f32 %v2331, 1.442695
        %v2748 = vpow.pop %v2747
        %v2749 = vmul.f32 %v2332, 1.442695
        %v2750 = vpow.pop %v2749
        %v2751 = vmul.f32 %v2333, 1.442695
        %v2752 = vpow.pop %v2751
        %v2753 = vmul.f32 %v2334, 1.442695
        %v2754 = vpow.pop %v2753
        %v2755 = vmul.f32 %v2335, 1.442695
        %v2756 = vpow.pop %v2755
        %v2757 = vmul.f32 %v2336, 1.442695
        %v2758 = vpow.pop %v2757
        %v2759 = vmul.f32 %v2337, 1.442695
        %v2760 = vpow.pop %v2759
        %v2761 = vmul.f32 %v2338, 1.442695
        %v2762 = vpow.pop %v2761
        %v2763 = vmul.f32 %v2339, 1.442695
        %v2764 = vpow.pop %v2763
        %v2765 = vmul.f32 %v2340, 1.442695
        %v2766 = vpow.pop %v2765
        %v2767 = vmul.f32 %v2341, 1.442695
        %v2768 = vpow.pop %v2767
        %v2769 = vmul.f32 %v2342, 1.442695
        %v2770 = vpow.pop %v2769
        %v2771 = vmul.f32 %v2343, 1.442695
        %v2772 = vpow.pop %v2771
        %v2773 = vmul.f32 %v2344, 1.442695
        %v2774 = vpow.pop %v2773
        %v2775 = vmul.f32 %v2345, 1.442695
        %v2776 = vpow.pop %v2775
        %v2777 = vmul.f32 %v2346, 1.442695
        %v2778 = vpow.pop %v2777
        %v2779 = vmul.f32 %v2347, 1.442695
        %v2780 = vpow.pop %v2779
        %v2781 = vmul.f32 %v2348, 1.442695
        %v2782 = vpow.pop %v2781
        %v2783 = vmul.f32 %v2349, 1.442695
        %v2784 = vpow.pop %v2783
        %v2785 = vmul.f32 %v2350, 1.442695
        %v2786 = vpow.pop %v2785
        %v2787 = vmul.f32 %v2351, 1.442695
        %v2788 = vpow.pop %v2787
        %v2789 = vmul.f32 %v2352, 1.442695
        %v2790 = vpow.pop %v2789
        %v2791 = vmul.f32 %v2353, 1.442695
        %v2792 = vpow.pop %v2791
        %v2793 = vmul.f32 %v2354, 1.442695
        %v2794 = vpow.pop %v2793
        %v2795 = vmul.f32 %v2355, 1.442695
        %v2796 = vpow.pop %v2795
        %v2797 = vmul.f32 %v2356, 1.442695
        %v2798 = vpow.pop %v2797
        %v2799 = vmul.f32 %v2357, 1.442695
        %v2800 = vpow.pop %v2799
        %v2801 = vmul.f32 %v2358, 1.442695
        %v2802 = vpow.pop %v2801
        %v2803 = vmul.f32 %v2359, 1.442695
        %v2804 = vpow.pop %v2803
        %v2805 = vmul.f32 %v2360, 1.442695
        %v2806 = vpow.pop %v2805
        %v2807 = vmul.f32 %v2361, 1.442695
        %v2808 = vpow.pop %v2807
        %v2809 = vmul.f32 %v2362, 1.442695
        %v2810 = vpow.pop %v2809
        %v2811 = vmul.f32 %v2363, 1.442695
        %v2812 = vpow.pop %v2811
        %v2813 = vmul.f32 %v2364, 1.442695
        %v2814 = vpow.pop %v2813
        %v2815 = vmul.f32 %v2365, 1.442695
        %v2816 = vpow.pop %v2815
        %v2817 = vmul.f32 %v2366, 1.442695
        %v2818 = vpow.pop %v2817
        %v2819 = vmul.f32 %v2367, 1.442695
        %v2820 = vpow.pop %v2819
        %v2821 = vmul.f32 %v2368, 1.442695
        %v2822 = vpow.pop %v2821
        %v2823 = vmul.f32 %v2369, 1.442695
        %v2824 = vpow.pop %v2823
        %v2825 = vmul.f32 %v2370, 1.442695
        %v2826 = vpow.pop %v2825
        %v2827 = vmul.f32 %v2371, 1.442695
        %v2828 = vpow.pop %v2827
        %v2829 = vmul.f32 %v2372, 1.442695
        %v2830 = vpow.pop %v2829
        %v2831 = vmul.f32 %v2373, 1.442695
        %v2832 = vpow.pop %v2831
        %v2833 = vmul.f32 %v2374, 1.442695
        %v2834 = vpow.pop %v2833
        %v2835 = vmul.f32 %v2375, 1.442695
        %v2836 = vpow.pop %v2835
        %v2837 = vmul.f32 %v2376, 1.442695
        %v2838 = vpow.pop %v2837
        %v2839 = vmul.f32 %v2377, 1.442695
        %v2840 = vpow.pop %v2839
        %v2841 = vmul.f32 %v2378, 1.442695
        %v2842 = vpow.pop %v2841
        %v2843 = vmul.f32 %v2379, 1.442695
        %v2844 = vpow.pop %v2843
        %v2845 = vmul.f32 %v2380, 1.442695
        %v2846 = vpow.pop %v2845
        %v2847 = vmul.f32 %v2381, 1.442695
        %v2848 = vpow.pop %v2847
        %v2849 = vmul.f32 %v2382, 1.442695
        %v2850 = vpow.pop %v2849
        %v2851 = vmul.f32 %v2383, 1.442695
        %v2852 = vpow.pop %v2851
        %v2853 = vmul.f32 %v2384, 1.442695
        %v2854 = vpow.pop %v2853
        %v2855 = vmul.f32 %v2385, 1.442695
        %v2856 = vpow.pop %v2855
        %v2857 = vmul.f32 %v2386, 1.442695
        %v2858 = vpow.pop %v2857
        %v2859 = vmul.f32 %v2387, 1.442695
        %v2860 = vpow.pop %v2859
        %v2861 = vmul.f32 %v2388, 1.442695
        %v2862 = vpow.pop %v2861
        %v2863 = vmul.f32 %v2389, 1.442695
        %v2864 = vpow.pop %v2863
        %v2865 = vmul.f32 %v2390, 1.442695
        %v2866 = vpow.pop %v2865
        %v2867 = vmul.f32 %v2391, 1.442695
        %v2868 = vpow.pop %v2867
        %v2869 = vmul.f32 %v2392, 1.442695
        %v2870 = vpow.pop %v2869
        %v2871 = vmul.f32 %v2393, 1.442695
        %v2872 = vpow.pop %v2871
        %v2873 = vmul.f32 %v2394, 1.442695
        %v2874 = vpow.pop %v2873
        %v2875 = vmul.f32 %v2395, 1.442695
        %v2876 = vpow.pop %v2875
        %v2877 = vmul.f32 %v2396, 1.442695
        %v2878 = vpow.pop %v2877
        %v2879 = vmul.f32 %v2397, 1.442695
        %v2880 = vpow.pop %v2879
        %v2881 = vmul.f32 %v2398, 1.442695
        %v2882 = vpow.pop %v2881
        %v2883 = vmul.f32 %v2399, 1.442695
        %v2884 = vpow.pop %v2883
        %v2885 = vmul.f32 %v2400, 1.442695
        %v2886 = vpow.pop %v2885
        %v2887 = vmul.f32 %v2401, 1.442695
        %v2888 = vpow.pop %v2887
        %v2889 = vmul.f32 %v2402, 1.442695
        %v2890 = vpow.pop %v2889
        %v2891 = vmul.f32 %v2403, 1.442695
        %v2892 = vpow.pop %v2891
        %v2893 = vmul.f32 %v2404, 1.442695
        %v2894 = vpow.pop %v2893
        %v2895 = vmul.f32 %v2405, 1.442695
        %v2896 = vpow.pop %v2895
        %v2897 = vmul.f32 %v2406, 1.442695
        %v2898 = vpow.pop %v2897
        %v2899 = vmul.f32 %v2407, 1.442695
        %v2900 = vpow.pop %v2899
        %v2901 = vmul.f32 %v2408, 1.442695
        %v2902 = vpow.pop %v2901
        %v2903 = vmul.f32 %v2409, 1.442695
        %v2904 = vpow.pop %v2903
        %v2905 = vmul.f32 %v2410, 1.442695
        %v2906 = vpow.pop %v2905
        %v2907 = vmul.f32 %v2411, 1.442695
        %v2908 = vpow.pop %v2907
        %v2909 = vmul.f32 %v2412, 1.442695
        %v2910 = vpow.pop %v2909
        %v2911 = vmul.f32 %v2413, 1.442695
        %v2912 = vpow.pop %v2911
        %v2913 = vmul.f32 %v2414, 1.442695
        %v2914 = vpow.pop %v2913
        %v2915 = vmul.f32 %v2415, 1.442695
        %v2916 = vpow.pop %v2915
        %v2917 = vmul.f32 %v2416, 1.442695
        %v2918 = vpow.pop %v2917
        %v2919 = vmul.f32 %v2417, 1.442695
        %v2920 = vpow.pop %v2919
        %v2921 = vmul.f32 %v2418, 1.442695
        %v2922 = vpow.pop %v2921
        %v2923 = vmul.f32 %v2419, 1.442695
        %v2924 = vpow.pop %v2923
        %v2925 = vmul.f32 %v2420, 1.442695
        %v2926 = vpow.pop %v2925
        %v2927 = vmul.f32 %v2421, 1.442695
        %v2928 = vpow.pop %v2927
        %v2929 = vmul.f32 %v2422, 1.442695
        %v2930 = vpow.pop %v2929
        %v2931 = vmul.f32 %v2423, 1.442695
        %v2932 = vpow.pop %v2931
        %v2933 = vmul.f32 %v2424, 1.442695
        %v2934 = vpow.pop %v2933
        %v2935 = vmul.f32 %v2425, 1.442695
        %v2936 = vpow.pop %v2935
        %v2937 = vmul.f32 %v2426, 1.442695
        %v2938 = vpow.pop %v2937
        %2939 = vmatprep.subr.mxu0 %v2550
        %2940 = vmatpush1.msra.mxu0 %v2548
        %2941 = vmatprep.subr.mxu0 %v2542
        %2942 = vmatpush1.msra.mxu0 %v2540
        %2943 = vmatprep.subr.mxu0 %v2534
        %2944 = vmatpush1.msra.mxu0 %v2532
        %2945 = vmatprep.subr.mxu0 %v2526
        %2946 = vmatpush1.msra.mxu0 %v2524
        %2947 = vmatprep.subr.mxu0 %v2518
        %2948 = vmatpush1.msra.mxu0 %v2516
        %2949 = vmatprep.subr.mxu0 %v2510
        %2950 = vmatpush1.msra.mxu0 %v2508
        %2951 = vmatprep.subr.mxu0 %v2502
        %2952 = vmatpush1.msra.mxu0 %v2500
        %2953 = vmatprep.subr.mxu0 %v2494
        %2954 = vmatpush1.msra.mxu0 %v2492
        %2955 = vmatprep.subr.mxu0 %v2486
        %2956 = vmatpush1.msra.mxu0 %v2484
        %2957 = vmatprep.subr.mxu0 %v2478
        %2958 = vmatpush1.msra.mxu0 %v2476
        %2959 = vmatprep.subr.mxu0 %v2470
        %2960 = vmatpush1.msra.mxu0 %v2468
        %2961 = vmatprep.subr.mxu0 %v2462
        %2962 = vmatpush1.msra.mxu0 %v2460
        %2963 = vmatprep.subr.mxu0 %v2454
        %2964 = vmatpush1.msra.mxu0 %v2452
        %2965 = vmatprep.subr.mxu0 %v2446
        %2966 = vmatpush1.msra.mxu0 %v2444
        %2967 = vmatprep.subr.mxu0 %v2438
        %2968 = vmatpush1.msra.mxu0 %v2436
        %2969 = vmatprep.subr.mxu0 %v2430
        %2970 = vmatpush1.msra.mxu0 %v2428
        %2971 = vmatprep.subr.mxu0 %v2678
        %2972 = vmatpush2.msra.mxu0 %v2676
        %2973 = vmatprep.subr.mxu0 %v2670
        %2974 = vmatpush2.msra.mxu0 %v2668
        %2975 = vmatprep.subr.mxu0 %v2662
        %2976 = vmatpush2.msra.mxu0 %v2660
        %2977 = vmatprep.subr.mxu0 %v2654
        %2978 = vmatpush2.msra.mxu0 %v2652
        %2979 = vmatprep.subr.mxu0 %v2646
        %2980 = vmatpush2.msra.mxu0 %v2644
        %2981 = vmatprep.subr.mxu0 %v2638
        %2982 = vmatpush2.msra.mxu0 %v2636
        %2983 = vmatprep.subr.mxu0 %v2630
        %2984 = vmatpush2.msra.mxu0 %v2628
        %2985 = vmatprep.subr.mxu0 %v2622
        %2986 = vmatpush2.msra.mxu0 %v2620
        %2987 = vmatprep.subr.mxu0 %v2614
        %2988 = vmatpush2.msra.mxu0 %v2612
        %2989 = vmatprep.subr.mxu0 %v2606
        %2990 = vmatpush2.msra.mxu0 %v2604
        %2991 = vmatprep.subr.mxu0 %v2598
        %2992 = vmatpush2.msra.mxu0 %v2596
        %2993 = vmatprep.subr.mxu0 %v2590
        %2994 = vmatpush2.msra.mxu0 %v2588
        %2995 = vmatprep.subr.mxu0 %v2582
        %2996 = vmatpush2.msra.mxu0 %v2580
        %2997 = vmatprep.subr.mxu0 %v2574
        %2998 = vmatpush2.msra.mxu0 %v2572
        %2999 = vmatprep.subr.mxu0 %v2566
        %3000 = vmatpush2.msra.mxu0 %v2564
        %3001 = vmatprep.subr.mxu0 %v2558
        %3002 = vmatpush2.msra.mxu0 %v2556
        %3003 = vmatprep.mubr.f32.mxu0 %v606
        %3004 = vmatmul.mubr.f32.gmra.mxu0 %v605
        %v3005 = vpop.f32.mrf.mxu0
        %v3006 = vadd.f32 0.0, %v3005
        %v3007 = vpop.f32.mrf.mxu0
        %v3008 = vadd.f32 0.0, %v3007
        %3009 = vmatprep.mubr.f32.mxu0 %v610
        %3010 = vmatmul.mubr.f32.gmra.mxu0 %v609
        %v3011 = vpop.f32.mrf.mxu0
        %v3012 = vadd.f32 0.0, %v3011
        %v3013 = vpop.f32.mrf.mxu0
        %v3014 = vadd.f32 0.0, %v3013
        %3015 = vmatprep.mubr.f32.mxu0 %v614
        %3016 = vmatmul.mubr.f32.gmra.mxu0 %v613
        %v3017 = vpop.f32.mrf.mxu0
        %v3018 = vadd.f32 0.0, %v3017
        %v3019 = vpop.f32.mrf.mxu0
        %v3020 = vadd.f32 0.0, %v3019
        %3021 = vdwg.mxu0
        %3022 = vmatprep.subr.mxu0 %v2806
        %3023 = vmatpush1.msra.mxu0 %v2804
        %3024 = vmatprep.subr.mxu0 %v2798
        %3025 = vmatpush1.msra.mxu0 %v2796
        %3026 = vmatprep.subr.mxu0 %v2790
        %3027 = vmatpush1.msra.mxu0 %v2788
        %3028 = vmatprep.subr.mxu0 %v2782
        %3029 = vmatpush1.msra.mxu0 %v2780
        %3030 = vmatprep.subr.mxu0 %v2774
        %3031 = vmatpush1.msra.mxu0 %v2772
        %3032 = vmatprep.subr.mxu0 %v2766
        %3033 = vmatpush1.msra.mxu0 %v2764
        %3034 = vmatprep.subr.mxu0 %v2758
        %3035 = vmatpush1.msra.mxu0 %v2756
        %3036 = vmatprep.subr.mxu0 %v2750
        %3037 = vmatpush1.msra.mxu0 %v2748
        %3038 = vmatprep.subr.mxu0 %v2742
        %3039 = vmatpush1.msra.mxu0 %v2740
        %3040 = vmatprep.subr.mxu0 %v2734
        %3041 = vmatpush1.msra.mxu0 %v2732
        %3042 = vmatprep.subr.mxu0 %v2726
        %3043 = vmatpush1.msra.mxu0 %v2724
        %3044 = vmatprep.subr.mxu0 %v2718
        %3045 = vmatpush1.msra.mxu0 %v2716
        %3046 = vmatprep.subr.mxu0 %v2710
        %3047 = vmatpush1.msra.mxu0 %v2708
        %3048 = vmatprep.subr.mxu0 %v2702
        %3049 = vmatpush1.msra.mxu0 %v2700
        %3050 = vmatprep.subr.mxu0 %v2694
        %3051 = vmatpush1.msra.mxu0 %v2692
        %3052 = vmatprep.subr.mxu0 %v2686
        %3053 = vmatpush1.msra.mxu0 %v2684
        %3054 = vmatprep.subr.mxu0 %v2934
        %3055 = vmatpush2.msra.mxu0 %v2932
        %3056 = vmatprep.subr.mxu0 %v2926
        %3057 = vmatpush2.msra.mxu0 %v2924
        %3058 = vmatprep.subr.mxu0 %v2918
        %3059 = vmatpush2.msra.mxu0 %v2916
        %3060 = vmatprep.subr.mxu0 %v2910
        %3061 = vmatpush2.msra.mxu0 %v2908
        %3062 = vmatprep.subr.mxu0 %v2902
        %3063 = vmatpush2.msra.mxu0 %v2900
        %3064 = vmatprep.subr.mxu0 %v2894
        %3065 = vmatpush2.msra.mxu0 %v2892
        %3066 = vmatprep.subr.mxu0 %v2886
        %3067 = vmatpush2.msra.mxu0 %v2884
        %3068 = vmatprep.subr.mxu0 %v2878
        %3069 = vmatpush2.msra.mxu0 %v2876
        %3070 = vmatprep.subr.mxu0 %v2870
        %3071 = vmatpush2.msra.mxu0 %v2868
        %3072 = vmatprep.subr.mxu0 %v2862
        %3073 = vmatpush2.msra.mxu0 %v2860
        %3074 = vmatprep.subr.mxu0 %v2854
        %3075 = vmatpush2.msra.mxu0 %v2852
        %3076 = vmatprep.subr.mxu0 %v2846
        %3077 = vmatpush2.msra.mxu0 %v2844
        %3078 = vmatprep.subr.mxu0 %v2838
        %3079 = vmatpush2.msra.mxu0 %v2836
        %3080 = vmatprep.subr.mxu0 %v2830
        %3081 = vmatpush2.msra.mxu0 %v2828
        %3082 = vmatprep.subr.mxu0 %v2822
        %3083 = vmatpush2.msra.mxu0 %v2820
        %3084 = vmatprep.subr.mxu0 %v2814
        %3085 = vmatpush2.msra.mxu0 %v2812
        %3086 = vmatprep.mubr.f32.mxu0 %v608
        %3087 = vmatmul.mubr.f32.gmra.mxu0 %v607
        %v3088 = vpop.f32.mrf.mxu0
        %v3089 = vadd.f32 %v3006, %v3088
        %v3090 = vpop.f32.mrf.mxu0
        %v3091 = vadd.f32 %v3008, %v3090
        %3092 = vmatprep.mubr.f32.mxu0 %v612
        %3093 = vmatmul.mubr.f32.gmra.mxu0 %v611
        %v3094 = vpop.f32.mrf.mxu0
        %v3095 = vadd.f32 %v3012, %v3094
        %v3096 = vpop.f32.mrf.mxu0
        %v3097 = vadd.f32 %v3014, %v3096
        %3098 = vmatprep.mubr.f32.mxu0 %v616
        %3099 = vmatmul.mubr.f32.gmra.mxu0 %v615
        %v3100 = vpop.f32.mrf.mxu0
        %v3101 = vadd.f32 %v3018, %v3100
        %v3102 = vpop.f32.mrf.mxu0
        %v3103 = vadd.f32 %v3020, %v3102
        %3104 = vdwg.mxu0
        %3105 = vmatprep.subr.mxu0 %v2554
        %3106 = vmatpush1.msra.mxu0 %v2552
        %3107 = vmatprep.subr.mxu0 %v2546
        %3108 = vmatpush1.msra.mxu0 %v2544
        %3109 = vmatprep.subr.mxu0 %v2538
        %3110 = vmatpush1.msra.mxu0 %v2536
        %3111 = vmatprep.subr.mxu0 %v2530
        %3112 = vmatpush1.msra.mxu0 %v2528
        %3113 = vmatprep.subr.mxu0 %v2522
        %3114 = vmatpush1.msra.mxu0 %v2520
        %3115 = vmatprep.subr.mxu0 %v2514
        %3116 = vmatpush1.msra.mxu0 %v2512
        %3117 = vmatprep.subr.mxu0 %v2506
        %3118 = vmatpush1.msra.mxu0 %v2504
        %3119 = vmatprep.subr.mxu0 %v2498
        %3120 = vmatpush1.msra.mxu0 %v2496
        %3121 = vmatprep.subr.mxu0 %v2490
        %3122 = vmatpush1.msra.mxu0 %v2488
        %3123 = vmatprep.subr.mxu0 %v2482
        %3124 = vmatpush1.msra.mxu0 %v2480
        %3125 = vmatprep.subr.mxu0 %v2474
        %3126 = vmatpush1.msra.mxu0 %v2472
        %3127 = vmatprep.subr.mxu0 %v2466
        %3128 = vmatpush1.msra.mxu0 %v2464
        %3129 = vmatprep.subr.mxu0 %v2458
        %3130 = vmatpush1.msra.mxu0 %v2456
        %3131 = vmatprep.subr.mxu0 %v2450
        %3132 = vmatpush1.msra.mxu0 %v2448
        %3133 = vmatprep.subr.mxu0 %v2442
        %3134 = vmatpush1.msra.mxu0 %v2440
        %3135 = vmatprep.subr.mxu0 %v2434
        %3136 = vmatpush1.msra.mxu0 %v2432
        %3137 = vmatprep.subr.mxu0 %v2682
        %3138 = vmatpush2.msra.mxu0 %v2680
        %3139 = vmatprep.subr.mxu0 %v2674
        %3140 = vmatpush2.msra.mxu0 %v2672
        %3141 = vmatprep.subr.mxu0 %v2666
        %3142 = vmatpush2.msra.mxu0 %v2664
        %3143 = vmatprep.subr.mxu0 %v2658
        %3144 = vmatpush2.msra.mxu0 %v2656
        %3145 = vmatprep.subr.mxu0 %v2650
        %3146 = vmatpush2.msra.mxu0 %v2648
        %3147 = vmatprep.subr.mxu0 %v2642
        %3148 = vmatpush2.msra.mxu0 %v2640
        %3149 = vmatprep.subr.mxu0 %v2634
        %3150 = vmatpush2.msra.mxu0 %v2632
        %3151 = vmatprep.subr.mxu0 %v2626
        %3152 = vmatpush2.msra.mxu0 %v2624
        %3153 = vmatprep.subr.mxu0 %v2618
        %3154 = vmatpush2.msra.mxu0 %v2616
        %3155 = vmatprep.subr.mxu0 %v2610
        %3156 = vmatpush2.msra.mxu0 %v2608
        %3157 = vmatprep.subr.mxu0 %v2602
        %3158 = vmatpush2.msra.mxu0 %v2600
        %3159 = vmatprep.subr.mxu0 %v2594
        %3160 = vmatpush2.msra.mxu0 %v2592
        %3161 = vmatprep.subr.mxu0 %v2586
        %3162 = vmatpush2.msra.mxu0 %v2584
        %3163 = vmatprep.subr.mxu0 %v2578
        %3164 = vmatpush2.msra.mxu0 %v2576
        %3165 = vmatprep.subr.mxu0 %v2570
        %3166 = vmatpush2.msra.mxu0 %v2568
        %3167 = vmatprep.subr.mxu0 %v2562
        %3168 = vmatpush2.msra.mxu0 %v2560
        %3169 = vmatprep.mubr.f32.mxu0 %v606
        %3170 = vmatmul.mubr.f32.gmra.mxu0 %v605
        %v3171 = vpop.f32.mrf.mxu0
        %v3172 = vadd.f32 0.0, %v3171
        %v3173 = vpop.f32.mrf.mxu0
        %v3174 = vadd.f32 0.0, %v3173
        %3175 = vmatprep.mubr.f32.mxu0 %v610
        %3176 = vmatmul.mubr.f32.gmra.mxu0 %v609
        %v3177 = vpop.f32.mrf.mxu0
        %v3178 = vadd.f32 0.0, %v3177
        %v3179 = vpop.f32.mrf.mxu0
        %v3180 = vadd.f32 0.0, %v3179
        %3181 = vmatprep.mubr.f32.mxu0 %v614
        %3182 = vmatmul.mubr.f32.gmra.mxu0 %v613
        %v3183 = vpop.f32.mrf.mxu0
        %v3184 = vadd.f32 0.0, %v3183
        %v3185 = vpop.f32.mrf.mxu0
        %v3186 = vadd.f32 0.0, %v3185
        %3187 = vdwg.mxu0
        %3188 = vmatprep.subr.mxu0 %v2810
        %3189 = vmatpush1.msra.mxu0 %v2808
        %3190 = vmatprep.subr.mxu0 %v2802
        %3191 = vmatpush1.msra.mxu0 %v2800
        %3192 = vmatprep.subr.mxu0 %v2794
        %3193 = vmatpush1.msra.mxu0 %v2792
        %3194 = vmatprep.subr.mxu0 %v2786
        %3195 = vmatpush1.msra.mxu0 %v2784
        %3196 = vmatprep.subr.mxu0 %v2778
        %3197 = vmatpush1.msra.mxu0 %v2776
        %3198 = vmatprep.subr.mxu0 %v2770
        %3199 = vmatpush1.msra.mxu0 %v2768
        %3200 = vmatprep.subr.mxu0 %v2762
        %3201 = vmatpush1.msra.mxu0 %v2760
        %3202 = vmatprep.subr.mxu0 %v2754
        %3203 = vmatpush1.msra.mxu0 %v2752
        %3204 = vmatprep.subr.mxu0 %v2746
        %3205 = vmatpush1.msra.mxu0 %v2744
        %3206 = vmatprep.subr.mxu0 %v2738
        %3207 = vmatpush1.msra.mxu0 %v2736
        %3208 = vmatprep.subr.mxu0 %v2730
        %3209 = vmatpush1.msra.mxu0 %v2728
        %3210 = vmatprep.subr.mxu0 %v2722
        %3211 = vmatpush1.msra.mxu0 %v2720
        %3212 = vmatprep.subr.mxu0 %v2714
        %3213 = vmatpush1.msra.mxu0 %v2712
        %3214 = vmatprep.subr.mxu0 %v2706
        %3215 = vmatpush1.msra.mxu0 %v2704
        %3216 = vmatprep.subr.mxu0 %v2698
        %3217 = vmatpush1.msra.mxu0 %v2696
        %3218 = vmatprep.subr.mxu0 %v2690
        %3219 = vmatpush1.msra.mxu0 %v2688
        %3220 = vmatprep.subr.mxu0 %v2938
        %3221 = vmatpush2.msra.mxu0 %v2936
        %3222 = vmatprep.subr.mxu0 %v2930
        %3223 = vmatpush2.msra.mxu0 %v2928
        %3224 = vmatprep.subr.mxu0 %v2922
        %3225 = vmatpush2.msra.mxu0 %v2920
        %3226 = vmatprep.subr.mxu0 %v2914
        %3227 = vmatpush2.msra.mxu0 %v2912
        %3228 = vmatprep.subr.mxu0 %v2906
        %3229 = vmatpush2.msra.mxu0 %v2904
        %3230 = vmatprep.subr.mxu0 %v2898
        %3231 = vmatpush2.msra.mxu0 %v2896
        %3232 = vmatprep.subr.mxu0 %v2890
        %3233 = vmatpush2.msra.mxu0 %v2888
        %3234 = vmatprep.subr.mxu0 %v2882
        %3235 = vmatpush2.msra.mxu0 %v2880
        %3236 = vmatprep.subr.mxu0 %v2874
        %3237 = vmatpush2.msra.mxu0 %v2872
        %3238 = vmatprep.subr.mxu0 %v2866
        %3239 = vmatpush2.msra.mxu0 %v2864
        %3240 = vmatprep.subr.mxu0 %v2858
        %3241 = vmatpush2.msra.mxu0 %v2856
        %3242 = vmatprep.subr.mxu0 %v2850
        %3243 = vmatpush2.msra.mxu0 %v2848
        %3244 = vmatprep.subr.mxu0 %v2842
        %3245 = vmatpush2.msra.mxu0 %v2840
        %3246 = vmatprep.subr.mxu0 %v2834
        %3247 = vmatpush2.msra.mxu0 %v2832
        %3248 = vmatprep.subr.mxu0 %v2826
        %3249 = vmatpush2.msra.mxu0 %v2824
        %3250 = vmatprep.subr.mxu0 %v2818
        %3251 = vmatpush2.msra.mxu0 %v2816
        %3252 = vmatprep.mubr.f32.mxu0 %v608
        %3253 = vmatmul.mubr.f32.gmra.mxu0 %v607
        %v3254 = vpop.f32.mrf.mxu0
        %v3255 = vadd.f32 %v3172, %v3254
        %v3256 = vpop.f32.mrf.mxu0
        %v3257 = vadd.f32 %v3174, %v3256
        %3258 = vmatprep.mubr.f32.mxu0 %v612
        %3259 = vmatmul.mubr.f32.gmra.mxu0 %v611
        %v3260 = vpop.f32.mrf.mxu0
        %v3261 = vadd.f32 %v3178, %v3260
        %v3262 = vpop.f32.mrf.mxu0
        %v3263 = vadd.f32 %v3180, %v3262
        %3264 = vmatprep.mubr.f32.mxu0 %v616
        %3265 = vmatmul.mubr.f32.gmra.mxu0 %v615
        %v3266 = vpop.f32.mrf.mxu0
        %v3267 = vadd.f32 %v3184, %v3266
        %v3268 = vpop.f32.mrf.mxu0
        %v3269 = vadd.f32 %v3186, %v3268
        %3270 = vdwg.mxu0
        %v3271 = vld [vmem:[#allocation4] sm:$0xff]
        %v3272 = vld [vmem:[#allocation4 + $0x8] sm:$0xff]
        %v3273 = vld [vmem:[#allocation4 + $0x10] sm:$0xff]
        %v3274 = vld [vmem:[#allocation4 + $0x18] sm:$0xff]
        %v3275 = vld [vmem:[#allocation4 + $0x20] sm:$0xff]
        %v3276 = vld [vmem:[#allocation4 + $0x28] sm:$0xff]
        %v3277 = vld [vmem:[#allocation4 + $0x30] sm:$0xff]
        %v3278 = vld [vmem:[#allocation4 + $0x38] sm:$0xff]
        %v3279 = vld [vmem:[#allocation4 + $0x40] sm:$0x1]
        %v3280 = vld [vmem:[#allocation4 + $0x48] sm:$0x1]
        %v3281 = vld [vmem:[#allocation4 + $0x50] sm:$0x1]
        %v3282 = vld [vmem:[#allocation4 + $0x58] sm:$0x1]
        %v3284 = vlaneseq
        %v3285 = vshrl.u32 %v3284, 7
        %v3286 = vsub.s32 0, %v3285
        %v3287 = vrot.slane %v2149, %v3286
        %v3288 = vlaneseq
        %v3289 = vshrl.u32 %v3288, 7
        %v3290 = vsub.s32 1, %v3289
        %v3291 = vrot.slane %v2149, %v3290
        %v3292 = vlaneseq
        %v3293 = vshrl.u32 %v3292, 7
        %v3294 = vsub.s32 2, %v3293
        %v3295 = vrot.slane %v2149, %v3294
        %v3296 = vlaneseq
        %v3297 = vshrl.u32 %v3296, 7
        %v3298 = vsub.s32 3, %v3297
        %v3299 = vrot.slane %v2149, %v3298
        %v3304 = vmul.f32 %v3287, %v3271
        %v3305 = vmul.f32 %v3291, %v3272
        %v3306 = vmul.f32 %v3295, %v3273
        %v3307 = vmul.f32 %v3299, %v3274
        %v3308 = vmul.f32 %v3287, %v3275
        %v3309 = vmul.f32 %v3291, %v3276
        %v3310 = vmul.f32 %v3295, %v3277
        %v3311 = vmul.f32 %v3299, %v3278
        %v3312 = vmul.f32 %v3287, %v3279
        %v3313 = vmul.f32 %v3291, %v3280
        %v3314 = vmul.f32 %v3295, %v3281
        %v3315 = vmul.f32 %v3299, %v3282
        %v3316 = vadd.f32 %v3304, %v3089
        %v3317 = vadd.f32 %v3305, %v3091
        %v3318 = vadd.f32 %v3306, %v3255
        %v3319 = vadd.f32 %v3307, %v3257
        %v3320 = vadd.f32 %v3308, %v3095
        %v3321 = vadd.f32 %v3309, %v3097
        %v3322 = vadd.f32 %v3310, %v3261
        %v3323 = vadd.f32 %v3311, %v3263
        %v3324 = vadd.f32 %v3312, %v3101
        %v3325 = vadd.f32 %v3313, %v3103
        %v3326 = vadd.f32 %v3314, %v3267
        %v3327 = vadd.f32 %v3315, %v3269
        %3328 = vst [vmem:[#allocation4] sm:$0xff] %v3316
        %3329 = vst [vmem:[#allocation4 + $0x8] sm:$0xff] %v3317
        %3330 = vst [vmem:[#allocation4 + $0x10] sm:$0xff] %v3318
        %3331 = vst [vmem:[#allocation4 + $0x18] sm:$0xff] %v3319
        %3332 = vst [vmem:[#allocation4 + $0x20] sm:$0xff] %v3320
        %3333 = vst [vmem:[#allocation4 + $0x28] sm:$0xff] %v3321
        %3334 = vst [vmem:[#allocation4 + $0x30] sm:$0xff] %v3322
        %3335 = vst [vmem:[#allocation4 + $0x38] sm:$0xff] %v3323
        %3336 = vst [vmem:[#allocation4 + $0x40] sm:$0x1] %v3324
        %3337 = vst [vmem:[#allocation4 + $0x48] sm:$0x1] %v3325
        %3338 = vst [vmem:[#allocation4 + $0x50] sm:$0x1] %v3326
        %3339 = vst [vmem:[#allocation4 + $0x58] sm:$0x1] %v3327
        %v3340 = vlaneseq
        %vm3341 = vcmp.ge.s32.totalorder %v3340, 0
        %vm3342 = vcmp.lt.s32.totalorder %v3340, 512
        %vm3343 = vmand %vm3341, %vm3342
        %3344 = vst.msk [vmem:[#allocation3] sm:$0xf] %vm3343, %v2146
        %p3345 = scmp.eq.s32.totalorder %s28, 1
        // Predicated region
        $region95: #{tpu_custom_call.1} parent=81 // pred_check
          %p3346 = pneg %p3345
        $region96: #{tpu_custom_call.1} parent=81 // pred_check_branch
          %3348 = sbr.rel (%p3346) target = $region98
        $region97: #{tpu_custom_call.1} parent=81 // pred_region
          %s3349 = scalar_lea.vmem [#allocation4], 64
          %v3350 = vld [vmem:[%s3349] ss:$8 sm:$0xf]
          %v3351 = vrcp.pop %v3350
          %v3352 = vld [vmem:[#allocation4] sm:$0xff]
          %v3353 = vld [vmem:[#allocation4 + $0x8] sm:$0xff]
          %v3354 = vld [vmem:[#allocation4 + $0x10] sm:$0xff]
          %v3355 = vld [vmem:[#allocation4 + $0x18] sm:$0xff]
          %v3356 = vld [vmem:[#allocation4 + $0x20] sm:$0xff]
          %v3357 = vld [vmem:[#allocation4 + $0x28] sm:$0xff]
          %v3358 = vld [vmem:[#allocation4 + $0x30] sm:$0xff]
          %v3359 = vld [vmem:[#allocation4 + $0x38] sm:$0xff]
          %v3361 = vlaneseq
          %v3362 = vshrl.u32 %v3361, 7
          %v3363 = vsub.s32 0, %v3362
          %v3364 = vrot.slane %v3351, %v3363
          %v3365 = vlaneseq
          %v3366 = vshrl.u32 %v3365, 7
          %v3367 = vsub.s32 1, %v3366
          %v3368 = vrot.slane %v3351, %v3367
          %v3369 = vlaneseq
          %v3370 = vshrl.u32 %v3369, 7
          %v3371 = vsub.s32 2, %v3370
          %v3372 = vrot.slane %v3351, %v3371
          %v3373 = vlaneseq
          %v3374 = vshrl.u32 %v3373, 7
          %v3375 = vsub.s32 3, %v3374
          %v3376 = vrot.slane %v3351, %v3375
          %v3381 = vmul.f32 %v3352, %v3364
          %v3382 = vmul.f32 %v3353, %v3368
          %v3383 = vmul.f32 %v3354, %v3372
          %v3384 = vmul.f32 %v3355, %v3376
          %v3385 = vmul.f32 %v3356, %v3364
          %v3386 = vmul.f32 %v3357, %v3368
          %v3387 = vmul.f32 %v3358, %v3372
          %v3388 = vmul.f32 %v3359, %v3376
          %s3389 = sld [smem:[#allocation5]]
          %v3390 = vstv %s3389
          %v3391 = vmul.f32 %v3390, %v3381
          %v3392 = vmul.f32 %v3390, %v3382
          %v3393 = vmul.f32 %v3390, %v3383
          %v3394 = vmul.f32 %v3390, %v3384
          %v3395 = vmul.f32 %v3390, %v3385
          %v3396 = vmul.f32 %v3390, %v3386
          %v3397 = vmul.f32 %v3390, %v3387
          %v3398 = vmul.f32 %v3390, %v3388
          %v3399 = vld [vmem:[%s355] sm:$0xff]
          %v3400 = vld [vmem:[%s355 + $0x8] sm:$0xff]
          %v3401 = vld [vmem:[%s355 + $0x10] sm:$0xff]
          %v3402 = vld [vmem:[%s355 + $0x18] sm:$0xff]
          %v3403 = vld [vmem:[%s355 + $0x20] sm:$0xff]
          %v3404 = vld [vmem:[%s355 + $0x28] sm:$0xff]
          %v3405 = vld [vmem:[%s355 + $0x30] sm:$0xff]
          %v3406 = vld [vmem:[%s355 + $0x38] sm:$0xff]
          %v3407 = vadd.f32 %v3391, %v3399
          %v3408 = vadd.f32 %v3392, %v3400
          %v3409 = vadd.f32 %v3393, %v3401
          %v3410 = vadd.f32 %v3394, %v3402
          %v3411 = vadd.f32 %v3395, %v3403
          %v3412 = vadd.f32 %v3396, %v3404
          %v3413 = vadd.f32 %v3397, %v3405
          %v3414 = vadd.f32 %v3398, %v3406
          %3415 = vst [vmem:[%s401] sm:$0xff] %v3407
          %3416 = vst [vmem:[%s401 + $0x8] sm:$0xff] %v3408
          %3417 = vst [vmem:[%s401 + $0x10] sm:$0xff] %v3409
          %3418 = vst [vmem:[%s401 + $0x18] sm:$0xff] %v3410
          %3419 = vst [vmem:[%s401 + $0x20] sm:$0xff] %v3411
          %3420 = vst [vmem:[%s401 + $0x28] sm:$0xff] %v3412
          %3421 = vst [vmem:[%s401 + $0x30] sm:$0xff] %v3413
          %3422 = vst [vmem:[%s401 + $0x38] sm:$0xff] %v3414
        $region98: #{tpu_custom_call.1} parent=81 // pred_fallthru
          _
        %s3423 = sand.u32 %s197, 1
        %s3424 = scalar_lea.sflag [#allocation9], %s3423
        %s3425 = sand.u32 %s197, 1
        %s3426 = smul.addr %s3425, 64
        %s3427 = scalar_lea.vmem [#allocation8], %s3426
        // Predicated region
        $region99: #{tpu_custom_call.1} parent=81 // pred_check
          %p3428 = pneg %p207
        $region100: #{tpu_custom_call.1} parent=81 // pred_check_branch
          %3430 = sbr.rel (%p3428) target = $region102
        $region101: #{tpu_custom_call.1} parent=81 // pred_region
          %s3431 = smul.u32 4, %s27
          %s3433 = ssub.s32 1024, 1024
          %3434 = vsyncadd %s3424, %s3433
          %s3435 = smul.addr %s26, 16
          %s3436 = sadd.s32 %s3431, %s3435
          %s3437 = smul.addr %s3436, 128
          %s3438 = scalar_lea.hbm %s6, %s3437
          %s3439 = sshll.u32 %s3427, 4
          %s3440 = int_to_ptr.vmem [resolvable:$true] %s3439
          %3445 = dma.vmem_to_hbm [thread:$0]  %s3440, 1024, %s3438, %s3424, 512, 1024, 32
        $region102: #{tpu_custom_call.1} parent=81 // pred_fallthru
          _
      $region82: #{tpu_custom_call.1} parent=5 // pred_fallthru
        _
      %p3446 = scmp.le.s32.totalorder 2, %s16
      // Predicated region
      $region103: #{tpu_custom_call.1} parent=5 // pred_check
        %p3447 = pneg %p3446
      $region104: #{tpu_custom_call.1} parent=5 // pred_check_branch
        %3449 = sbr.rel (%p3447) target = $region106
      $region105: #{tpu_custom_call.1} parent=5 // pred_region
        %s3450 = ssub.s32 %s16, 2
        // Predicated region
        $region107: #{tpu_custom_call.1} parent=105 // pred_check
          %p3451 = pneg %p213
        $region108: #{tpu_custom_call.1} parent=105 // pred_check_branch
          %3453 = sbr.rel (%p3451) target = $region110
        $region109: #{tpu_custom_call.1} parent=105 // pred_region
          %s3454 = sand.u32 %s198, 1
          %s3455 = scalar_lea.sflag [#allocation9], %s3454
          %s3456 = sand.u32 %s198, 1
          %s3457 = smul.addr %s3456, 64
          %s3458 = scalar_lea.vmem [#allocation8], %s3457
          %3459 = dma.done %s3455, 1024
        $region110: #{tpu_custom_call.1} parent=105 // pred_fallthru
          _
      $region106: #{tpu_custom_call.1} parent=5 // pred_fallthru
        _
    $region6: #{tpu_custom_call.1} parent=1 // loop_footer
      %s20 = sadd.s32 1, %s16
    $region7: #{tpu_custom_call.1} parent=1 // loop_footer_branch
      %15 = sbr.rel target = $region3
    $region8: #{tpu_custom_call.1} parent=1 // loop_exit
      _
    %3460 = vsyncpa [#allocation9], 1
    %s3461 = scalar_lea.sflag [#allocation9], 1
    %3462 = vsyncpa %s3461, 1

</llo_original>
